<compile_context>
chip_gen: v7x
topology: tpu7x:2x2x1
jax: 0.10.0
libtpu: 0.0.40
codegen_flags: <defaults>
</compile_context>

<pallas_src>
from typing import NamedTuple, Optional

import jax
import jax.numpy as jnp
import numpy as np
from jax.experimental import pallas as pl
from jax.experimental.pallas import tpu as pltpu


def _round_up(x, m):
    return ((x + m - 1) // m) * m


def _make_concat_conv_kernel(kh_taps, kw_taps, oh, ow_k, dilation):
    """Builds the fused-im2col, stride-1 conv kernel (static shapes closed over)."""

    def kernel(x_ref, w_ref, b_ref, o_ref):
        # x_ref : (Hp, Wp_k, Cin)      bf16 padded activation (one image)
        # w_ref : (KH*KW, Cin, TCout)  bf16 per-tap weights (VMEM resident)
        # b_ref : (1, TCout)           f32 effective bias
        # o_ref : (OH*OW_k, TCout)     f32 output rows for this image
        cin = x_ref.shape[-1]
        tcout = o_ref.shape[-1]
        acc = jnp.zeros((oh * ow_k, tcout), jnp.float32)
        for kh in range(kh_taps):
            for kw in range(kw_taps):
                tap = kh * kw_taps + kw
                # Shifted (OH, OW_k, Cin) window for this tap (static offsets),
                # flattened VMEM-locally to (OH*OW_k, Cin); OW_k % 8 == 0 keeps
                # the flatten layout-friendly.
                lhs = x_ref[kh * dilation: kh * dilation + oh,
                            kw * dilation: kw * dilation + ow_k, :]
                lhs = lhs.reshape(oh * ow_k, cin)
                acc = acc + jnp.dot(lhs, w_ref[tap],
                                    preferred_element_type=jnp.float32)
        o_ref[...] = (acc + b_ref[...]).astype(o_ref.dtype)

    return kernel


class ConcatConvParams(NamedTuple):
    w_taps: jax.Array             # (KH*KW, Cin_eff, Cout_p) compute dtype
    bias_p: jax.Array             # (Cout_p,) float32
    tcol_p: Optional[jax.Array]   # (Cout_p,) float32; t fold (padding == 0 only)
    ksize_h: int
    ksize_w: int
    cout: int
    padding: int
    dilation: int


def prepare_concat_conv2d(weight, bias, *, padding=0, dilation=1,
                          compute_dtype=jnp.bfloat16):
    """Hoistable per-parameter preprocessing (call once per module, not per t)."""
    assert weight.ndim == 4, "expected OIHW conv weights"
    cout, _cin_w, KH, KW = weight.shape
    if bias is None:
        bias = jnp.zeros((cout,), weight.dtype)
    cout_p = _round_up(cout, 128)

    fold_t = (padding == 0)
    if fold_t:
        # Constant t channel folded into the bias: exact iff no spatial
        # zero-padding touches the (would-be) t channel.
        w_x = weight[:, 1:, :, :]                           # (Cout, C, KH, KW)
        tcol = jnp.sum(weight[:, 0, :, :], axis=(-1, -2))   # (Cout,)
        tcol_p = jnp.pad(tcol, (0, cout_p - cout)).astype(jnp.float32)
    else:
        w_x = weight                                        # (Cout, C+1, KH, KW)
        tcol_p = None

    cin_eff = w_x.shape[1]
    # OIHW -> (KH, KW, Cin, Cout) -> (KH*KW, Cin, Cout_p): tap-major, Cin inner.
    w_taps = jnp.transpose(w_x, (2, 3, 1, 0)).reshape(KH * KW, cin_eff, cout)
    w_taps = jnp.pad(w_taps, ((0, 0), (0, 0), (0, cout_p - cout)))
    w_taps = w_taps.astype(compute_dtype)
    bias_p = jnp.pad(bias, (0, cout_p - cout)).astype(jnp.float32)

    return ConcatConvParams(w_taps, bias_p, tcol_p, KH, KW, int(cout),
                            int(padding), int(dilation))


def concat_conv2d_apply(params, t, x, *, stride=1):
    """ConcatConv2d forward: x is (N, C, H, W) NCHW; returns (N, Cout, OH, OW)."""
    N, C, H, W = x.shape
    KH, KW = params.ksize_h, params.ksize_w
    pad, dil = params.padding, params.dilation
    cout = params.cout
    cout_p = params.bias_p.shape[0]
    cin_eff = params.w_taps.shape[1]
    compute_dtype = params.w_taps.dtype

    t = jnp.asarray(t, jnp.float32)

    if params.tcol_p is not None:
        # padding == 0: t folded into the bias; conv sees only x channels.
        assert cin_eff == C, "conv expects dim_in = C(x) + 1"
        xin = x
        b_eff = params.bias_p + t * params.tcol_p
    else:
        assert cin_eff == C + 1, "conv expects dim_in = C(x) + 1"
        tt = jnp.full((N, 1, H, W), t, x.dtype)
        xin = jnp.concatenate([tt, x], axis=1)
        b_eff = params.bias_p
    b_eff = b_eff.reshape(1, cout_p)

    # NCHW -> NHWC (bf16 for the MXU).
    x_nhwc = jnp.transpose(xin, (0, 2, 3, 1)).astype(compute_dtype)

    # Stride-1 output geometry (stride > 1 handled by subsampling at the end).
    Hp = H + 2 * pad
    Wp = W + 2 * pad
    OH1 = Hp - dil * (KH - 1)
    OW1 = Wp - dil * (KW - 1)
    assert OH1 > 0 and OW1 > 0, "kernel does not fit in the (padded) input"

    # Round the per-row output count to a sublane multiple so the in-kernel
    # flatten is layout-friendly; pad W so every tap window stays in bounds
    # (the extra zero columns only produce rows that are sliced off below).
    OW_k = _round_up(OW1, 8)
    Wp_k = OW_k + dil * (KW - 1)
    x_nhwc = jnp.pad(
        x_nhwc, ((0, 0), (pad, pad), (pad, pad + (Wp_k - Wp)), (0, 0)))
    _, Hp_a, Wp_a, Cin = x_nhwc.shape

    # Cout tiling: 256-lane chunks when possible (full MXU width on v6e/v7x),
    # otherwise a single lane-dense 128 block.
    tcout = 256 if cout_p % 256 == 0 else 128
    n_ct = cout_p // tcout

    kernel = _make_concat_conv_kernel(KH, KW, OH1, OW_k, dil)

    out_rows = pl.pallas_call(
        kernel,
        out_shape=jax.ShapeDtypeStruct((N, OH1 * OW_k, cout_p), x.dtype),
        grid=(N, n_ct),
        in_specs=[
            # Whole padded image per grid step; auto-pipelined, and resident
            # across the inner Cout-tile axis (block index ignores j).
            pl.BlockSpec((None, Hp_a, Wp_a, Cin), lambda n, j: (n, 0, 0, 0)),
            # Tap weights / bias: constant along the batch axis -> resident.
            pl.BlockSpec((KH * KW, Cin, tcout), lambda n, j: (0, 0, j)),
            pl.BlockSpec((1, tcout), lambda n, j: (0, j)),
        ],
        out_specs=pl.BlockSpec((None, OH1 * OW_k, tcout),
                               lambda n, j: (n, 0, j)),
        compiler_params=pltpu.CompilerParams(
            dimension_semantics=("parallel", "arbitrary"),
            vmem_limit_bytes=48 * 1024 * 1024,
        ),
    )(x_nhwc, params.w_taps, b_eff)

    # Strip padding, unflatten, NHWC -> NCHW.
    out = out_rows.reshape(N, OH1, OW_k, cout_p)[:, :, :OW1, :cout]
    out = jnp.transpose(out, (0, 3, 1, 2))
    if stride != 1:
        out = out[:, :, ::stride, ::stride]
    return out


def concat_conv2d(t, x, weight, bias, *, stride=1, padding=0, dilation=1,
                  compute_dtype=jnp.bfloat16):
    """Convenience wrapper: prep + apply in one call."""
    params = prepare_concat_conv2d(weight, bias, padding=padding,
                                   dilation=dilation,
                                   compute_dtype=compute_dtype)
    return concat_conv2d_apply(params, t, x, stride=stride)


if __name__ == "__main__":
    key = jax.random.PRNGKey(0)
    k_x, k_w, k_b = jax.random.split(key, 3)

    # x is (N=2, C=4, H=16, W=16); module built with dim_in = C + 1 = 5,
    # dim_out = 8, ksize = 3, stride=1, dilation=1, groups=1, bias=True,
    # transpose=False.
    N, C, H, W = 2, 4, 16, 16
    dim_in, dim_out, ksize = C + 1, 8, 3

    x = jax.random.normal(k_x, (N, C, H, W), dtype=jnp.float32)
    t = jnp.float32(0.5)

    # Deterministic PyTorch-like init: U(-1/sqrt(fan_in), 1/sqrt(fan_in)).
    fan_in = dim_in * ksize * ksize
    bound = 1.0 / float(np.sqrt(fan_in))
    weight = jax.random.uniform(
        k_w, (dim_out, dim_in, ksize, ksize),
        minval=-bound, maxval=bound, dtype=jnp.float32)
    bias = jax.random.uniform(
        k_b, (dim_out,), minval=-bound, maxval=bound, dtype=jnp.float32)

    # Reference input (module semantics: concat t channel, then conv).
    tt = jnp.ones((N, 1, H, W), x.dtype) * t
    ttx = jnp.concatenate([tt, x], axis=1)

    # --- Case 1: padding = 0 (module default; exercises the t->bias fold) ---
    params0 = prepare_concat_conv2d(weight, bias, padding=0, dilation=1)
    out0 = jax.block_until_ready(concat_conv2d_apply(params0, t, x))
    assert out0.shape == (N, dim_out, H - ksize + 1, W - ksize + 1)

    ref_bf16 = jax.lax.conv_general_dilated(
        ttx.astype(jnp.bfloat16), weight.astype(jnp.bfloat16),
        window_strides=(1, 1), padding="VALID",
        dimension_numbers=("NCHW", "OIHW", "NCHW"),
        preferred_element_type=jnp.float32)
    ref_bf16 = ref_bf16 + bias[None, :, None, None]
    np.testing.assert_allclose(np.asarray(out0), np.asarray(ref_bf16),
                               rtol=2e-2, atol=2e-2)

    ref_f32 = jax.lax.conv_general_dilated(
        ttx, weight, window_strides=(1, 1), padding="VALID",
        dimension_numbers=("NCHW", "OIHW", "NCHW"))
    ref_f32 = ref_f32 + bias[None, :, None, None]
    np.testing.assert_allclose(np.asarray(out0), np.asarray(ref_f32),
                               rtol=5e-2, atol=5e-2)

    # --- Case 2: padding = 1 (exercises the concat path, no fold) ---
    params1 = prepare_concat_conv2d(weight, bias, padding=1, dilation=1)
    out1 = jax.block_until_ready(concat_conv2d_apply(params1, t, x))
    assert out1.shape == (N, dim_out, H, W)

    ref_pad = jax.lax.conv_general_dilated(
        ttx, weight, window_strides=(1, 1), padding=((1, 1), (1, 1)),
        dimension_numbers=("NCHW", "OIHW", "NCHW"))
    ref_pad = ref_pad + bias[None, :, None, None]
    np.testing.assert_allclose(np.asarray(out1), np.asarray(ref_pad),
                               rtol=5e-2, atol=5e-2)

    print("KERNEL_OK")
</pallas_src>

<mosaic_0001>
module attributes {stable_mosaic.version = 11 : i64} {
  func.func @kernel(%arg0: i32, %arg1: i32, %arg2: memref<1x16x18x4xbf16, #tpu.memory_space<vmem>>, %arg3: memref<9x4x128xbf16, #tpu.memory_space<vmem>>, %arg4: memref<1x128xf32, #tpu.memory_space<vmem>>, %arg5: memref<1x224x128xf32, #tpu.memory_space<vmem>>) attributes {dimension_semantics = [#tpu.dimension_semantics<parallel>, #tpu.dimension_semantics<arbitrary>], iteration_bounds = array<i64: 2, 1>, scalar_prefetch = 0 : i64, scratch_operands = 0 : i64, tpu.core_type = #tpu.core_type<tc>, window_params = [{transform_indices = @transform_0, window_bounds = array<i64: 1, 16, 18, 4>}, {transform_indices = @transform_1, window_bounds = array<i64: 9, 4, 128>}, {transform_indices = @transform_2, window_bounds = array<i64: 1, 128>}, {transform_indices = @transform_3, window_bounds = array<i64: 1, 224, 128>}]} {
    %cst = arith.constant 0.000000e+00 : f32
    %0 = vector.broadcast %cst : f32 to vector<224x128xf32>
    %c0 = arith.constant 0 : index
    %c0_0 = arith.constant 0 : index
    %c0_1 = arith.constant 0 : index
    %c0_2 = arith.constant 0 : index
    %1 = vector.load %arg2[%c0, %c0_0, %c0_1, %c0_2] : memref<1x16x18x4xbf16, #tpu.memory_space<vmem>>, vector<1x14x16x4xbf16>
    %2 = vector.shape_cast %1 : vector<1x14x16x4xbf16> to vector<14x16x4xbf16>
    %3 = vector.shape_cast %2 : vector<14x16x4xbf16> to vector<224x4xbf16>
    %c0_3 = arith.constant 0 : index
    %c0_4 = arith.constant 0 : index
    %c0_5 = arith.constant 0 : index
    %4 = vector.load %arg3[%c0_3, %c0_4, %c0_5] : memref<9x4x128xbf16, #tpu.memory_space<vmem>>, vector<1x4x128xbf16>
    %5 = vector.shape_cast %4 : vector<1x4x128xbf16> to vector<4x128xbf16>
    %cst_6 = arith.constant dense<0.000000e+00> : vector<224x128xf32>
    %6 = tpu.matmul %3, %5, %cst_6 {dimension_numbers = #tpu.dot_dimension_numbers<[1], [0], [0], [1], [0, 0, 1, 1], [], []>} : vector<224x4xbf16>, vector<4x128xbf16>, vector<224x128xf32> -> vector<224x128xf32>
    %7 = arith.addf %0, %6 : vector<224x128xf32>
    %c0_7 = arith.constant 0 : index
    %c0_8 = arith.constant 0 : index
    %c1 = arith.constant 1 : index
    %c0_9 = arith.constant 0 : index
    %8 = vector.load %arg2[%c0_7, %c0_8, %c1, %c0_9] : memref<1x16x18x4xbf16, #tpu.memory_space<vmem>>, vector<1x14x16x4xbf16>
    %9 = vector.shape_cast %8 : vector<1x14x16x4xbf16> to vector<14x16x4xbf16>
    %10 = vector.shape_cast %9 : vector<14x16x4xbf16> to vector<224x4xbf16>
    %c1_10 = arith.constant 1 : index
    %c0_11 = arith.constant 0 : index
    %c0_12 = arith.constant 0 : index
    %11 = vector.load %arg3[%c1_10, %c0_11, %c0_12] : memref<9x4x128xbf16, #tpu.memory_space<vmem>>, vector<1x4x128xbf16>
    %12 = vector.shape_cast %11 : vector<1x4x128xbf16> to vector<4x128xbf16>
    %cst_13 = arith.constant dense<0.000000e+00> : vector<224x128xf32>
    %13 = tpu.matmul %10, %12, %cst_13 {dimension_numbers = #tpu.dot_dimension_numbers<[1], [0], [0], [1], [0, 0, 1, 1], [], []>} : vector<224x4xbf16>, vector<4x128xbf16>, vector<224x128xf32> -> vector<224x128xf32>
    %14 = arith.addf %7, %13 : vector<224x128xf32>
    %c0_14 = arith.constant 0 : index
    %c0_15 = arith.constant 0 : index
    %c2 = arith.constant 2 : index
    %c0_16 = arith.constant 0 : index
    %15 = vector.load %arg2[%c0_14, %c0_15, %c2, %c0_16] : memref<1x16x18x4xbf16, #tpu.memory_space<vmem>>, vector<1x14x16x4xbf16>
    %16 = vector.shape_cast %15 : vector<1x14x16x4xbf16> to vector<14x16x4xbf16>
    %17 = vector.shape_cast %16 : vector<14x16x4xbf16> to vector<224x4xbf16>
    %c2_17 = arith.constant 2 : index
    %c0_18 = arith.constant 0 : index
    %c0_19 = arith.constant 0 : index
    %18 = vector.load %arg3[%c2_17, %c0_18, %c0_19] : memref<9x4x128xbf16, #tpu.memory_space<vmem>>, vector<1x4x128xbf16>
    %19 = vector.shape_cast %18 : vector<1x4x128xbf16> to vector<4x128xbf16>
    %cst_20 = arith.constant dense<0.000000e+00> : vector<224x128xf32>
    %20 = tpu.matmul %17, %19, %cst_20 {dimension_numbers = #tpu.dot_dimension_numbers<[1], [0], [0], [1], [0, 0, 1, 1], [], []>} : vector<224x4xbf16>, vector<4x128xbf16>, vector<224x128xf32> -> vector<224x128xf32>
    %21 = arith.addf %14, %20 : vector<224x128xf32>
    %c0_21 = arith.constant 0 : index
    %c1_22 = arith.constant 1 : index
    %c0_23 = arith.constant 0 : index
    %c0_24 = arith.constant 0 : index
    %22 = vector.load %arg2[%c0_21, %c1_22, %c0_23, %c0_24] : memref<1x16x18x4xbf16, #tpu.memory_space<vmem>>, vector<1x14x16x4xbf16>
    %23 = vector.shape_cast %22 : vector<1x14x16x4xbf16> to vector<14x16x4xbf16>
    %24 = vector.shape_cast %23 : vector<14x16x4xbf16> to vector<224x4xbf16>
    %c3 = arith.constant 3 : index
    %c0_25 = arith.constant 0 : index
    %c0_26 = arith.constant 0 : index
    %25 = vector.load %arg3[%c3, %c0_25, %c0_26] : memref<9x4x128xbf16, #tpu.memory_space<vmem>>, vector<1x4x128xbf16>
    %26 = vector.shape_cast %25 : vector<1x4x128xbf16> to vector<4x128xbf16>
    %cst_27 = arith.constant dense<0.000000e+00> : vector<224x128xf32>
    %27 = tpu.matmul %24, %26, %cst_27 {dimension_numbers = #tpu.dot_dimension_numbers<[1], [0], [0], [1], [0, 0, 1, 1], [], []>} : vector<224x4xbf16>, vector<4x128xbf16>, vector<224x128xf32> -> vector<224x128xf32>
    %28 = arith.addf %21, %27 : vector<224x128xf32>
    %c0_28 = arith.constant 0 : index
    %c1_29 = arith.constant 1 : index
    %c1_30 = arith.constant 1 : index
    %c0_31 = arith.constant 0 : index
    %29 = vector.load %arg2[%c0_28, %c1_29, %c1_30, %c0_31] : memref<1x16x18x4xbf16, #tpu.memory_space<vmem>>, vector<1x14x16x4xbf16>
    %30 = vector.shape_cast %29 : vector<1x14x16x4xbf16> to vector<14x16x4xbf16>
    %31 = vector.shape_cast %30 : vector<14x16x4xbf16> to vector<224x4xbf16>
    %c4 = arith.constant 4 : index
    %c0_32 = arith.constant 0 : index
    %c0_33 = arith.constant 0 : index
    %32 = vector.load %arg3[%c4, %c0_32, %c0_33] : memref<9x4x128xbf16, #tpu.memory_space<vmem>>, vector<1x4x128xbf16>
    %33 = vector.shape_cast %32 : vector<1x4x128xbf16> to vector<4x128xbf16>
    %cst_34 = arith.constant dense<0.000000e+00> : vector<224x128xf32>
    %34 = tpu.matmul %31, %33, %cst_34 {dimension_numbers = #tpu.dot_dimension_numbers<[1], [0], [0], [1], [0, 0, 1, 1], [], []>} : vector<224x4xbf16>, vector<4x128xbf16>, vector<224x128xf32> -> vector<224x128xf32>
    %35 = arith.addf %28, %34 : vector<224x128xf32>
    %c0_35 = arith.constant 0 : index
    %c1_36 = arith.constant 1 : index
    %c2_37 = arith.constant 2 : index
    %c0_38 = arith.constant 0 : index
    %36 = vector.load %arg2[%c0_35, %c1_36, %c2_37, %c0_38] : memref<1x16x18x4xbf16, #tpu.memory_space<vmem>>, vector<1x14x16x4xbf16>
    %37 = vector.shape_cast %36 : vector<1x14x16x4xbf16> to vector<14x16x4xbf16>
    %38 = vector.shape_cast %37 : vector<14x16x4xbf16> to vector<224x4xbf16>
    %c5 = arith.constant 5 : index
    %c0_39 = arith.constant 0 : index
    %c0_40 = arith.constant 0 : index
    %39 = vector.load %arg3[%c5, %c0_39, %c0_40] : memref<9x4x128xbf16, #tpu.memory_space<vmem>>, vector<1x4x128xbf16>
    %40 = vector.shape_cast %39 : vector<1x4x128xbf16> to vector<4x128xbf16>
    %cst_41 = arith.constant dense<0.000000e+00> : vector<224x128xf32>
    %41 = tpu.matmul %38, %40, %cst_41 {dimension_numbers = #tpu.dot_dimension_numbers<[1], [0], [0], [1], [0, 0, 1, 1], [], []>} : vector<224x4xbf16>, vector<4x128xbf16>, vector<224x128xf32> -> vector<224x128xf32>
    %42 = arith.addf %35, %41 : vector<224x128xf32>
    %c0_42 = arith.constant 0 : index
    %c2_43 = arith.constant 2 : index
    %c0_44 = arith.constant 0 : index
    %c0_45 = arith.constant 0 : index
    %43 = vector.load %arg2[%c0_42, %c2_43, %c0_44, %c0_45] : memref<1x16x18x4xbf16, #tpu.memory_space<vmem>>, vector<1x14x16x4xbf16>
    %44 = vector.shape_cast %43 : vector<1x14x16x4xbf16> to vector<14x16x4xbf16>
    %45 = vector.shape_cast %44 : vector<14x16x4xbf16> to vector<224x4xbf16>
    %c6 = arith.constant 6 : index
    %c0_46 = arith.constant 0 : index
    %c0_47 = arith.constant 0 : index
    %46 = vector.load %arg3[%c6, %c0_46, %c0_47] : memref<9x4x128xbf16, #tpu.memory_space<vmem>>, vector<1x4x128xbf16>
    %47 = vector.shape_cast %46 : vector<1x4x128xbf16> to vector<4x128xbf16>
    %cst_48 = arith.constant dense<0.000000e+00> : vector<224x128xf32>
    %48 = tpu.matmul %45, %47, %cst_48 {dimension_numbers = #tpu.dot_dimension_numbers<[1], [0], [0], [1], [0, 0, 1, 1], [], []>} : vector<224x4xbf16>, vector<4x128xbf16>, vector<224x128xf32> -> vector<224x128xf32>
    %49 = arith.addf %42, %48 : vector<224x128xf32>
    %c0_49 = arith.constant 0 : index
    %c2_50 = arith.constant 2 : index
    %c1_51 = arith.constant 1 : index
    %c0_52 = arith.constant 0 : index
    %50 = vector.load %arg2[%c0_49, %c2_50, %c1_51, %c0_52] : memref<1x16x18x4xbf16, #tpu.memory_space<vmem>>, vector<1x14x16x4xbf16>
    %51 = vector.shape_cast %50 : vector<1x14x16x4xbf16> to vector<14x16x4xbf16>
    %52 = vector.shape_cast %51 : vector<14x16x4xbf16> to vector<224x4xbf16>
    %c7 = arith.constant 7 : index
    %c0_53 = arith.constant 0 : index
    %c0_54 = arith.constant 0 : index
    %53 = vector.load %arg3[%c7, %c0_53, %c0_54] : memref<9x4x128xbf16, #tpu.memory_space<vmem>>, vector<1x4x128xbf16>
    %54 = vector.shape_cast %53 : vector<1x4x128xbf16> to vector<4x128xbf16>
    %cst_55 = arith.constant dense<0.000000e+00> : vector<224x128xf32>
    %55 = tpu.matmul %52, %54, %cst_55 {dimension_numbers = #tpu.dot_dimension_numbers<[1], [0], [0], [1], [0, 0, 1, 1], [], []>} : vector<224x4xbf16>, vector<4x128xbf16>, vector<224x128xf32> -> vector<224x128xf32>
    %56 = arith.addf %49, %55 : vector<224x128xf32>
    %c0_56 = arith.constant 0 : index
    %c2_57 = arith.constant 2 : index
    %c2_58 = arith.constant 2 : index
    %c0_59 = arith.constant 0 : index
    %57 = vector.load %arg2[%c0_56, %c2_57, %c2_58, %c0_59] : memref<1x16x18x4xbf16, #tpu.memory_space<vmem>>, vector<1x14x16x4xbf16>
    %58 = vector.shape_cast %57 : vector<1x14x16x4xbf16> to vector<14x16x4xbf16>
    %59 = vector.shape_cast %58 : vector<14x16x4xbf16> to vector<224x4xbf16>
    %c8 = arith.constant 8 : index
    %c0_60 = arith.constant 0 : index
    %c0_61 = arith.constant 0 : index
    %60 = vector.load %arg3[%c8, %c0_60, %c0_61] : memref<9x4x128xbf16, #tpu.memory_space<vmem>>, vector<1x4x128xbf16>
    %61 = vector.shape_cast %60 : vector<1x4x128xbf16> to vector<4x128xbf16>
    %cst_62 = arith.constant dense<0.000000e+00> : vector<224x128xf32>
    %62 = tpu.matmul %59, %61, %cst_62 {dimension_numbers = #tpu.dot_dimension_numbers<[1], [0], [0], [1], [0, 0, 1, 1], [], []>} : vector<224x4xbf16>, vector<4x128xbf16>, vector<224x128xf32> -> vector<224x128xf32>
    %63 = arith.addf %56, %62 : vector<224x128xf32>
    %c0_63 = arith.constant 0 : index
    %c0_64 = arith.constant 0 : index
    %64 = vector.load %arg4[%c0_63, %c0_64] : memref<1x128xf32, #tpu.memory_space<vmem>>, vector<1x128xf32>
    %65 = vector.broadcast %64 : vector<1x128xf32> to vector<224x128xf32>
    %66 = arith.addf %63, %65 : vector<224x128xf32>
    %c0_65 = arith.constant 0 : index
    %c0_66 = arith.constant 0 : index
    %c0_67 = arith.constant 0 : index
    %67 = vector.load %arg5[%c0_65, %c0_66, %c0_67] : memref<1x224x128xf32, #tpu.memory_space<vmem>>, vector<1x224x128xf32>
    %68 = vector.shape_cast %67 : vector<1x224x128xf32> to vector<224x128xf32>
    %69 = vector.shape_cast %66 : vector<224x128xf32> to vector<1x224x128xf32>
    tpu.vector_store %arg5[%c0_65, %c0_66, %c0_67], %69 {strides = array<i32>} : memref<1x224x128xf32, #tpu.memory_space<vmem>>, vector<1x224x128xf32>,
    return
  }
  func.func @transform_0(%arg0: i32, %arg1: i32) -> (i32, i32, i32, i32) {
    %c0_i32 = arith.constant 0 : i32
    %c0_i32_0 = arith.constant 0 : i32
    %c0_i32_1 = arith.constant 0 : i32
    %c0_i32_2 = arith.constant 0 : i32
    return %arg0, %c0_i32, %c0_i32_0, %c0_i32_1 : i32, i32, i32, i32
  }
  func.func @transform_1(%arg0: i32, %arg1: i32) -> (i32, i32, i32) {
    %c0_i32 = arith.constant 0 : i32
    %c0_i32_0 = arith.constant 0 : i32
    %c0_i32_1 = arith.constant 0 : i32
    return %c0_i32, %c0_i32_0, %arg1 : i32, i32, i32
  }
  func.func @transform_2(%arg0: i32, %arg1: i32) -> (i32, i32) {
    %c0_i32 = arith.constant 0 : i32
    %c0_i32_0 = arith.constant 0 : i32
    return %c0_i32, %arg1 : i32, i32
  }
  func.func @transform_3(%arg0: i32, %arg1: i32) -> (i32, i32, i32) {
    %c0_i32 = arith.constant 0 : i32
    %c0_i32_0 = arith.constant 0 : i32
    return %arg0, %c0_i32, %arg1 : i32, i32, i32
  }
}

</mosaic_0001>

<llo_original>
// kernel: tpu_custom_call.1
$region0: #{tpu_custom_call.1}
  #allocation0 [shape = 'u32[]', space=smem, size = 0x4, offset = 0x4, fixed_abs, tag = 'smem constant byte address 0x4 - core index']
  #allocation1 [shape = 'u32[144,128]{1,0:T(1,128)}', space=vmem, size = 0x12000, scoped, tag = 'internal scratch']
  %s0 = inlined_call_operand.vmem [shape: bf16[2,16,18,4], index: 0, kind: input, shape index: {}]
  %s1 = inlined_call_operand.vmem [shape: bf16[9,4,128], index: 1, kind: input, shape index: {}]
  %s2 = inlined_call_operand.vmem [shape: f32[1,128], index: 2, kind: input, shape index: {}]
  %s3 = inlined_call_operand.hbm [shape: f32[2,224,128], index: 3, kind: output, shape index: {}]
  %s4 = sld [smem:[#allocation0]]
  $region45: #{tpu_custom_call.1} parent=0
    _
  %s6 = ssub.s32 1, %s4
  %s7 = scalar_select 0, %s6, %s4
  $region1: #{tpu_custom_call.1} parent=0
    #allocation2 [shape = 'u8[229376]{0}', space=vmem, size = 0x38000, scoped, tag = 'output window, operand 0']
    #allocation3 [shape = 's32[2]{0}', space=sflag, size = 0x8, scoped, tag = 'scoped memory for tpu_custom_call.1']
    %8 = vsyncpa [#allocation3], 0
    %s9 = scalar_lea.sflag [#allocation3], 1
    %10 = vsyncpa %s9, 0
    loop: start=0, step=1, limit=4
    $region2: #{tpu_custom_call.1} parent=1 // loop_pre_header
      _
    $region3: #{tpu_custom_call.1} parent=1 // loop_header
      %s12 = sphi 0, %s16
      %p13 = scmp.ge.s32.totalorder %s12, 4
      %s19 = sphi 0, %s31
      %s20 = sphi 0, %s27
      %s21 = sphi 0, %s19
      %s22 = sphi 0, %s20
      %s23 = sphi 0, %s21
      %s24 = sphi 0, %s22
      %s34 = sphi 0, %s36
      %s37 = sphi 0, %s34
      %s38 = sphi 0, %s37
      %s54 = sphi 0, %s38
      %s60 = sphi 0, %s62
      %s63 = sphi 0, %s60
      %s64 = sphi 0, %s63
      %s80 = sphi 0, %s64
      %s86 = sphi 0, %s88
      %s89 = sphi 0, %s86
      %s90 = sphi 0, %s89
      %s106 = sphi 0, %s90
      %s114 = sphi 0, %s116
      %s117 = sphi 0, %s114
      %s118 = sphi 0, %s117
      %s134 = sphi 0, %s118
    $region4: #{tpu_custom_call.1} parent=1 // loop_header_branch
      %15 = sbr.rel (%p13) target = $region8
    $region5: #{tpu_custom_call.1} parent=1 // loop_body
      %s17 = ssub.s32 %s12, 1
      %s18 = ssub.s32 %s12, 2
      %s25 = sadd.s32 1, %s20
      %p26 = scmp.ge.s32.totalorder %s25, 1
      %s27 = scalar_select %p26, 0, %s25
      %s28 = sadd.s32 1, %s19
      %s29 = scalar_select %p26, %s28, %s19
      %p30 = scmp.ge.s32.totalorder %s29, 2
      %s31 = scalar_select %p30, 0, %s29
      %s32 = ssub.s32 %s19, %s31
      %p33 = scmp.eq.s32.totalorder %s32, 0
      %s35 = sadd.s32 %s34, 1
      %s36 = scalar_select %p33, %s34, %s35
      %p39 = pneg %p33
      %p40 = scmp.eq.s32.totalorder %s12, 1
      %p41 = por %p39, %p40
      %p42 = scmp.ne.s32.totalorder %s34, %s37
      %p43 = scmp.eq.s32.totalorder %s12, 0
      %p44 = por %p42, %p43
      %p45 = scmp.ne.s32.totalorder %s34, %s37
      %p46 = scmp.eq.s32.totalorder %s17, 1
      %p47 = por %p45, %p46
      %p48 = scmp.ne.s32.totalorder %s37, %s38
      %p49 = scmp.eq.s32.totalorder %s17, 0
      %p50 = por %p48, %p49
      %p51 = scmp.ne.s32.totalorder %s37, %s38
      %p52 = scmp.eq.s32.totalorder %s18, 1
      %p53 = por %p51, %p52
      %p55 = scmp.ne.s32.totalorder %s38, %s54
      %p56 = scmp.eq.s32.totalorder %s18, 0
      %p57 = por %p55, %p56
      %s58 = ssub.s32 %s20, %s27
      %p59 = scmp.eq.s32.totalorder %s58, 0
      %s61 = sadd.s32 %s60, 1
      %s62 = scalar_select %p59, %s60, %s61
      %p65 = pneg %p59
      %p66 = scmp.eq.s32.totalorder %s12, 1
      %p67 = por %p65, %p66
      %p68 = scmp.ne.s32.totalorder %s60, %s63
      %p69 = scmp.eq.s32.totalorder %s12, 0
      %p70 = por %p68, %p69
      %p71 = scmp.ne.s32.totalorder %s60, %s63
      %p72 = scmp.eq.s32.totalorder %s17, 1
      %p73 = por %p71, %p72
      %p74 = scmp.ne.s32.totalorder %s63, %s64
      %p75 = scmp.eq.s32.totalorder %s17, 0
      %p76 = por %p74, %p75
      %p77 = scmp.ne.s32.totalorder %s63, %s64
      %p78 = scmp.eq.s32.totalorder %s18, 1
      %p79 = por %p77, %p78
      %p81 = scmp.ne.s32.totalorder %s64, %s80
      %p82 = scmp.eq.s32.totalorder %s18, 0
      %p83 = por %p81, %p82
      %s84 = ssub.s32 %s20, %s27
      %p85 = scmp.eq.s32.totalorder %s84, 0
      %s87 = sadd.s32 %s86, 1
      %s88 = scalar_select %p85, %s86, %s87
      %p91 = pneg %p85
      %p92 = scmp.eq.s32.totalorder %s12, 1
      %p93 = por %p91, %p92
      %p94 = scmp.ne.s32.totalorder %s86, %s89
      %p95 = scmp.eq.s32.totalorder %s12, 0
      %p96 = por %p94, %p95
      %p97 = scmp.ne.s32.totalorder %s86, %s89
      %p98 = scmp.eq.s32.totalorder %s17, 1
      %p99 = por %p97, %p98
      %p100 = scmp.ne.s32.totalorder %s89, %s90
      %p101 = scmp.eq.s32.totalorder %s17, 0
      %p102 = por %p100, %p101
      %p103 = scmp.ne.s32.totalorder %s89, %s90
      %p104 = scmp.eq.s32.totalorder %s18, 1
      %p105 = por %p103, %p104
      %p107 = scmp.ne.s32.totalorder %s90, %s106
      %p108 = scmp.eq.s32.totalorder %s18, 0
      %p109 = por %p107, %p108
      %s110 = ssub.s32 %s19, %s31
      %s111 = ssub.s32 %s20, %s27
      %s112 = sor.u32 %s110, %s111
      %p113 = scmp.eq.s32.totalorder %s112, 0
      %s115 = sadd.s32 %s114, 1
      %s116 = scalar_select %p113, %s114, %s115
      %p119 = pneg %p113
      %p120 = scmp.eq.s32.totalorder %s12, 1
      %p121 = por %p119, %p120
      %p122 = scmp.ne.s32.totalorder %s114, %s117
      %p123 = scmp.eq.s32.totalorder %s12, 0
      %p124 = por %p122, %p123
      %p125 = scmp.ne.s32.totalorder %s114, %s117
      %p126 = scmp.eq.s32.totalorder %s17, 1
      %p127 = por %p125, %p126
      %p128 = scmp.ne.s32.totalorder %s117, %s118
      %p129 = scmp.eq.s32.totalorder %s17, 0
      %p130 = por %p128, %p129
      %p131 = scmp.ne.s32.totalorder %s117, %s118
      %p132 = scmp.eq.s32.totalorder %s18, 1
      %p133 = por %p131, %p132
      %p135 = scmp.ne.s32.totalorder %s118, %s134
      %p136 = scmp.eq.s32.totalorder %s18, 0
      %p137 = por %p135, %p136
      %p138 = scmp.le.s32.totalorder 1, %s12
      %p139 = scmp.lt.s32.totalorder %s12, 3
      %p140 = pnand %p138, %p139
      %p141 = pneg %p140
      // Predicated region
      $region9: #{tpu_custom_call.1} parent=5 // pred_check
        _
      $region10: #{tpu_custom_call.1} parent=5 // pred_check_branch
        %143 = sbr.rel (%p140) target = $region12
      $region11: #{tpu_custom_call.1} parent=5 // pred_region
        %s144 = ssub.s32 %s12, 1
        // Predicated region
        $region13: #{tpu_custom_call.1} parent=11 // pred_check
          %p145 = pneg %p76
        $region14: #{tpu_custom_call.1} parent=11 // pred_check_branch
          %147 = sbr.rel (%p145) target = $region16
        $region15: #{tpu_custom_call.1} parent=11 // pred_region
          %p148 = scmp.lt.s32.totalorder %s22, 0
          %s149 = scalar_select %p148, %s22, 0
          %s150 = smul.addr %s149, 2
          %s151 = scalar_lea.vmem %s1, %s150
        $region16: #{tpu_custom_call.1} parent=11 // pred_fallthru
          _
        // Predicated region
        $region17: #{tpu_custom_call.1} parent=11 // pred_check
          %p152 = pneg %p102
        $region18: #{tpu_custom_call.1} parent=11 // pred_check_branch
          %154 = sbr.rel (%p152) target = $region20
        $region19: #{tpu_custom_call.1} parent=11 // pred_region
          %p155 = scmp.lt.s32.totalorder %s22, 0
          %s156 = scalar_select %p155, %s22, 0
          %s157 = scalar_lea.vmem %s2, %s156
        $region20: #{tpu_custom_call.1} parent=11 // pred_fallthru
          _
      $region12: #{tpu_custom_call.1} parent=5 // pred_fallthru
        _
      %p158 = scmp.lt.s32.totalorder %s12, 2
      // Predicated region
      $region21: #{tpu_custom_call.1} parent=5 // pred_check
        %p159 = pneg %p158
      $region22: #{tpu_custom_call.1} parent=5 // pred_check_branch
        %161 = sbr.rel (%p159) target = $region24
      $region23: #{tpu_custom_call.1} parent=5 // pred_region
        // Predicated region
        $region25: #{tpu_custom_call.1} parent=23 // pred_check
          %p162 = pneg %p44
        $region26: #{tpu_custom_call.1} parent=23 // pred_check_branch
          %164 = sbr.rel (%p162) target = $region28
        $region27: #{tpu_custom_call.1} parent=23 // pred_region
          %p165 = scmp.lt.s32.totalorder %s19, 1
          %s166 = scalar_select %p165, %s19, 1
          %s167 = smul.addr %s166, 48
          %s168 = smul.addr %s167, 4
          %s169 = scalar_lea.vmem %s0, %s168
        $region28: #{tpu_custom_call.1} parent=23 // pred_fallthru
          _
      $region24: #{tpu_custom_call.1} parent=5 // pred_fallthru
        _
      %p170 = scmp.le.s32.totalorder 1, %s12
      %p171 = scmp.lt.s32.totalorder %s12, 3
      %p172 = pnand %p170, %p171
      %p173 = pneg %p172
      // Predicated region
      $region29: #{tpu_custom_call.1} parent=5 // pred_check
        _
      $region30: #{tpu_custom_call.1} parent=5 // pred_check_branch
        %175 = sbr.rel (%p172) target = $region32
      $region31: #{tpu_custom_call.1} parent=5 // pred_region
        %s176 = ssub.s32 %s12, 1
        %p177 = scmp.lt.s32.totalorder %s21, 1
        %s178 = scalar_select %p177, %s21, 1
        %s179 = smul.addr %s178, 48
        %s180 = smul.addr %s179, 4
        %s181 = scalar_lea.vmem %s0, %s180
        %p182 = pneg %p50
        %p183 = pneg %p47
        %p184 = scmp.lt.s32.totalorder %s22, 0
        %s185 = scalar_select %p184, %s22, 0
        %s186 = smul.addr %s185, 2
        %s187 = scalar_lea.vmem %s1, %s186
        %p188 = pneg %p76
        %p189 = pneg %p73
        %p190 = scmp.lt.s32.totalorder %s22, 0
        %s191 = scalar_select %p190, %s22, 0
        %s192 = scalar_lea.vmem %s2, %s191
        %p193 = pneg %p102
        %p194 = pneg %p99
        %p195 = pneg %p130
        %p196 = pneg %p127
        %s197 = sand.u32 %s117, 1
        %s198 = scalar_lea.sflag [#allocation3], %s197
        %s199 = sand.u32 %s117, 1
        %s200 = smul.addr %s199, 224
        %s201 = scalar_lea.vmem [#allocation2], %s200
        %p202 = scmp.lt.s32.totalorder %s21, 1
        %s203 = scalar_select %p202, %s21, 1
        %s204 = smul.addr %s203, 48
        %s205 = smul.addr %s204, 4
        %s206 = scalar_lea.vmem %s0, %s205
        %p207 = scmp.lt.s32.totalorder %s22, 0
        %s208 = scalar_select %p207, %s22, 0
        %s209 = smul.addr %s208, 2
        %s210 = scalar_lea.vmem %s1, %s209
        %p211 = scmp.lt.s32.totalorder %s22, 0
        %s212 = scalar_select %p211, %s22, 0
        %s213 = scalar_lea.vmem %s2, %s212
        %v215 = vld [vmem:[%s206] sm:$0xf]
        %v216 = vld [vmem:[%s206 + $0x4] sm:$0xf]
        %v217 = vld [vmem:[%s206 + $0xc] sm:$0xf]
        %v218 = vld [vmem:[%s206 + $0x10] sm:$0xf]
        %v219 = vld [vmem:[%s206 + $0x18] sm:$0xf]
        %v220 = vld [vmem:[%s206 + $0x1c] sm:$0xf]
        %v221 = vld [vmem:[%s206 + $0x24] sm:$0xf]
        %v222 = vld [vmem:[%s206 + $0x28] sm:$0xf]
        %v223 = vld [vmem:[%s206 + $0x30] sm:$0xf]
        %v224 = vld [vmem:[%s206 + $0x34] sm:$0xf]
        %v225 = vld [vmem:[%s206 + $0x3c] sm:$0xf]
        %v226 = vld [vmem:[%s206 + $0x40] sm:$0xf]
        %v227 = vld [vmem:[%s206 + $0x48] sm:$0xf]
        %v228 = vld [vmem:[%s206 + $0x4c] sm:$0xf]
        %v229 = vld [vmem:[%s206 + $0x54] sm:$0xf]
        %v230 = vld [vmem:[%s206 + $0x58] sm:$0xf]
        %v231 = vld [vmem:[%s206 + $0x60] sm:$0xf]
        %v232 = vld [vmem:[%s206 + $0x64] sm:$0xf]
        %v233 = vld [vmem:[%s206 + $0x6c] sm:$0xf]
        %v234 = vld [vmem:[%s206 + $0x70] sm:$0xf]
        %v235 = vld [vmem:[%s206 + $0x78] sm:$0xf]
        %v236 = vld [vmem:[%s206 + $0x7c] sm:$0xf]
        %v237 = vld [vmem:[%s206 + $0x84] sm:$0xf]
        %v238 = vld [vmem:[%s206 + $0x88] sm:$0xf]
        %v239 = vld [vmem:[%s206 + $0x90] sm:$0xf]
        %v240 = vld [vmem:[%s206 + $0x94] sm:$0xf]
        %v241 = vld [vmem:[%s206 + $0x9c] sm:$0xf]
        %v242 = vld [vmem:[%s206 + $0xa0] sm:$0xf]
        %v243 = vld [vmem:[%s210] sm:$0x3]
        %v244 = vld [vmem:[%s206 + $0x8] sm:$0x1]
        %v245 = vld [vmem:[%s206 + $0x14] sm:$0x1]
        %v246 = vld [vmem:[%s206 + $0x20] sm:$0x1]
        %v247 = vld [vmem:[%s206 + $0x2c] sm:$0x1]
        %v248 = vld [vmem:[%s206 + $0x38] sm:$0x1]
        %v249 = vld [vmem:[%s206 + $0x44] sm:$0x1]
        %v250 = vld [vmem:[%s206 + $0x50] sm:$0x1]
        %v251 = vld [vmem:[%s206 + $0x5c] sm:$0x1]
        %v252 = vld [vmem:[%s206 + $0x68] sm:$0x1]
        %v253 = vld [vmem:[%s206 + $0x74] sm:$0x1]
        %v254 = vld [vmem:[%s206 + $0x80] sm:$0x1]
        %v255 = vld [vmem:[%s206 + $0x8c] sm:$0x1]
        %v256 = vld [vmem:[%s206 + $0x98] sm:$0x1]
        %v257 = vld [vmem:[%s206 + $0xa4] sm:$0x1]
        %vm258 = vsmask.f32 3328
        %vm259 = vsmask.f32 7440
        %vm260 = vmor %vm258, %vm259
        %v262 = vshrl.u32 %v215, 16
        %v264 = vrot.slane %v262, 4
        %v265 = vshll.u32 %v215, 16
        %v267 = vrot.slane %v265, 5
        %v268 = vor.u32 %v264, %v267
        %v269 = vrot.slane %v268, 4
        %v271 = vshll.u32 %v216, 16
        %v273 = vrot.slane %v271, 5
        %v274 = vsel %vm260, %v269, %v273
        %v275 = vshrl.u32 %v216, 16
        %v277 = vrot.slane %v275, 4
        %v278 = vor.u32 %v277, %v273
        %v279 = vrot.slane %v278, 4
        %v281 = vshll.u32 %v244, 16
        %v283 = vrot.slane %v281, 5
        %v284 = vsel %vm260, %v279, %v283
        %v286 = vshrl.u32 %v217, 16
        %v288 = vrot.slane %v286, 4
        %v289 = vshll.u32 %v217, 16
        %v291 = vrot.slane %v289, 5
        %v292 = vor.u32 %v288, %v291
        %v293 = vrot.slane %v292, 4
        %v295 = vshll.u32 %v218, 16
        %v297 = vrot.slane %v295, 5
        %v298 = vsel %vm260, %v293, %v297
        %v299 = vshrl.u32 %v218, 16
        %v301 = vrot.slane %v299, 4
        %v302 = vor.u32 %v301, %v297
        %v303 = vrot.slane %v302, 4
        %v305 = vshll.u32 %v245, 16
        %v307 = vrot.slane %v305, 5
        %v308 = vsel %vm260, %v303, %v307
        %v310 = vshrl.u32 %v219, 16
        %v312 = vrot.slane %v310, 4
        %v313 = vshll.u32 %v219, 16
        %v315 = vrot.slane %v313, 5
        %v316 = vor.u32 %v312, %v315
        %v317 = vrot.slane %v316, 4
        %v319 = vshll.u32 %v220, 16
        %v321 = vrot.slane %v319, 5
        %v322 = vsel %vm260, %v317, %v321
        %v323 = vshrl.u32 %v220, 16
        %v325 = vrot.slane %v323, 4
        %v326 = vor.u32 %v325, %v321
        %v327 = vrot.slane %v326, 4
        %v329 = vshll.u32 %v246, 16
        %v331 = vrot.slane %v329, 5
        %v332 = vsel %vm260, %v327, %v331
        %v334 = vshrl.u32 %v221, 16
        %v336 = vrot.slane %v334, 4
        %v337 = vshll.u32 %v221, 16
        %v339 = vrot.slane %v337, 5
        %v340 = vor.u32 %v336, %v339
        %v341 = vrot.slane %v340, 4
        %v343 = vshll.u32 %v222, 16
        %v345 = vrot.slane %v343, 5
        %v346 = vsel %vm260, %v341, %v345
        %v347 = vshrl.u32 %v222, 16
        %v349 = vrot.slane %v347, 4
        %v350 = vor.u32 %v349, %v345
        %v351 = vrot.slane %v350, 4
        %v353 = vshll.u32 %v247, 16
        %v355 = vrot.slane %v353, 5
        %v356 = vsel %vm260, %v351, %v355
        %v358 = vshrl.u32 %v223, 16
        %v360 = vrot.slane %v358, 4
        %v361 = vshll.u32 %v223, 16
        %v363 = vrot.slane %v361, 5
        %v364 = vor.u32 %v360, %v363
        %v365 = vrot.slane %v364, 4
        %v367 = vshll.u32 %v224, 16
        %v369 = vrot.slane %v367, 5
        %v370 = vsel %vm260, %v365, %v369
        %v371 = vshrl.u32 %v224, 16
        %v373 = vrot.slane %v371, 4
        %v374 = vor.u32 %v373, %v369
        %v375 = vrot.slane %v374, 4
        %v377 = vshll.u32 %v248, 16
        %v379 = vrot.slane %v377, 5
        %v380 = vsel %vm260, %v375, %v379
        %v382 = vshrl.u32 %v225, 16
        %v384 = vrot.slane %v382, 4
        %v385 = vshll.u32 %v225, 16
        %v387 = vrot.slane %v385, 5
        %v388 = vor.u32 %v384, %v387
        %v389 = vrot.slane %v388, 4
        %v391 = vshll.u32 %v226, 16
        %v393 = vrot.slane %v391, 5
        %v394 = vsel %vm260, %v389, %v393
        %v395 = vshrl.u32 %v226, 16
        %v397 = vrot.slane %v395, 4
        %v398 = vor.u32 %v397, %v393
        %v399 = vrot.slane %v398, 4
        %v401 = vshll.u32 %v249, 16
        %v403 = vrot.slane %v401, 5
        %v404 = vsel %vm260, %v399, %v403
        %v406 = vshrl.u32 %v227, 16
        %v408 = vrot.slane %v406, 4
        %v409 = vshll.u32 %v227, 16
        %v411 = vrot.slane %v409, 5
        %v412 = vor.u32 %v408, %v411
        %v413 = vrot.slane %v412, 4
        %v415 = vshll.u32 %v228, 16
        %v417 = vrot.slane %v415, 5
        %v418 = vsel %vm260, %v413, %v417
        %v419 = vshrl.u32 %v228, 16
        %v421 = vrot.slane %v419, 4
        %v422 = vor.u32 %v421, %v417
        %v423 = vrot.slane %v422, 4
        %v425 = vshll.u32 %v250, 16
        %v427 = vrot.slane %v425, 5
        %v428 = vsel %vm260, %v423, %v427
        %v430 = vshrl.u32 %v229, 16
        %v432 = vrot.slane %v430, 4
        %v433 = vshll.u32 %v229, 16
        %v435 = vrot.slane %v433, 5
        %v436 = vor.u32 %v432, %v435
        %v437 = vrot.slane %v436, 4
        %v439 = vshll.u32 %v230, 16
        %v441 = vrot.slane %v439, 5
        %v442 = vsel %vm260, %v437, %v441
        %v443 = vshrl.u32 %v230, 16
        %v445 = vrot.slane %v443, 4
        %v446 = vor.u32 %v445, %v441
        %v447 = vrot.slane %v446, 4
        %v449 = vshll.u32 %v251, 16
        %v451 = vrot.slane %v449, 5
        %v452 = vsel %vm260, %v447, %v451
        %v454 = vshrl.u32 %v231, 16
        %v456 = vrot.slane %v454, 4
        %v457 = vshll.u32 %v231, 16
        %v459 = vrot.slane %v457, 5
        %v460 = vor.u32 %v456, %v459
        %v461 = vrot.slane %v460, 4
        %v463 = vshll.u32 %v232, 16
        %v465 = vrot.slane %v463, 5
        %v466 = vsel %vm260, %v461, %v465
        %v467 = vshrl.u32 %v232, 16
        %v469 = vrot.slane %v467, 4
        %v470 = vor.u32 %v469, %v465
        %v471 = vrot.slane %v470, 4
        %v473 = vshll.u32 %v252, 16
        %v475 = vrot.slane %v473, 5
        %v476 = vsel %vm260, %v471, %v475
        %v478 = vshrl.u32 %v233, 16
        %v480 = vrot.slane %v478, 4
        %v481 = vshll.u32 %v233, 16
        %v483 = vrot.slane %v481, 5
        %v484 = vor.u32 %v480, %v483
        %v485 = vrot.slane %v484, 4
        %v487 = vshll.u32 %v234, 16
        %v489 = vrot.slane %v487, 5
        %v490 = vsel %vm260, %v485, %v489
        %v491 = vshrl.u32 %v234, 16
        %v493 = vrot.slane %v491, 4
        %v494 = vor.u32 %v493, %v489
        %v495 = vrot.slane %v494, 4
        %v497 = vshll.u32 %v253, 16
        %v499 = vrot.slane %v497, 5
        %v500 = vsel %vm260, %v495, %v499
        %v502 = vshrl.u32 %v235, 16
        %v504 = vrot.slane %v502, 4
        %v505 = vshll.u32 %v235, 16
        %v507 = vrot.slane %v505, 5
        %v508 = vor.u32 %v504, %v507
        %v509 = vrot.slane %v508, 4
        %v511 = vshll.u32 %v236, 16
        %v513 = vrot.slane %v511, 5
        %v514 = vsel %vm260, %v509, %v513
        %v515 = vshrl.u32 %v236, 16
        %v517 = vrot.slane %v515, 4
        %v518 = vor.u32 %v517, %v513
        %v519 = vrot.slane %v518, 4
        %v521 = vshll.u32 %v254, 16
        %v523 = vrot.slane %v521, 5
        %v524 = vsel %vm260, %v519, %v523
        %v526 = vshrl.u32 %v237, 16
        %v528 = vrot.slane %v526, 4
        %v529 = vshll.u32 %v237, 16
        %v531 = vrot.slane %v529, 5
        %v532 = vor.u32 %v528, %v531
        %v533 = vrot.slane %v532, 4
        %v535 = vshll.u32 %v238, 16
        %v537 = vrot.slane %v535, 5
        %v538 = vsel %vm260, %v533, %v537
        %v539 = vshrl.u32 %v238, 16
        %v541 = vrot.slane %v539, 4
        %v542 = vor.u32 %v541, %v537
        %v543 = vrot.slane %v542, 4
        %v545 = vshll.u32 %v255, 16
        %v547 = vrot.slane %v545, 5
        %v548 = vsel %vm260, %v543, %v547
        %v550 = vshrl.u32 %v239, 16
        %v552 = vrot.slane %v550, 4
        %v553 = vshll.u32 %v239, 16
        %v555 = vrot.slane %v553, 5
        %v556 = vor.u32 %v552, %v555
        %v557 = vrot.slane %v556, 4
        %v559 = vshll.u32 %v240, 16
        %v561 = vrot.slane %v559, 5
        %v562 = vsel %vm260, %v557, %v561
        %v563 = vshrl.u32 %v240, 16
        %v565 = vrot.slane %v563, 4
        %v566 = vor.u32 %v565, %v561
        %v567 = vrot.slane %v566, 4
        %v569 = vshll.u32 %v256, 16
        %v571 = vrot.slane %v569, 5
        %v572 = vsel %vm260, %v567, %v571
        %v574 = vshrl.u32 %v241, 16
        %v576 = vrot.slane %v574, 4
        %v577 = vshll.u32 %v241, 16
        %v579 = vrot.slane %v577, 5
        %v580 = vor.u32 %v576, %v579
        %v581 = vrot.slane %v580, 4
        %v583 = vshll.u32 %v242, 16
        %v585 = vrot.slane %v583, 5
        %v586 = vsel %vm260, %v581, %v585
        %v587 = vshrl.u32 %v242, 16
        %v589 = vrot.slane %v587, 4
        %v590 = vor.u32 %v589, %v585
        %v591 = vrot.slane %v590, 4
        %v593 = vshll.u32 %v257, 16
        %v595 = vrot.slane %v593, 5
        %v596 = vsel %vm260, %v591, %v595
        %s597 = scalar_lea.vmem %s210, 2
        %v598 = vld [vmem:[%s597] sm:$0x3]
        %v599 = vunpack.c.l.b16 %v274
        %v600 = vunpack.c.l.b16 %v284
        %v601 = vunpack.c.l.b16 %v298
        %v602 = vunpack.c.l.b16 %v308
        %v603 = vunpack.c.l.b16 %v322
        %v604 = vunpack.c.l.b16 %v332
        %v605 = vunpack.c.l.b16 %v346
        %v606 = vunpack.c.l.b16 %v356
        %v607 = vunpack.c.l.b16 %v370
        %v608 = vunpack.c.l.b16 %v380
        %v609 = vunpack.c.l.b16 %v394
        %v610 = vunpack.c.l.b16 %v404
        %v611 = vunpack.c.l.b16 %v418
        %v612 = vunpack.c.l.b16 %v428
        %v613 = vunpack.c.l.b16 %v442
        %v614 = vunpack.c.l.b16 %v452
        %v615 = vunpack.c.l.b16 %v466
        %v616 = vunpack.c.l.b16 %v476
        %v617 = vunpack.c.l.b16 %v490
        %v618 = vunpack.c.l.b16 %v500
        %v619 = vunpack.c.l.b16 %v514
        %v620 = vunpack.c.l.b16 %v524
        %v621 = vunpack.c.l.b16 %v538
        %v622 = vunpack.c.l.b16 %v548
        %v623 = vunpack.c.l.b16 %v562
        %v624 = vunpack.c.l.b16 %v572
        %v625 = vunpack.c.l.b16 %v586
        %v626 = vunpack.c.l.b16 %v596
        %v627 = vpack.c.b16 %v600, %v599
        %v628 = vpack.c.b16 %v602, %v601
        %v629 = vpack.c.b16 %v604, %v603
        %v630 = vpack.c.b16 %v606, %v605
        %v631 = vpack.c.b16 %v608, %v607
        %v632 = vpack.c.b16 %v610, %v609
        %v633 = vpack.c.b16 %v612, %v611
        %v634 = vpack.c.b16 %v614, %v613
        %v635 = vpack.c.b16 %v616, %v615
        %v636 = vpack.c.b16 %v618, %v617
        %v637 = vpack.c.b16 %v620, %v619
        %v638 = vpack.c.b16 %v622, %v621
        %v639 = vpack.c.b16 %v624, %v623
        %v640 = vpack.c.b16 %v626, %v625
        %vm641 = vcmask 31744
        %v643 = vsel %vm641, %v627, 0
        %v646 = vsel %vm641, %v628, 0
        %v649 = vsel %vm641, %v629, 0
        %v652 = vsel %vm641, %v630, 0
        %v655 = vsel %vm641, %v631, 0
        %v658 = vsel %vm641, %v632, 0
        %v661 = vsel %vm641, %v633, 0
        %v664 = vsel %vm641, %v634, 0
        %v667 = vsel %vm641, %v635, 0
        %v670 = vsel %vm641, %v636, 0
        %v673 = vsel %vm641, %v637, 0
        %v676 = vsel %vm641, %v638, 0
        %v679 = vsel %vm641, %v639, 0
        %v682 = vsel %vm641, %v640, 0
        %vm684 = vcmask 1041408
        %v686 = vsel %vm684, %v598, 0
        %688 = vmatprep.subr.bf16.mxu0 0
        %689 = vmatpush1.bf16.msra.mxu0 %v686
        %690 = vmatprep.subr.bf16.mxu0 0
        %691 = vmatpush1.bf16.msra.mxu0 0
        %692 = vmatprep.subr.bf16.mxu0 0
        %693 = vmatpush1.bf16.msra.mxu0 0
        %694 = vmatprep.subr.bf16.mxu0 0
        %695 = vmatpush1.bf16.msra.mxu0 0
        %696 = vmatprep.subr.bf16.mxu0 0
        %697 = vmatpush1.bf16.msra.mxu0 0
        %698 = vmatprep.subr.bf16.mxu0 0
        %699 = vmatpush1.bf16.msra.mxu0 0
        %700 = vmatprep.subr.bf16.mxu0 0
        %701 = vmatpush1.bf16.msra.mxu0 0
        %702 = vmatprep.subr.bf16.mxu0 0
        %703 = vmatpush1.bf16.msra.mxu0 0
        %704 = vmatprep.subr.bf16.mxu0 0
        %705 = vmatpush1.bf16.msra.mxu0 0
        %706 = vmatprep.subr.bf16.mxu0 0
        %707 = vmatpush1.bf16.msra.mxu0 0
        %708 = vmatprep.subr.bf16.mxu0 0
        %709 = vmatpush1.bf16.msra.mxu0 0
        %710 = vmatprep.subr.bf16.mxu0 0
        %711 = vmatpush1.bf16.msra.mxu0 0
        %712 = vmatprep.subr.bf16.mxu0 0
        %713 = vmatpush1.bf16.msra.mxu0 0
        %714 = vmatprep.subr.bf16.mxu0 0
        %715 = vmatpush1.bf16.msra.mxu0 0
        %716 = vmatprep.subr.bf16.mxu0 0
        %717 = vmatpush1.bf16.msra.mxu0 0
        %718 = vmatprep.subr.bf16.mxu0 0
        %719 = vmatpush1.bf16.msra.mxu0 0
        %720 = vmatprep.mubr.bf16.mxu0 0
        %721 = vmatmul.mubr.bf16.gmra.mrb[0].mxu0 %v643
        %v722 = vpop.f32.mrb[0].mxu0
        %v723 = vadd.f32 0.0, %v722
        %v724 = vpop.f32.mrb[0].mxu0
        %v725 = vpop.f32.mrb[0].mxu0
        %v726 = vadd.f32 0.0, %v725
        %v727 = vpop.f32.mrb[0].mxu0
        %728 = vmatprep.mubr.bf16.mxu0 0
        %729 = vmatmul.mubr.bf16.gmra.mrb[0].mxu0 %v646
        %v730 = vpop.f32.mrb[0].mxu0
        %v731 = vadd.f32 0.0, %v730
        %v732 = vpop.f32.mrb[0].mxu0
        %v733 = vpop.f32.mrb[0].mxu0
        %v734 = vadd.f32 0.0, %v733
        %v735 = vpop.f32.mrb[0].mxu0
        %736 = vmatprep.mubr.bf16.mxu0 0
        %737 = vmatmul.mubr.bf16.gmra.mrb[0].mxu0 %v649
        %v738 = vpop.f32.mrb[0].mxu0
        %v739 = vadd.f32 0.0, %v738
        %v740 = vpop.f32.mrb[0].mxu0
        %v741 = vpop.f32.mrb[0].mxu0
        %v742 = vadd.f32 0.0, %v741
        %v743 = vpop.f32.mrb[0].mxu0
        %744 = vmatprep.mubr.bf16.mxu0 0
        %745 = vmatmul.mubr.bf16.gmra.mrb[0].mxu0 %v652
        %v746 = vpop.f32.mrb[0].mxu0
        %v747 = vadd.f32 0.0, %v746
        %v748 = vpop.f32.mrb[0].mxu0
        %v749 = vpop.f32.mrb[0].mxu0
        %v750 = vadd.f32 0.0, %v749
        %v751 = vpop.f32.mrb[0].mxu0
        %752 = vmatprep.mubr.bf16.mxu0 0
        %753 = vmatmul.mubr.bf16.gmra.mrb[0].mxu0 %v655
        %v754 = vpop.f32.mrb[0].mxu0
        %v755 = vadd.f32 0.0, %v754
        %v756 = vpop.f32.mrb[0].mxu0
        %v757 = vpop.f32.mrb[0].mxu0
        %v758 = vadd.f32 0.0, %v757
        %v759 = vpop.f32.mrb[0].mxu0
        %760 = vmatprep.mubr.bf16.mxu0 0
        %761 = vmatmul.mubr.bf16.gmra.mrb[0].mxu0 %v658
        %v762 = vpop.f32.mrb[0].mxu0
        %v763 = vadd.f32 0.0, %v762
        %v764 = vpop.f32.mrb[0].mxu0
        %v765 = vpop.f32.mrb[0].mxu0
        %v766 = vadd.f32 0.0, %v765
        %v767 = vpop.f32.mrb[0].mxu0
        %768 = vmatprep.mubr.bf16.mxu0 0
        %769 = vmatmul.mubr.bf16.gmra.mrb[0].mxu0 %v661
        %v770 = vpop.f32.mrb[0].mxu0
        %v771 = vadd.f32 0.0, %v770
        %v772 = vpop.f32.mrb[0].mxu0
        %v773 = vpop.f32.mrb[0].mxu0
        %v774 = vadd.f32 0.0, %v773
        %v775 = vpop.f32.mrb[0].mxu0
        %776 = vmatprep.mubr.bf16.mxu0 0
        %777 = vmatmul.mubr.bf16.gmra.mrb[0].mxu0 %v664
        %v778 = vpop.f32.mrb[0].mxu0
        %v779 = vadd.f32 0.0, %v778
        %v780 = vpop.f32.mrb[0].mxu0
        %v781 = vpop.f32.mrb[0].mxu0
        %v782 = vadd.f32 0.0, %v781
        %v783 = vpop.f32.mrb[0].mxu0
        %784 = vmatprep.mubr.bf16.mxu0 0
        %785 = vmatmul.mubr.bf16.gmra.mrb[0].mxu0 %v667
        %v786 = vpop.f32.mrb[0].mxu0
        %v787 = vadd.f32 0.0, %v786
        %v788 = vpop.f32.mrb[0].mxu0
        %v789 = vpop.f32.mrb[0].mxu0
        %v790 = vadd.f32 0.0, %v789
        %v791 = vpop.f32.mrb[0].mxu0
        %792 = vmatprep.mubr.bf16.mxu0 0
        %793 = vmatmul.mubr.bf16.gmra.mrb[0].mxu0 %v670
        %v794 = vpop.f32.mrb[0].mxu0
        %v795 = vadd.f32 0.0, %v794
        %v796 = vpop.f32.mrb[0].mxu0
        %v797 = vpop.f32.mrb[0].mxu0
        %v798 = vadd.f32 0.0, %v797
        %v799 = vpop.f32.mrb[0].mxu0
        %800 = vmatprep.mubr.bf16.mxu0 0
        %801 = vmatmul.mubr.bf16.gmra.mrb[0].mxu0 %v673
        %v802 = vpop.f32.mrb[0].mxu0
        %v803 = vadd.f32 0.0, %v802
        %v804 = vpop.f32.mrb[0].mxu0
        %v805 = vpop.f32.mrb[0].mxu0
        %v806 = vadd.f32 0.0, %v805
        %v807 = vpop.f32.mrb[0].mxu0
        %808 = vmatprep.mubr.bf16.mxu0 0
        %809 = vmatmul.mubr.bf16.gmra.mrb[0].mxu0 %v676
        %v810 = vpop.f32.mrb[0].mxu0
        %v811 = vadd.f32 0.0, %v810
        %v812 = vpop.f32.mrb[0].mxu0
        %v813 = vpop.f32.mrb[0].mxu0
        %v814 = vadd.f32 0.0, %v813
        %v815 = vpop.f32.mrb[0].mxu0
        %816 = vmatprep.mubr.bf16.mxu0 0
        %817 = vmatmul.mubr.bf16.gmra.mrb[0].mxu0 %v679
        %v818 = vpop.f32.mrb[0].mxu0
        %v819 = vadd.f32 0.0, %v818
        %v820 = vpop.f32.mrb[0].mxu0
        %v821 = vpop.f32.mrb[0].mxu0
        %v822 = vadd.f32 0.0, %v821
        %v823 = vpop.f32.mrb[0].mxu0
        %824 = vmatprep.mubr.bf16.mxu0 0
        %825 = vmatmul.mubr.bf16.gmra.mrb[0].mxu0 %v682
        %v826 = vpop.f32.mrb[0].mxu0
        %v827 = vadd.f32 0.0, %v826
        %v828 = vpop.f32.mrb[0].mxu0
        %v829 = vpop.f32.mrb[0].mxu0
        %v830 = vadd.f32 0.0, %v829
        %v831 = vpop.f32.mrb[0].mxu0
        %832 = vdwg.mxu0
        %v861 = vunpack.c.l.b16 %v215
        %v862 = vunpack.c.l.b16 %v216
        %v863 = vunpack.c.l.b16 %v217
        %v864 = vunpack.c.l.b16 %v218
        %v865 = vunpack.c.l.b16 %v219
        %v866 = vunpack.c.l.b16 %v220
        %v867 = vunpack.c.l.b16 %v221
        %v868 = vunpack.c.l.b16 %v222
        %v869 = vunpack.c.l.b16 %v223
        %v870 = vunpack.c.l.b16 %v224
        %v871 = vunpack.c.l.b16 %v225
        %v872 = vunpack.c.l.b16 %v226
        %v873 = vunpack.c.l.b16 %v227
        %v874 = vunpack.c.l.b16 %v228
        %v875 = vunpack.c.l.b16 %v229
        %v876 = vunpack.c.l.b16 %v230
        %v877 = vunpack.c.l.b16 %v231
        %v878 = vunpack.c.l.b16 %v232
        %v879 = vunpack.c.l.b16 %v233
        %v880 = vunpack.c.l.b16 %v234
        %v881 = vunpack.c.l.b16 %v235
        %v882 = vunpack.c.l.b16 %v236
        %v883 = vunpack.c.l.b16 %v237
        %v884 = vunpack.c.l.b16 %v238
        %v885 = vunpack.c.l.b16 %v239
        %v886 = vunpack.c.l.b16 %v240
        %v887 = vunpack.c.l.b16 %v241
        %v888 = vunpack.c.l.b16 %v242
        %v889 = vpack.c.b16 %v862, %v861
        %v890 = vpack.c.b16 %v864, %v863
        %v891 = vpack.c.b16 %v866, %v865
        %v892 = vpack.c.b16 %v868, %v867
        %v893 = vpack.c.b16 %v870, %v869
        %v894 = vpack.c.b16 %v872, %v871
        %v895 = vpack.c.b16 %v874, %v873
        %v896 = vpack.c.b16 %v876, %v875
        %v897 = vpack.c.b16 %v878, %v877
        %v898 = vpack.c.b16 %v880, %v879
        %v899 = vpack.c.b16 %v882, %v881
        %v900 = vpack.c.b16 %v884, %v883
        %v901 = vpack.c.b16 %v886, %v885
        %v902 = vpack.c.b16 %v888, %v887
        %v904 = vsel %vm641, %v889, 0
        %v907 = vsel %vm641, %v890, 0
        %v910 = vsel %vm641, %v891, 0
        %v913 = vsel %vm641, %v892, 0
        %v916 = vsel %vm641, %v893, 0
        %v919 = vsel %vm641, %v894, 0
        %v922 = vsel %vm641, %v895, 0
        %v925 = vsel %vm641, %v896, 0
        %v928 = vsel %vm641, %v897, 0
        %v931 = vsel %vm641, %v898, 0
        %v934 = vsel %vm641, %v899, 0
        %v937 = vsel %vm641, %v900, 0
        %v940 = vsel %vm641, %v901, 0
        %v943 = vsel %vm641, %v902, 0
        %v946 = vsel %vm684, %v243, 0
        %948 = vmatprep.subr.bf16.mxu0 0
        %949 = vmatpush1.bf16.msra.mxu0 %v946
        %950 = vmatprep.subr.bf16.mxu0 0
        %951 = vmatpush1.bf16.msra.mxu0 0
        %952 = vmatprep.subr.bf16.mxu0 0
        %953 = vmatpush1.bf16.msra.mxu0 0
        %954 = vmatprep.subr.bf16.mxu0 0
        %955 = vmatpush1.bf16.msra.mxu0 0
        %956 = vmatprep.subr.bf16.mxu0 0
        %957 = vmatpush1.bf16.msra.mxu0 0
        %958 = vmatprep.subr.bf16.mxu0 0
        %959 = vmatpush1.bf16.msra.mxu0 0
        %960 = vmatprep.subr.bf16.mxu0 0
        %961 = vmatpush1.bf16.msra.mxu0 0
        %962 = vmatprep.subr.bf16.mxu0 0
        %963 = vmatpush1.bf16.msra.mxu0 0
        %964 = vmatprep.subr.bf16.mxu0 0
        %965 = vmatpush1.bf16.msra.mxu0 0
        %966 = vmatprep.subr.bf16.mxu0 0
        %967 = vmatpush1.bf16.msra.mxu0 0
        %968 = vmatprep.subr.bf16.mxu0 0
        %969 = vmatpush1.bf16.msra.mxu0 0
        %970 = vmatprep.subr.bf16.mxu0 0
        %971 = vmatpush1.bf16.msra.mxu0 0
        %972 = vmatprep.subr.bf16.mxu0 0
        %973 = vmatpush1.bf16.msra.mxu0 0
        %974 = vmatprep.subr.bf16.mxu0 0
        %975 = vmatpush1.bf16.msra.mxu0 0
        %976 = vmatprep.subr.bf16.mxu0 0
        %977 = vmatpush1.bf16.msra.mxu0 0
        %978 = vmatprep.subr.bf16.mxu0 0
        %979 = vmatpush1.bf16.msra.mxu0 0
        %980 = vmatprep.mubr.bf16.mxu0 0
        %981 = vmatmul.mubr.bf16.gmra.mrb[0].mxu0 %v904
        %v982 = vpop.f32.mrb[0].mxu0
        %v983 = vadd.f32 %v723, %v982
        %v984 = vpop.f32.mrb[0].mxu0
        %v985 = vpop.f32.mrb[0].mxu0
        %v986 = vadd.f32 %v726, %v985
        %v987 = vpop.f32.mrb[0].mxu0
        %988 = vmatprep.mubr.bf16.mxu0 0
        %989 = vmatmul.mubr.bf16.gmra.mrb[0].mxu0 %v907
        %v990 = vpop.f32.mrb[0].mxu0
        %v991 = vadd.f32 %v731, %v990
        %v992 = vpop.f32.mrb[0].mxu0
        %v993 = vpop.f32.mrb[0].mxu0
        %v994 = vadd.f32 %v734, %v993
        %v995 = vpop.f32.mrb[0].mxu0
        %996 = vmatprep.mubr.bf16.mxu0 0
        %997 = vmatmul.mubr.bf16.gmra.mrb[0].mxu0 %v910
        %v998 = vpop.f32.mrb[0].mxu0
        %v999 = vadd.f32 %v739, %v998
        %v1000 = vpop.f32.mrb[0].mxu0
        %v1001 = vpop.f32.mrb[0].mxu0
        %v1002 = vadd.f32 %v742, %v1001
        %v1003 = vpop.f32.mrb[0].mxu0
        %1004 = vmatprep.mubr.bf16.mxu0 0
        %1005 = vmatmul.mubr.bf16.gmra.mrb[0].mxu0 %v913
        %v1006 = vpop.f32.mrb[0].mxu0
        %v1007 = vadd.f32 %v747, %v1006
        %v1008 = vpop.f32.mrb[0].mxu0
        %v1009 = vpop.f32.mrb[0].mxu0
        %v1010 = vadd.f32 %v750, %v1009
        %v1011 = vpop.f32.mrb[0].mxu0
        %1012 = vmatprep.mubr.bf16.mxu0 0
        %1013 = vmatmul.mubr.bf16.gmra.mrb[0].mxu0 %v916
        %v1014 = vpop.f32.mrb[0].mxu0
        %v1015 = vadd.f32 %v755, %v1014
        %v1016 = vpop.f32.mrb[0].mxu0
        %v1017 = vpop.f32.mrb[0].mxu0
        %v1018 = vadd.f32 %v758, %v1017
        %v1019 = vpop.f32.mrb[0].mxu0
        %1020 = vmatprep.mubr.bf16.mxu0 0
        %1021 = vmatmul.mubr.bf16.gmra.mrb[0].mxu0 %v919
        %v1022 = vpop.f32.mrb[0].mxu0
        %v1023 = vadd.f32 %v763, %v1022
        %v1024 = vpop.f32.mrb[0].mxu0
        %v1025 = vpop.f32.mrb[0].mxu0
        %v1026 = vadd.f32 %v766, %v1025
        %v1027 = vpop.f32.mrb[0].mxu0
        %1028 = vmatprep.mubr.bf16.mxu0 0
        %1029 = vmatmul.mubr.bf16.gmra.mrb[0].mxu0 %v922
        %v1030 = vpop.f32.mrb[0].mxu0
        %v1031 = vadd.f32 %v771, %v1030
        %v1032 = vpop.f32.mrb[0].mxu0
        %v1033 = vpop.f32.mrb[0].mxu0
        %v1034 = vadd.f32 %v774, %v1033
        %v1035 = vpop.f32.mrb[0].mxu0
        %1036 = vmatprep.mubr.bf16.mxu0 0
        %1037 = vmatmul.mubr.bf16.gmra.mrb[0].mxu0 %v925
        %v1038 = vpop.f32.mrb[0].mxu0
        %v1039 = vadd.f32 %v779, %v1038
        %v1040 = vpop.f32.mrb[0].mxu0
        %v1041 = vpop.f32.mrb[0].mxu0
        %v1042 = vadd.f32 %v782, %v1041
        %v1043 = vpop.f32.mrb[0].mxu0
        %1044 = vmatprep.mubr.bf16.mxu0 0
        %1045 = vmatmul.mubr.bf16.gmra.mrb[0].mxu0 %v928
        %v1046 = vpop.f32.mrb[0].mxu0
        %v1047 = vadd.f32 %v787, %v1046
        %v1048 = vpop.f32.mrb[0].mxu0
        %v1049 = vpop.f32.mrb[0].mxu0
        %v1050 = vadd.f32 %v790, %v1049
        %v1051 = vpop.f32.mrb[0].mxu0
        %1052 = vmatprep.mubr.bf16.mxu0 0
        %1053 = vmatmul.mubr.bf16.gmra.mrb[0].mxu0 %v931
        %v1054 = vpop.f32.mrb[0].mxu0
        %v1055 = vadd.f32 %v795, %v1054
        %v1056 = vpop.f32.mrb[0].mxu0
        %v1057 = vpop.f32.mrb[0].mxu0
        %v1058 = vadd.f32 %v798, %v1057
        %v1059 = vpop.f32.mrb[0].mxu0
        %1060 = vmatprep.mubr.bf16.mxu0 0
        %1061 = vmatmul.mubr.bf16.gmra.mrb[0].mxu0 %v934
        %v1062 = vpop.f32.mrb[0].mxu0
        %v1063 = vadd.f32 %v803, %v1062
        %v1064 = vpop.f32.mrb[0].mxu0
        %v1065 = vpop.f32.mrb[0].mxu0
        %v1066 = vadd.f32 %v806, %v1065
        %v1067 = vpop.f32.mrb[0].mxu0
        %1068 = vmatprep.mubr.bf16.mxu0 0
        %1069 = vmatmul.mubr.bf16.gmra.mrb[0].mxu0 %v937
        %v1070 = vpop.f32.mrb[0].mxu0
        %v1071 = vadd.f32 %v811, %v1070
        %v1072 = vpop.f32.mrb[0].mxu0
        %v1073 = vpop.f32.mrb[0].mxu0
        %v1074 = vadd.f32 %v814, %v1073
        %v1075 = vpop.f32.mrb[0].mxu0
        %1076 = vmatprep.mubr.bf16.mxu0 0
        %1077 = vmatmul.mubr.bf16.gmra.mrb[0].mxu0 %v940
        %v1078 = vpop.f32.mrb[0].mxu0
        %v1079 = vadd.f32 %v819, %v1078
        %v1080 = vpop.f32.mrb[0].mxu0
        %v1081 = vpop.f32.mrb[0].mxu0
        %v1082 = vadd.f32 %v822, %v1081
        %v1083 = vpop.f32.mrb[0].mxu0
        %1084 = vmatprep.mubr.bf16.mxu0 0
        %1085 = vmatmul.mubr.bf16.gmra.mrb[0].mxu0 %v943
        %v1086 = vpop.f32.mrb[0].mxu0
        %v1087 = vadd.f32 %v827, %v1086
        %v1088 = vpop.f32.mrb[0].mxu0
        %v1089 = vpop.f32.mrb[0].mxu0
        %v1090 = vadd.f32 %v830, %v1089
        %v1091 = vpop.f32.mrb[0].mxu0
        %1092 = vdwg.mxu0
        %v1093 = vld [vmem:[%s206] sm:$0xe]
        %v1094 = vld [vmem:[%s206 + $0xc] sm:$0xe]
        %v1095 = vld [vmem:[%s206 + $0x18] sm:$0xe]
        %v1096 = vld [vmem:[%s206 + $0x24] sm:$0xe]
        %v1097 = vld [vmem:[%s206 + $0x30] sm:$0xe]
        %v1098 = vld [vmem:[%s206 + $0x3c] sm:$0xe]
        %v1099 = vld [vmem:[%s206 + $0x48] sm:$0xe]
        %v1100 = vld [vmem:[%s206 + $0x54] sm:$0xe]
        %v1101 = vld [vmem:[%s206 + $0x60] sm:$0xe]
        %v1102 = vld [vmem:[%s206 + $0x6c] sm:$0xe]
        %v1103 = vld [vmem:[%s206 + $0x78] sm:$0xe]
        %v1104 = vld [vmem:[%s206 + $0x84] sm:$0xe]
        %v1105 = vld [vmem:[%s206 + $0x90] sm:$0xe]
        %v1106 = vld [vmem:[%s206 + $0x9c] sm:$0xe]
        %vm1135 = vcmask 1042432
        %vm1136 = vcmask 1046532
        %vm1137 = vmor %vm1135, %vm1136
        %v1138 = vrot.slane %v1093, 5
        %v1139 = vrot.slane %v1138, 4
        %v1140 = vrot.slane %v216, 5
        %v1141 = vsel %vm1137, %v1139, %v1140
        %v1142 = vrot.slane %v1140, 4
        %v1143 = vrot.slane %v244, 5
        %v1144 = vsel %vm1137, %v1142, %v1143
        %v1145 = vrot.slane %v1094, 5
        %v1146 = vrot.slane %v1145, 4
        %v1147 = vrot.slane %v218, 5
        %v1148 = vsel %vm1137, %v1146, %v1147
        %v1149 = vrot.slane %v1147, 4
        %v1150 = vrot.slane %v245, 5
        %v1151 = vsel %vm1137, %v1149, %v1150
        %v1152 = vrot.slane %v1095, 5
        %v1153 = vrot.slane %v1152, 4
        %v1154 = vrot.slane %v220, 5
        %v1155 = vsel %vm1137, %v1153, %v1154
        %v1156 = vrot.slane %v1154, 4
        %v1157 = vrot.slane %v246, 5
        %v1158 = vsel %vm1137, %v1156, %v1157
        %v1159 = vrot.slane %v1096, 5
        %v1160 = vrot.slane %v1159, 4
        %v1161 = vrot.slane %v222, 5
        %v1162 = vsel %vm1137, %v1160, %v1161
        %v1163 = vrot.slane %v1161, 4
        %v1164 = vrot.slane %v247, 5
        %v1165 = vsel %vm1137, %v1163, %v1164
        %v1166 = vrot.slane %v1097, 5
        %v1167 = vrot.slane %v1166, 4
        %v1168 = vrot.slane %v224, 5
        %v1169 = vsel %vm1137, %v1167, %v1168
        %v1170 = vrot.slane %v1168, 4
        %v1171 = vrot.slane %v248, 5
        %v1172 = vsel %vm1137, %v1170, %v1171
        %v1173 = vrot.slane %v1098, 5
        %v1174 = vrot.slane %v1173, 4
        %v1175 = vrot.slane %v226, 5
        %v1176 = vsel %vm1137, %v1174, %v1175
        %v1177 = vrot.slane %v1175, 4
        %v1178 = vrot.slane %v249, 5
        %v1179 = vsel %vm1137, %v1177, %v1178
        %v1180 = vrot.slane %v1099, 5
        %v1181 = vrot.slane %v1180, 4
        %v1182 = vrot.slane %v228, 5
        %v1183 = vsel %vm1137, %v1181, %v1182
        %v1184 = vrot.slane %v1182, 4
        %v1185 = vrot.slane %v250, 5
        %v1186 = vsel %vm1137, %v1184, %v1185
        %v1187 = vrot.slane %v1100, 5
        %v1188 = vrot.slane %v1187, 4
        %v1189 = vrot.slane %v230, 5
        %v1190 = vsel %vm1137, %v1188, %v1189
        %v1191 = vrot.slane %v1189, 4
        %v1192 = vrot.slane %v251, 5
        %v1193 = vsel %vm1137, %v1191, %v1192
        %v1194 = vrot.slane %v1101, 5
        %v1195 = vrot.slane %v1194, 4
        %v1196 = vrot.slane %v232, 5
        %v1197 = vsel %vm1137, %v1195, %v1196
        %v1198 = vrot.slane %v1196, 4
        %v1199 = vrot.slane %v252, 5
        %v1200 = vsel %vm1137, %v1198, %v1199
        %v1201 = vrot.slane %v1102, 5
        %v1202 = vrot.slane %v1201, 4
        %v1203 = vrot.slane %v234, 5
        %v1204 = vsel %vm1137, %v1202, %v1203
        %v1205 = vrot.slane %v1203, 4
        %v1206 = vrot.slane %v253, 5
        %v1207 = vsel %vm1137, %v1205, %v1206
        %v1208 = vrot.slane %v1103, 5
        %v1209 = vrot.slane %v1208, 4
        %v1210 = vrot.slane %v236, 5
        %v1211 = vsel %vm1137, %v1209, %v1210
        %v1212 = vrot.slane %v1210, 4
        %v1213 = vrot.slane %v254, 5
        %v1214 = vsel %vm1137, %v1212, %v1213
        %v1215 = vrot.slane %v1104, 5
        %v1216 = vrot.slane %v1215, 4
        %v1217 = vrot.slane %v238, 5
        %v1218 = vsel %vm1137, %v1216, %v1217
        %v1219 = vrot.slane %v1217, 4
        %v1220 = vrot.slane %v255, 5
        %v1221 = vsel %vm1137, %v1219, %v1220
        %v1222 = vrot.slane %v1105, 5
        %v1223 = vrot.slane %v1222, 4
        %v1224 = vrot.slane %v240, 5
        %v1225 = vsel %vm1137, %v1223, %v1224
        %v1226 = vrot.slane %v1224, 4
        %v1227 = vrot.slane %v256, 5
        %v1228 = vsel %vm1137, %v1226, %v1227
        %v1229 = vrot.slane %v1106, 5
        %v1230 = vrot.slane %v1229, 4
        %v1231 = vrot.slane %v242, 5
        %v1232 = vsel %vm1137, %v1230, %v1231
        %v1233 = vrot.slane %v1231, 4
        %v1234 = vrot.slane %v257, 5
        %v1235 = vsel %vm1137, %v1233, %v1234
        %s1236 = scalar_lea.vmem %s210, 4
        %v1237 = vld [vmem:[%s1236] sm:$0x3]
        %v1238 = vunpack.c.l.b16 %v1141
        %v1239 = vunpack.c.l.b16 %v1144
        %v1240 = vunpack.c.l.b16 %v1148
        %v1241 = vunpack.c.l.b16 %v1151
        %v1242 = vunpack.c.l.b16 %v1155
        %v1243 = vunpack.c.l.b16 %v1158
        %v1244 = vunpack.c.l.b16 %v1162
        %v1245 = vunpack.c.l.b16 %v1165
        %v1246 = vunpack.c.l.b16 %v1169
        %v1247 = vunpack.c.l.b16 %v1172
        %v1248 = vunpack.c.l.b16 %v1176
        %v1249 = vunpack.c.l.b16 %v1179
        %v1250 = vunpack.c.l.b16 %v1183
        %v1251 = vunpack.c.l.b16 %v1186
        %v1252 = vunpack.c.l.b16 %v1190
        %v1253 = vunpack.c.l.b16 %v1193
        %v1254 = vunpack.c.l.b16 %v1197
        %v1255 = vunpack.c.l.b16 %v1200
        %v1256 = vunpack.c.l.b16 %v1204
        %v1257 = vunpack.c.l.b16 %v1207
        %v1258 = vunpack.c.l.b16 %v1211
        %v1259 = vunpack.c.l.b16 %v1214
        %v1260 = vunpack.c.l.b16 %v1218
        %v1261 = vunpack.c.l.b16 %v1221
        %v1262 = vunpack.c.l.b16 %v1225
        %v1263 = vunpack.c.l.b16 %v1228
        %v1264 = vunpack.c.l.b16 %v1232
        %v1265 = vunpack.c.l.b16 %v1235
        %v1266 = vpack.c.b16 %v1239, %v1238
        %v1267 = vpack.c.b16 %v1241, %v1240
        %v1268 = vpack.c.b16 %v1243, %v1242
        %v1269 = vpack.c.b16 %v1245, %v1244
        %v1270 = vpack.c.b16 %v1247, %v1246
        %v1271 = vpack.c.b16 %v1249, %v1248
        %v1272 = vpack.c.b16 %v1251, %v1250
        %v1273 = vpack.c.b16 %v1253, %v1252
        %v1274 = vpack.c.b16 %v1255, %v1254
        %v1275 = vpack.c.b16 %v1257, %v1256
        %v1276 = vpack.c.b16 %v1259, %v1258
        %v1277 = vpack.c.b16 %v1261, %v1260
        %v1278 = vpack.c.b16 %v1263, %v1262
        %v1279 = vpack.c.b16 %v1265, %v1264
        %v1281 = vsel %vm641, %v1266, 0
        %v1284 = vsel %vm641, %v1267, 0
        %v1287 = vsel %vm641, %v1268, 0
        %v1290 = vsel %vm641, %v1269, 0
        %v1293 = vsel %vm641, %v1270, 0
        %v1296 = vsel %vm641, %v1271, 0
        %v1299 = vsel %vm641, %v1272, 0
        %v1302 = vsel %vm641, %v1273, 0
        %v1305 = vsel %vm641, %v1274, 0
        %v1308 = vsel %vm641, %v1275, 0
        %v1311 = vsel %vm641, %v1276, 0
        %v1314 = vsel %vm641, %v1277, 0
        %v1317 = vsel %vm641, %v1278, 0
        %v1320 = vsel %vm641, %v1279, 0
        %v1323 = vsel %vm684, %v1237, 0
        %1325 = vmatprep.subr.bf16.mxu0 0
        %1326 = vmatpush1.bf16.msra.mxu0 %v1323
        %1327 = vmatprep.subr.bf16.mxu0 0
        %1328 = vmatpush1.bf16.msra.mxu0 0
        %1329 = vmatprep.subr.bf16.mxu0 0
        %1330 = vmatpush1.bf16.msra.mxu0 0
        %1331 = vmatprep.subr.bf16.mxu0 0
        %1332 = vmatpush1.bf16.msra.mxu0 0
        %1333 = vmatprep.subr.bf16.mxu0 0
        %1334 = vmatpush1.bf16.msra.mxu0 0
        %1335 = vmatprep.subr.bf16.mxu0 0
        %1336 = vmatpush1.bf16.msra.mxu0 0
        %1337 = vmatprep.subr.bf16.mxu0 0
        %1338 = vmatpush1.bf16.msra.mxu0 0
        %1339 = vmatprep.subr.bf16.mxu0 0
        %1340 = vmatpush1.bf16.msra.mxu0 0
        %1341 = vmatprep.subr.bf16.mxu0 0
        %1342 = vmatpush1.bf16.msra.mxu0 0
        %1343 = vmatprep.subr.bf16.mxu0 0
        %1344 = vmatpush1.bf16.msra.mxu0 0
        %1345 = vmatprep.subr.bf16.mxu0 0
        %1346 = vmatpush1.bf16.msra.mxu0 0
        %1347 = vmatprep.subr.bf16.mxu0 0
        %1348 = vmatpush1.bf16.msra.mxu0 0
        %1349 = vmatprep.subr.bf16.mxu0 0
        %1350 = vmatpush1.bf16.msra.mxu0 0
        %1351 = vmatprep.subr.bf16.mxu0 0
        %1352 = vmatpush1.bf16.msra.mxu0 0
        %1353 = vmatprep.subr.bf16.mxu0 0
        %1354 = vmatpush1.bf16.msra.mxu0 0
        %1355 = vmatprep.subr.bf16.mxu0 0
        %1356 = vmatpush1.bf16.msra.mxu0 0
        %1357 = vmatprep.mubr.bf16.mxu0 0
        %1358 = vmatmul.mubr.bf16.gmra.mrb[0].mxu0 %v1281
        %v1359 = vpop.f32.mrb[0].mxu0
        %v1360 = vadd.f32 0.0, %v1359
        %v1361 = vpop.f32.mrb[0].mxu0
        %v1362 = vpop.f32.mrb[0].mxu0
        %v1363 = vadd.f32 0.0, %v1362
        %v1364 = vpop.f32.mrb[0].mxu0
        %1365 = vmatprep.mubr.bf16.mxu0 0
        %1366 = vmatmul.mubr.bf16.gmra.mrb[0].mxu0 %v1284
        %v1367 = vpop.f32.mrb[0].mxu0
        %v1368 = vadd.f32 0.0, %v1367
        %v1369 = vpop.f32.mrb[0].mxu0
        %v1370 = vpop.f32.mrb[0].mxu0
        %v1371 = vadd.f32 0.0, %v1370
        %v1372 = vpop.f32.mrb[0].mxu0
        %1373 = vmatprep.mubr.bf16.mxu0 0
        %1374 = vmatmul.mubr.bf16.gmra.mrb[0].mxu0 %v1287
        %v1375 = vpop.f32.mrb[0].mxu0
        %v1376 = vadd.f32 0.0, %v1375
        %v1377 = vpop.f32.mrb[0].mxu0
        %v1378 = vpop.f32.mrb[0].mxu0
        %v1379 = vadd.f32 0.0, %v1378
        %v1380 = vpop.f32.mrb[0].mxu0
        %1381 = vmatprep.mubr.bf16.mxu0 0
        %1382 = vmatmul.mubr.bf16.gmra.mrb[0].mxu0 %v1290
        %v1383 = vpop.f32.mrb[0].mxu0
        %v1384 = vadd.f32 0.0, %v1383
        %v1385 = vpop.f32.mrb[0].mxu0
        %v1386 = vpop.f32.mrb[0].mxu0
        %v1387 = vadd.f32 0.0, %v1386
        %v1388 = vpop.f32.mrb[0].mxu0
        %1389 = vmatprep.mubr.bf16.mxu0 0
        %1390 = vmatmul.mubr.bf16.gmra.mrb[0].mxu0 %v1293
        %v1391 = vpop.f32.mrb[0].mxu0
        %v1392 = vadd.f32 0.0, %v1391
        %v1393 = vpop.f32.mrb[0].mxu0
        %v1394 = vpop.f32.mrb[0].mxu0
        %v1395 = vadd.f32 0.0, %v1394
        %v1396 = vpop.f32.mrb[0].mxu0
        %1397 = vmatprep.mubr.bf16.mxu0 0
        %1398 = vmatmul.mubr.bf16.gmra.mrb[0].mxu0 %v1296
        %v1399 = vpop.f32.mrb[0].mxu0
        %v1400 = vadd.f32 0.0, %v1399
        %v1401 = vpop.f32.mrb[0].mxu0
        %v1402 = vpop.f32.mrb[0].mxu0
        %v1403 = vadd.f32 0.0, %v1402
        %v1404 = vpop.f32.mrb[0].mxu0
        %1405 = vmatprep.mubr.bf16.mxu0 0
        %1406 = vmatmul.mubr.bf16.gmra.mrb[0].mxu0 %v1299
        %v1407 = vpop.f32.mrb[0].mxu0
        %v1408 = vadd.f32 0.0, %v1407
        %v1409 = vpop.f32.mrb[0].mxu0
        %v1410 = vpop.f32.mrb[0].mxu0
        %v1411 = vadd.f32 0.0, %v1410
        %v1412 = vpop.f32.mrb[0].mxu0
        %1413 = vmatprep.mubr.bf16.mxu0 0
        %1414 = vmatmul.mubr.bf16.gmra.mrb[0].mxu0 %v1302
        %v1415 = vpop.f32.mrb[0].mxu0
        %v1416 = vadd.f32 0.0, %v1415
        %v1417 = vpop.f32.mrb[0].mxu0
        %v1418 = vpop.f32.mrb[0].mxu0
        %v1419 = vadd.f32 0.0, %v1418
        %v1420 = vpop.f32.mrb[0].mxu0
        %1421 = vmatprep.mubr.bf16.mxu0 0
        %1422 = vmatmul.mubr.bf16.gmra.mrb[0].mxu0 %v1305
        %v1423 = vpop.f32.mrb[0].mxu0
        %v1424 = vadd.f32 0.0, %v1423
        %v1425 = vpop.f32.mrb[0].mxu0
        %v1426 = vpop.f32.mrb[0].mxu0
        %v1427 = vadd.f32 0.0, %v1426
        %v1428 = vpop.f32.mrb[0].mxu0
        %1429 = vmatprep.mubr.bf16.mxu0 0
        %1430 = vmatmul.mubr.bf16.gmra.mrb[0].mxu0 %v1308
        %v1431 = vpop.f32.mrb[0].mxu0
        %v1432 = vadd.f32 0.0, %v1431
        %v1433 = vpop.f32.mrb[0].mxu0
        %v1434 = vpop.f32.mrb[0].mxu0
        %v1435 = vadd.f32 0.0, %v1434
        %v1436 = vpop.f32.mrb[0].mxu0
        %1437 = vmatprep.mubr.bf16.mxu0 0
        %1438 = vmatmul.mubr.bf16.gmra.mrb[0].mxu0 %v1311
        %v1439 = vpop.f32.mrb[0].mxu0
        %v1440 = vadd.f32 0.0, %v1439
        %v1441 = vpop.f32.mrb[0].mxu0
        %v1442 = vpop.f32.mrb[0].mxu0
        %v1443 = vadd.f32 0.0, %v1442
        %v1444 = vpop.f32.mrb[0].mxu0
        %1445 = vmatprep.mubr.bf16.mxu0 0
        %1446 = vmatmul.mubr.bf16.gmra.mrb[0].mxu0 %v1314
        %v1447 = vpop.f32.mrb[0].mxu0
        %v1448 = vadd.f32 0.0, %v1447
        %v1449 = vpop.f32.mrb[0].mxu0
        %v1450 = vpop.f32.mrb[0].mxu0
        %v1451 = vadd.f32 0.0, %v1450
        %v1452 = vpop.f32.mrb[0].mxu0
        %1453 = vmatprep.mubr.bf16.mxu0 0
        %1454 = vmatmul.mubr.bf16.gmra.mrb[0].mxu0 %v1317
        %v1455 = vpop.f32.mrb[0].mxu0
        %v1456 = vadd.f32 0.0, %v1455
        %v1457 = vpop.f32.mrb[0].mxu0
        %v1458 = vpop.f32.mrb[0].mxu0
        %v1459 = vadd.f32 0.0, %v1458
        %v1460 = vpop.f32.mrb[0].mxu0
        %1461 = vmatprep.mubr.bf16.mxu0 0
        %1462 = vmatmul.mubr.bf16.gmra.mrb[0].mxu0 %v1320
        %v1463 = vpop.f32.mrb[0].mxu0
        %v1464 = vadd.f32 0.0, %v1463
        %v1465 = vpop.f32.mrb[0].mxu0
        %v1466 = vpop.f32.mrb[0].mxu0
        %v1467 = vadd.f32 0.0, %v1466
        %v1468 = vpop.f32.mrb[0].mxu0
        %1469 = vdwg.mxu0
        %v1470 = vadd.f32 %v983, %v1360
        %v1471 = vadd.f32 %v986, %v1363
        %v1472 = vadd.f32 %v991, %v1368
        %v1473 = vadd.f32 %v994, %v1371
        %v1474 = vadd.f32 %v999, %v1376
        %v1475 = vadd.f32 %v1002, %v1379
        %v1476 = vadd.f32 %v1007, %v1384
        %v1477 = vadd.f32 %v1010, %v1387
        %v1478 = vadd.f32 %v1015, %v1392
        %v1479 = vadd.f32 %v1018, %v1395
        %v1480 = vadd.f32 %v1023, %v1400
        %v1481 = vadd.f32 %v1026, %v1403
        %v1482 = vadd.f32 %v1031, %v1408
        %v1483 = vadd.f32 %v1034, %v1411
        %v1484 = vadd.f32 %v1039, %v1416
        %v1485 = vadd.f32 %v1042, %v1419
        %v1486 = vadd.f32 %v1047, %v1424
        %v1487 = vadd.f32 %v1050, %v1427
        %v1488 = vadd.f32 %v1055, %v1432
        %v1489 = vadd.f32 %v1058, %v1435
        %v1490 = vadd.f32 %v1063, %v1440
        %v1491 = vadd.f32 %v1066, %v1443
        %v1492 = vadd.f32 %v1071, %v1448
        %v1493 = vadd.f32 %v1074, %v1451
        %v1494 = vadd.f32 %v1079, %v1456
        %v1495 = vadd.f32 %v1082, %v1459
        %v1496 = vadd.f32 %v1087, %v1464
        %v1497 = vadd.f32 %v1090, %v1467
        %s1498 = scalar_lea.vmem %s206, 12
        %v1499 = vld [vmem:[%s1498] sm:$0xf]
        %v1500 = vld [vmem:[%s1498 + $0x4] sm:$0xf]
        %v1501 = vld [vmem:[%s1498 + $0xc] sm:$0xf]
        %v1502 = vld [vmem:[%s1498 + $0x10] sm:$0xf]
        %v1503 = vld [vmem:[%s1498 + $0x18] sm:$0xf]
        %v1504 = vld [vmem:[%s1498 + $0x1c] sm:$0xf]
        %v1505 = vld [vmem:[%s1498 + $0x24] sm:$0xf]
        %v1506 = vld [vmem:[%s1498 + $0x28] sm:$0xf]
        %v1507 = vld [vmem:[%s1498 + $0x30] sm:$0xf]
        %v1508 = vld [vmem:[%s1498 + $0x34] sm:$0xf]
        %v1509 = vld [vmem:[%s1498 + $0x3c] sm:$0xf]
        %v1510 = vld [vmem:[%s1498 + $0x40] sm:$0xf]
        %v1511 = vld [vmem:[%s1498 + $0x48] sm:$0xf]
        %v1512 = vld [vmem:[%s1498 + $0x4c] sm:$0xf]
        %v1513 = vld [vmem:[%s1498 + $0x54] sm:$0xf]
        %v1514 = vld [vmem:[%s1498 + $0x58] sm:$0xf]
        %v1515 = vld [vmem:[%s1498 + $0x60] sm:$0xf]
        %v1516 = vld [vmem:[%s1498 + $0x64] sm:$0xf]
        %v1517 = vld [vmem:[%s1498 + $0x6c] sm:$0xf]
        %v1518 = vld [vmem:[%s1498 + $0x70] sm:$0xf]
        %v1519 = vld [vmem:[%s1498 + $0x78] sm:$0xf]
        %v1520 = vld [vmem:[%s1498 + $0x7c] sm:$0xf]
        %v1521 = vld [vmem:[%s1498 + $0x84] sm:$0xf]
        %v1522 = vld [vmem:[%s1498 + $0x88] sm:$0xf]
        %v1523 = vld [vmem:[%s1498 + $0x90] sm:$0xf]
        %v1524 = vld [vmem:[%s1498 + $0x94] sm:$0xf]
        %v1525 = vld [vmem:[%s1498 + $0x9c] sm:$0xf]
        %v1526 = vld [vmem:[%s1498 + $0xa0] sm:$0xf]
        %s1527 = scalar_lea.vmem %s210, 6
        %v1528 = vld [vmem:[%s1527] sm:$0x3]
        %v1557 = vunpack.c.l.b16 %v1499
        %v1558 = vunpack.c.l.b16 %v1500
        %v1559 = vunpack.c.l.b16 %v1501
        %v1560 = vunpack.c.l.b16 %v1502
        %v1561 = vunpack.c.l.b16 %v1503
        %v1562 = vunpack.c.l.b16 %v1504
        %v1563 = vunpack.c.l.b16 %v1505
        %v1564 = vunpack.c.l.b16 %v1506
        %v1565 = vunpack.c.l.b16 %v1507
        %v1566 = vunpack.c.l.b16 %v1508
        %v1567 = vunpack.c.l.b16 %v1509
        %v1568 = vunpack.c.l.b16 %v1510
        %v1569 = vunpack.c.l.b16 %v1511
        %v1570 = vunpack.c.l.b16 %v1512
        %v1571 = vunpack.c.l.b16 %v1513
        %v1572 = vunpack.c.l.b16 %v1514
        %v1573 = vunpack.c.l.b16 %v1515
        %v1574 = vunpack.c.l.b16 %v1516
        %v1575 = vunpack.c.l.b16 %v1517
        %v1576 = vunpack.c.l.b16 %v1518
        %v1577 = vunpack.c.l.b16 %v1519
        %v1578 = vunpack.c.l.b16 %v1520
        %v1579 = vunpack.c.l.b16 %v1521
        %v1580 = vunpack.c.l.b16 %v1522
        %v1581 = vunpack.c.l.b16 %v1523
        %v1582 = vunpack.c.l.b16 %v1524
        %v1583 = vunpack.c.l.b16 %v1525
        %v1584 = vunpack.c.l.b16 %v1526
        %v1585 = vpack.c.b16 %v1558, %v1557
        %v1586 = vpack.c.b16 %v1560, %v1559
        %v1587 = vpack.c.b16 %v1562, %v1561
        %v1588 = vpack.c.b16 %v1564, %v1563
        %v1589 = vpack.c.b16 %v1566, %v1565
        %v1590 = vpack.c.b16 %v1568, %v1567
        %v1591 = vpack.c.b16 %v1570, %v1569
        %v1592 = vpack.c.b16 %v1572, %v1571
        %v1593 = vpack.c.b16 %v1574, %v1573
        %v1594 = vpack.c.b16 %v1576, %v1575
        %v1595 = vpack.c.b16 %v1578, %v1577
        %v1596 = vpack.c.b16 %v1580, %v1579
        %v1597 = vpack.c.b16 %v1582, %v1581
        %v1598 = vpack.c.b16 %v1584, %v1583
        %v1600 = vsel %vm641, %v1585, 0
        %v1603 = vsel %vm641, %v1586, 0
        %v1606 = vsel %vm641, %v1587, 0
        %v1609 = vsel %vm641, %v1588, 0
        %v1612 = vsel %vm641, %v1589, 0
        %v1615 = vsel %vm641, %v1590, 0
        %v1618 = vsel %vm641, %v1591, 0
        %v1621 = vsel %vm641, %v1592, 0
        %v1624 = vsel %vm641, %v1593, 0
        %v1627 = vsel %vm641, %v1594, 0
        %v1630 = vsel %vm641, %v1595, 0
        %v1633 = vsel %vm641, %v1596, 0
        %v1636 = vsel %vm641, %v1597, 0
        %v1639 = vsel %vm641, %v1598, 0
        %v1642 = vsel %vm684, %v1528, 0
        %1644 = vmatprep.subr.bf16.mxu0 0
        %1645 = vmatpush1.bf16.msra.mxu0 %v1642
        %1646 = vmatprep.subr.bf16.mxu0 0
        %1647 = vmatpush1.bf16.msra.mxu0 0
        %1648 = vmatprep.subr.bf16.mxu0 0
        %1649 = vmatpush1.bf16.msra.mxu0 0
        %1650 = vmatprep.subr.bf16.mxu0 0
        %1651 = vmatpush1.bf16.msra.mxu0 0
        %1652 = vmatprep.subr.bf16.mxu0 0
        %1653 = vmatpush1.bf16.msra.mxu0 0
        %1654 = vmatprep.subr.bf16.mxu0 0
        %1655 = vmatpush1.bf16.msra.mxu0 0
        %1656 = vmatprep.subr.bf16.mxu0 0
        %1657 = vmatpush1.bf16.msra.mxu0 0
        %1658 = vmatprep.subr.bf16.mxu0 0
        %1659 = vmatpush1.bf16.msra.mxu0 0
        %1660 = vmatprep.subr.bf16.mxu0 0
        %1661 = vmatpush1.bf16.msra.mxu0 0
        %1662 = vmatprep.subr.bf16.mxu0 0
        %1663 = vmatpush1.bf16.msra.mxu0 0
        %1664 = vmatprep.subr.bf16.mxu0 0
        %1665 = vmatpush1.bf16.msra.mxu0 0
        %1666 = vmatprep.subr.bf16.mxu0 0
        %1667 = vmatpush1.bf16.msra.mxu0 0
        %1668 = vmatprep.subr.bf16.mxu0 0
        %1669 = vmatpush1.bf16.msra.mxu0 0
        %1670 = vmatprep.subr.bf16.mxu0 0
        %1671 = vmatpush1.bf16.msra.mxu0 0
        %1672 = vmatprep.subr.bf16.mxu0 0
        %1673 = vmatpush1.bf16.msra.mxu0 0
        %1674 = vmatprep.subr.bf16.mxu0 0
        %1675 = vmatpush1.bf16.msra.mxu0 0
        %1676 = vmatprep.mubr.bf16.mxu0 0
        %1677 = vmatmul.mubr.bf16.gmra.mrb[0].mxu0 %v1600
        %v1678 = vpop.f32.mrb[0].mxu0
        %v1679 = vadd.f32 0.0, %v1678
        %v1680 = vpop.f32.mrb[0].mxu0
        %v1681 = vpop.f32.mrb[0].mxu0
        %v1682 = vadd.f32 0.0, %v1681
        %v1683 = vpop.f32.mrb[0].mxu0
        %1684 = vmatprep.mubr.bf16.mxu0 0
        %1685 = vmatmul.mubr.bf16.gmra.mrb[0].mxu0 %v1603
        %v1686 = vpop.f32.mrb[0].mxu0
        %v1687 = vadd.f32 0.0, %v1686
        %v1688 = vpop.f32.mrb[0].mxu0
        %v1689 = vpop.f32.mrb[0].mxu0
        %v1690 = vadd.f32 0.0, %v1689
        %v1691 = vpop.f32.mrb[0].mxu0
        %1692 = vmatprep.mubr.bf16.mxu0 0
        %1693 = vmatmul.mubr.bf16.gmra.mrb[0].mxu0 %v1606
        %v1694 = vpop.f32.mrb[0].mxu0
        %v1695 = vadd.f32 0.0, %v1694
        %v1696 = vpop.f32.mrb[0].mxu0
        %v1697 = vpop.f32.mrb[0].mxu0
        %v1698 = vadd.f32 0.0, %v1697
        %v1699 = vpop.f32.mrb[0].mxu0
        %1700 = vmatprep.mubr.bf16.mxu0 0
        %1701 = vmatmul.mubr.bf16.gmra.mrb[0].mxu0 %v1609
        %v1702 = vpop.f32.mrb[0].mxu0
        %v1703 = vadd.f32 0.0, %v1702
        %v1704 = vpop.f32.mrb[0].mxu0
        %v1705 = vpop.f32.mrb[0].mxu0
        %v1706 = vadd.f32 0.0, %v1705
        %v1707 = vpop.f32.mrb[0].mxu0
        %1708 = vmatprep.mubr.bf16.mxu0 0
        %1709 = vmatmul.mubr.bf16.gmra.mrb[0].mxu0 %v1612
        %v1710 = vpop.f32.mrb[0].mxu0
        %v1711 = vadd.f32 0.0, %v1710
        %v1712 = vpop.f32.mrb[0].mxu0
        %v1713 = vpop.f32.mrb[0].mxu0
        %v1714 = vadd.f32 0.0, %v1713
        %v1715 = vpop.f32.mrb[0].mxu0
        %1716 = vmatprep.mubr.bf16.mxu0 0
        %1717 = vmatmul.mubr.bf16.gmra.mrb[0].mxu0 %v1615
        %v1718 = vpop.f32.mrb[0].mxu0
        %v1719 = vadd.f32 0.0, %v1718
        %v1720 = vpop.f32.mrb[0].mxu0
        %v1721 = vpop.f32.mrb[0].mxu0
        %v1722 = vadd.f32 0.0, %v1721
        %v1723 = vpop.f32.mrb[0].mxu0
        %1724 = vmatprep.mubr.bf16.mxu0 0
        %1725 = vmatmul.mubr.bf16.gmra.mrb[0].mxu0 %v1618
        %v1726 = vpop.f32.mrb[0].mxu0
        %v1727 = vadd.f32 0.0, %v1726
        %v1728 = vpop.f32.mrb[0].mxu0
        %v1729 = vpop.f32.mrb[0].mxu0
        %v1730 = vadd.f32 0.0, %v1729
        %v1731 = vpop.f32.mrb[0].mxu0
        %1732 = vmatprep.mubr.bf16.mxu0 0
        %1733 = vmatmul.mubr.bf16.gmra.mrb[0].mxu0 %v1621
        %v1734 = vpop.f32.mrb[0].mxu0
        %v1735 = vadd.f32 0.0, %v1734
        %v1736 = vpop.f32.mrb[0].mxu0
        %v1737 = vpop.f32.mrb[0].mxu0
        %v1738 = vadd.f32 0.0, %v1737
        %v1739 = vpop.f32.mrb[0].mxu0
        %1740 = vmatprep.mubr.bf16.mxu0 0
        %1741 = vmatmul.mubr.bf16.gmra.mrb[0].mxu0 %v1624
        %v1742 = vpop.f32.mrb[0].mxu0
        %v1743 = vadd.f32 0.0, %v1742
        %v1744 = vpop.f32.mrb[0].mxu0
        %v1745 = vpop.f32.mrb[0].mxu0
        %v1746 = vadd.f32 0.0, %v1745
        %v1747 = vpop.f32.mrb[0].mxu0
        %1748 = vmatprep.mubr.bf16.mxu0 0
        %1749 = vmatmul.mubr.bf16.gmra.mrb[0].mxu0 %v1627
        %v1750 = vpop.f32.mrb[0].mxu0
        %v1751 = vadd.f32 0.0, %v1750
        %v1752 = vpop.f32.mrb[0].mxu0
        %v1753 = vpop.f32.mrb[0].mxu0
        %v1754 = vadd.f32 0.0, %v1753
        %v1755 = vpop.f32.mrb[0].mxu0
        %1756 = vmatprep.mubr.bf16.mxu0 0
        %1757 = vmatmul.mubr.bf16.gmra.mrb[0].mxu0 %v1630
        %v1758 = vpop.f32.mrb[0].mxu0
        %v1759 = vadd.f32 0.0, %v1758
        %v1760 = vpop.f32.mrb[0].mxu0
        %v1761 = vpop.f32.mrb[0].mxu0
        %v1762 = vadd.f32 0.0, %v1761
        %v1763 = vpop.f32.mrb[0].mxu0
        %1764 = vmatprep.mubr.bf16.mxu0 0
        %1765 = vmatmul.mubr.bf16.gmra.mrb[0].mxu0 %v1633
        %v1766 = vpop.f32.mrb[0].mxu0
        %v1767 = vadd.f32 0.0, %v1766
        %v1768 = vpop.f32.mrb[0].mxu0
        %v1769 = vpop.f32.mrb[0].mxu0
        %v1770 = vadd.f32 0.0, %v1769
        %v1771 = vpop.f32.mrb[0].mxu0
        %1772 = vmatprep.mubr.bf16.mxu0 0
        %1773 = vmatmul.mubr.bf16.gmra.mrb[0].mxu0 %v1636
        %v1774 = vpop.f32.mrb[0].mxu0
        %v1775 = vadd.f32 0.0, %v1774
        %v1776 = vpop.f32.mrb[0].mxu0
        %v1777 = vpop.f32.mrb[0].mxu0
        %v1778 = vadd.f32 0.0, %v1777
        %v1779 = vpop.f32.mrb[0].mxu0
        %1780 = vmatprep.mubr.bf16.mxu0 0
        %1781 = vmatmul.mubr.bf16.gmra.mrb[0].mxu0 %v1639
        %v1782 = vpop.f32.mrb[0].mxu0
        %v1783 = vadd.f32 0.0, %v1782
        %v1784 = vpop.f32.mrb[0].mxu0
        %v1785 = vpop.f32.mrb[0].mxu0
        %v1786 = vadd.f32 0.0, %v1785
        %v1787 = vpop.f32.mrb[0].mxu0
        %1788 = vdwg.mxu0
        %v1789 = vadd.f32 %v1470, %v1679
        %v1790 = vadd.f32 %v1471, %v1682
        %v1791 = vadd.f32 %v1472, %v1687
        %v1792 = vadd.f32 %v1473, %v1690
        %v1793 = vadd.f32 %v1474, %v1695
        %v1794 = vadd.f32 %v1475, %v1698
        %v1795 = vadd.f32 %v1476, %v1703
        %v1796 = vadd.f32 %v1477, %v1706
        %v1797 = vadd.f32 %v1478, %v1711
        %v1798 = vadd.f32 %v1479, %v1714
        %v1799 = vadd.f32 %v1480, %v1719
        %v1800 = vadd.f32 %v1481, %v1722
        %v1801 = vadd.f32 %v1482, %v1727
        %v1802 = vadd.f32 %v1483, %v1730
        %v1803 = vadd.f32 %v1484, %v1735
        %v1804 = vadd.f32 %v1485, %v1738
        %v1805 = vadd.f32 %v1486, %v1743
        %v1806 = vadd.f32 %v1487, %v1746
        %v1807 = vadd.f32 %v1488, %v1751
        %v1808 = vadd.f32 %v1489, %v1754
        %v1809 = vadd.f32 %v1490, %v1759
        %v1810 = vadd.f32 %v1491, %v1762
        %v1811 = vadd.f32 %v1492, %v1767
        %v1812 = vadd.f32 %v1493, %v1770
        %v1813 = vadd.f32 %v1494, %v1775
        %v1814 = vadd.f32 %v1495, %v1778
        %v1815 = vadd.f32 %v1496, %v1783
        %v1816 = vadd.f32 %v1497, %v1786
        %v1817 = vld [vmem:[%s1498] sm:$0xf]
        %v1818 = vld [vmem:[%s1498 + $0x4] sm:$0xf]
        %v1819 = vld [vmem:[%s1498 + $0x8] sm:$0x1]
        %v1820 = vld [vmem:[%s1498 + $0xc] sm:$0xf]
        %v1821 = vld [vmem:[%s1498 + $0x10] sm:$0xf]
        %v1822 = vld [vmem:[%s1498 + $0x14] sm:$0x1]
        %v1823 = vld [vmem:[%s1498 + $0x18] sm:$0xf]
        %v1824 = vld [vmem:[%s1498 + $0x1c] sm:$0xf]
        %v1825 = vld [vmem:[%s1498 + $0x20] sm:$0x1]
        %v1826 = vld [vmem:[%s1498 + $0x24] sm:$0xf]
        %v1827 = vld [vmem:[%s1498 + $0x28] sm:$0xf]
        %v1828 = vld [vmem:[%s1498 + $0x2c] sm:$0x1]
        %v1829 = vld [vmem:[%s1498 + $0x30] sm:$0xf]
        %v1830 = vld [vmem:[%s1498 + $0x34] sm:$0xf]
        %v1831 = vld [vmem:[%s1498 + $0x38] sm:$0x1]
        %v1832 = vld [vmem:[%s1498 + $0x3c] sm:$0xf]
        %v1833 = vld [vmem:[%s1498 + $0x40] sm:$0xf]
        %v1834 = vld [vmem:[%s1498 + $0x44] sm:$0x1]
        %v1835 = vld [vmem:[%s1498 + $0x48] sm:$0xf]
        %v1836 = vld [vmem:[%s1498 + $0x4c] sm:$0xf]
        %v1837 = vld [vmem:[%s1498 + $0x50] sm:$0x1]
        %v1838 = vld [vmem:[%s1498 + $0x54] sm:$0xf]
        %v1839 = vld [vmem:[%s1498 + $0x58] sm:$0xf]
        %v1840 = vld [vmem:[%s1498 + $0x5c] sm:$0x1]
        %v1841 = vld [vmem:[%s1498 + $0x60] sm:$0xf]
        %v1842 = vld [vmem:[%s1498 + $0x64] sm:$0xf]
        %v1843 = vld [vmem:[%s1498 + $0x68] sm:$0x1]
        %v1844 = vld [vmem:[%s1498 + $0x6c] sm:$0xf]
        %v1845 = vld [vmem:[%s1498 + $0x70] sm:$0xf]
        %v1846 = vld [vmem:[%s1498 + $0x74] sm:$0x1]
        %v1847 = vld [vmem:[%s1498 + $0x78] sm:$0xf]
        %v1848 = vld [vmem:[%s1498 + $0x7c] sm:$0xf]
        %v1849 = vld [vmem:[%s1498 + $0x80] sm:$0x1]
        %v1850 = vld [vmem:[%s1498 + $0x84] sm:$0xf]
        %v1851 = vld [vmem:[%s1498 + $0x88] sm:$0xf]
        %v1852 = vld [vmem:[%s1498 + $0x8c] sm:$0x1]
        %v1853 = vld [vmem:[%s1498 + $0x90] sm:$0xf]
        %v1854 = vld [vmem:[%s1498 + $0x94] sm:$0xf]
        %v1855 = vld [vmem:[%s1498 + $0x98] sm:$0x1]
        %v1856 = vld [vmem:[%s1498 + $0x9c] sm:$0xf]
        %v1857 = vld [vmem:[%s1498 + $0xa0] sm:$0xf]
        %v1858 = vld [vmem:[%s1498 + $0xa4] sm:$0x1]
        %v1860 = vshrl.u32 %v1817, 16
        %v1862 = vrot.slane %v1860, 4
        %v1863 = vshll.u32 %v1817, 16
        %v1865 = vrot.slane %v1863, 5
        %v1866 = vor.u32 %v1862, %v1865
        %v1867 = vrot.slane %v1866, 4
        %v1869 = vshll.u32 %v1818, 16
        %v1871 = vrot.slane %v1869, 5
        %v1872 = vsel %vm260, %v1867, %v1871
        %v1873 = vshrl.u32 %v1818, 16
        %v1875 = vrot.slane %v1873, 4
        %v1876 = vor.u32 %v1875, %v1871
        %v1877 = vrot.slane %v1876, 4
        %v1879 = vshll.u32 %v1819, 16
        %v1881 = vrot.slane %v1879, 5
        %v1882 = vsel %vm260, %v1877, %v1881
        %v1884 = vshrl.u32 %v1820, 16
        %v1886 = vrot.slane %v1884, 4
        %v1887 = vshll.u32 %v1820, 16
        %v1889 = vrot.slane %v1887, 5
        %v1890 = vor.u32 %v1886, %v1889
        %v1891 = vrot.slane %v1890, 4
        %v1893 = vshll.u32 %v1821, 16
        %v1895 = vrot.slane %v1893, 5
        %v1896 = vsel %vm260, %v1891, %v1895
        %v1897 = vshrl.u32 %v1821, 16
        %v1899 = vrot.slane %v1897, 4
        %v1900 = vor.u32 %v1899, %v1895
        %v1901 = vrot.slane %v1900, 4
        %v1903 = vshll.u32 %v1822, 16
        %v1905 = vrot.slane %v1903, 5
        %v1906 = vsel %vm260, %v1901, %v1905
        %v1908 = vshrl.u32 %v1823, 16
        %v1910 = vrot.slane %v1908, 4
        %v1911 = vshll.u32 %v1823, 16
        %v1913 = vrot.slane %v1911, 5
        %v1914 = vor.u32 %v1910, %v1913
        %v1915 = vrot.slane %v1914, 4
        %v1917 = vshll.u32 %v1824, 16
        %v1919 = vrot.slane %v1917, 5
        %v1920 = vsel %vm260, %v1915, %v1919
        %v1921 = vshrl.u32 %v1824, 16
        %v1923 = vrot.slane %v1921, 4
        %v1924 = vor.u32 %v1923, %v1919
        %v1925 = vrot.slane %v1924, 4
        %v1927 = vshll.u32 %v1825, 16
        %v1929 = vrot.slane %v1927, 5
        %v1930 = vsel %vm260, %v1925, %v1929
        %v1932 = vshrl.u32 %v1826, 16
        %v1934 = vrot.slane %v1932, 4
        %v1935 = vshll.u32 %v1826, 16
        %v1937 = vrot.slane %v1935, 5
        %v1938 = vor.u32 %v1934, %v1937
        %v1939 = vrot.slane %v1938, 4
        %v1941 = vshll.u32 %v1827, 16
        %v1943 = vrot.slane %v1941, 5
        %v1944 = vsel %vm260, %v1939, %v1943
        %v1945 = vshrl.u32 %v1827, 16
        %v1947 = vrot.slane %v1945, 4
        %v1948 = vor.u32 %v1947, %v1943
        %v1949 = vrot.slane %v1948, 4
        %v1951 = vshll.u32 %v1828, 16
        %v1953 = vrot.slane %v1951, 5
        %v1954 = vsel %vm260, %v1949, %v1953
        %v1956 = vshrl.u32 %v1829, 16
        %v1958 = vrot.slane %v1956, 4
        %v1959 = vshll.u32 %v1829, 16
        %v1961 = vrot.slane %v1959, 5
        %v1962 = vor.u32 %v1958, %v1961
        %v1963 = vrot.slane %v1962, 4
        %v1965 = vshll.u32 %v1830, 16
        %v1967 = vrot.slane %v1965, 5
        %v1968 = vsel %vm260, %v1963, %v1967
        %v1969 = vshrl.u32 %v1830, 16
        %v1971 = vrot.slane %v1969, 4
        %v1972 = vor.u32 %v1971, %v1967
        %v1973 = vrot.slane %v1972, 4
        %v1975 = vshll.u32 %v1831, 16
        %v1977 = vrot.slane %v1975, 5
        %v1978 = vsel %vm260, %v1973, %v1977
        %v1980 = vshrl.u32 %v1832, 16
        %v1982 = vrot.slane %v1980, 4
        %v1983 = vshll.u32 %v1832, 16
        %v1985 = vrot.slane %v1983, 5
        %v1986 = vor.u32 %v1982, %v1985
        %v1987 = vrot.slane %v1986, 4
        %v1989 = vshll.u32 %v1833, 16
        %v1991 = vrot.slane %v1989, 5
        %v1992 = vsel %vm260, %v1987, %v1991
        %v1993 = vshrl.u32 %v1833, 16
        %v1995 = vrot.slane %v1993, 4
        %v1996 = vor.u32 %v1995, %v1991
        %v1997 = vrot.slane %v1996, 4
        %v1999 = vshll.u32 %v1834, 16
        %v2001 = vrot.slane %v1999, 5
        %v2002 = vsel %vm260, %v1997, %v2001
        %v2004 = vshrl.u32 %v1835, 16
        %v2006 = vrot.slane %v2004, 4
        %v2007 = vshll.u32 %v1835, 16
        %v2009 = vrot.slane %v2007, 5
        %v2010 = vor.u32 %v2006, %v2009
        %v2011 = vrot.slane %v2010, 4
        %v2013 = vshll.u32 %v1836, 16
        %v2015 = vrot.slane %v2013, 5
        %v2016 = vsel %vm260, %v2011, %v2015
        %v2017 = vshrl.u32 %v1836, 16
        %v2019 = vrot.slane %v2017, 4
        %v2020 = vor.u32 %v2019, %v2015
        %v2021 = vrot.slane %v2020, 4
        %v2023 = vshll.u32 %v1837, 16
        %v2025 = vrot.slane %v2023, 5
        %v2026 = vsel %vm260, %v2021, %v2025
        %v2028 = vshrl.u32 %v1838, 16
        %v2030 = vrot.slane %v2028, 4
        %v2031 = vshll.u32 %v1838, 16
        %v2033 = vrot.slane %v2031, 5
        %v2034 = vor.u32 %v2030, %v2033
        %v2035 = vrot.slane %v2034, 4
        %v2037 = vshll.u32 %v1839, 16
        %v2039 = vrot.slane %v2037, 5
        %v2040 = vsel %vm260, %v2035, %v2039
        %v2041 = vshrl.u32 %v1839, 16
        %v2043 = vrot.slane %v2041, 4
        %v2044 = vor.u32 %v2043, %v2039
        %v2045 = vrot.slane %v2044, 4
        %v2047 = vshll.u32 %v1840, 16
        %v2049 = vrot.slane %v2047, 5
        %v2050 = vsel %vm260, %v2045, %v2049
        %v2052 = vshrl.u32 %v1841, 16
        %v2054 = vrot.slane %v2052, 4
        %v2055 = vshll.u32 %v1841, 16
        %v2057 = vrot.slane %v2055, 5
        %v2058 = vor.u32 %v2054, %v2057
        %v2059 = vrot.slane %v2058, 4
        %v2061 = vshll.u32 %v1842, 16
        %v2063 = vrot.slane %v2061, 5
        %v2064 = vsel %vm260, %v2059, %v2063
        %v2065 = vshrl.u32 %v1842, 16
        %v2067 = vrot.slane %v2065, 4
        %v2068 = vor.u32 %v2067, %v2063
        %v2069 = vrot.slane %v2068, 4
        %v2071 = vshll.u32 %v1843, 16
        %v2073 = vrot.slane %v2071, 5
        %v2074 = vsel %vm260, %v2069, %v2073
        %v2076 = vshrl.u32 %v1844, 16
        %v2078 = vrot.slane %v2076, 4
        %v2079 = vshll.u32 %v1844, 16
        %v2081 = vrot.slane %v2079, 5
        %v2082 = vor.u32 %v2078, %v2081
        %v2083 = vrot.slane %v2082, 4
        %v2085 = vshll.u32 %v1845, 16
        %v2087 = vrot.slane %v2085, 5
        %v2088 = vsel %vm260, %v2083, %v2087
        %v2089 = vshrl.u32 %v1845, 16
        %v2091 = vrot.slane %v2089, 4
        %v2092 = vor.u32 %v2091, %v2087
        %v2093 = vrot.slane %v2092, 4
        %v2095 = vshll.u32 %v1846, 16
        %v2097 = vrot.slane %v2095, 5
        %v2098 = vsel %vm260, %v2093, %v2097
        %v2100 = vshrl.u32 %v1847, 16
        %v2102 = vrot.slane %v2100, 4
        %v2103 = vshll.u32 %v1847, 16
        %v2105 = vrot.slane %v2103, 5
        %v2106 = vor.u32 %v2102, %v2105
        %v2107 = vrot.slane %v2106, 4
        %v2109 = vshll.u32 %v1848, 16
        %v2111 = vrot.slane %v2109, 5
        %v2112 = vsel %vm260, %v2107, %v2111
        %v2113 = vshrl.u32 %v1848, 16
        %v2115 = vrot.slane %v2113, 4
        %v2116 = vor.u32 %v2115, %v2111
        %v2117 = vrot.slane %v2116, 4
        %v2119 = vshll.u32 %v1849, 16
        %v2121 = vrot.slane %v2119, 5
        %v2122 = vsel %vm260, %v2117, %v2121
        %v2124 = vshrl.u32 %v1850, 16
        %v2126 = vrot.slane %v2124, 4
        %v2127 = vshll.u32 %v1850, 16
        %v2129 = vrot.slane %v2127, 5
        %v2130 = vor.u32 %v2126, %v2129
        %v2131 = vrot.slane %v2130, 4
        %v2133 = vshll.u32 %v1851, 16
        %v2135 = vrot.slane %v2133, 5
        %v2136 = vsel %vm260, %v2131, %v2135
        %v2137 = vshrl.u32 %v1851, 16
        %v2139 = vrot.slane %v2137, 4
        %v2140 = vor.u32 %v2139, %v2135
        %v2141 = vrot.slane %v2140, 4
        %v2143 = vshll.u32 %v1852, 16
        %v2145 = vrot.slane %v2143, 5
        %v2146 = vsel %vm260, %v2141, %v2145
        %v2148 = vshrl.u32 %v1853, 16
        %v2150 = vrot.slane %v2148, 4
        %v2151 = vshll.u32 %v1853, 16
        %v2153 = vrot.slane %v2151, 5
        %v2154 = vor.u32 %v2150, %v2153
        %v2155 = vrot.slane %v2154, 4
        %v2157 = vshll.u32 %v1854, 16
        %v2159 = vrot.slane %v2157, 5
        %v2160 = vsel %vm260, %v2155, %v2159
        %v2161 = vshrl.u32 %v1854, 16
        %v2163 = vrot.slane %v2161, 4
        %v2164 = vor.u32 %v2163, %v2159
        %v2165 = vrot.slane %v2164, 4
        %v2167 = vshll.u32 %v1855, 16
        %v2169 = vrot.slane %v2167, 5
        %v2170 = vsel %vm260, %v2165, %v2169
        %v2172 = vshrl.u32 %v1856, 16
        %v2174 = vrot.slane %v2172, 4
        %v2175 = vshll.u32 %v1856, 16
        %v2177 = vrot.slane %v2175, 5
        %v2178 = vor.u32 %v2174, %v2177
        %v2179 = vrot.slane %v2178, 4
        %v2181 = vshll.u32 %v1857, 16
        %v2183 = vrot.slane %v2181, 5
        %v2184 = vsel %vm260, %v2179, %v2183
        %v2185 = vshrl.u32 %v1857, 16
        %v2187 = vrot.slane %v2185, 4
        %v2188 = vor.u32 %v2187, %v2183
        %v2189 = vrot.slane %v2188, 4
        %v2191 = vshll.u32 %v1858, 16
        %v2193 = vrot.slane %v2191, 5
        %v2194 = vsel %vm260, %v2189, %v2193
        %s2195 = scalar_lea.vmem %s210, 8
        %v2196 = vld [vmem:[%s2195] sm:$0x3]
        %v2197 = vunpack.c.l.b16 %v1872
        %v2198 = vunpack.c.l.b16 %v1882
        %v2199 = vunpack.c.l.b16 %v1896
        %v2200 = vunpack.c.l.b16 %v1906
        %v2201 = vunpack.c.l.b16 %v1920
        %v2202 = vunpack.c.l.b16 %v1930
        %v2203 = vunpack.c.l.b16 %v1944
        %v2204 = vunpack.c.l.b16 %v1954
        %v2205 = vunpack.c.l.b16 %v1968
        %v2206 = vunpack.c.l.b16 %v1978
        %v2207 = vunpack.c.l.b16 %v1992
        %v2208 = vunpack.c.l.b16 %v2002
        %v2209 = vunpack.c.l.b16 %v2016
        %v2210 = vunpack.c.l.b16 %v2026
        %v2211 = vunpack.c.l.b16 %v2040
        %v2212 = vunpack.c.l.b16 %v2050
        %v2213 = vunpack.c.l.b16 %v2064
        %v2214 = vunpack.c.l.b16 %v2074
        %v2215 = vunpack.c.l.b16 %v2088
        %v2216 = vunpack.c.l.b16 %v2098
        %v2217 = vunpack.c.l.b16 %v2112
        %v2218 = vunpack.c.l.b16 %v2122
        %v2219 = vunpack.c.l.b16 %v2136
        %v2220 = vunpack.c.l.b16 %v2146
        %v2221 = vunpack.c.l.b16 %v2160
        %v2222 = vunpack.c.l.b16 %v2170
        %v2223 = vunpack.c.l.b16 %v2184
        %v2224 = vunpack.c.l.b16 %v2194
        %v2225 = vpack.c.b16 %v2198, %v2197
        %v2226 = vpack.c.b16 %v2200, %v2199
        %v2227 = vpack.c.b16 %v2202, %v2201
        %v2228 = vpack.c.b16 %v2204, %v2203
        %v2229 = vpack.c.b16 %v2206, %v2205
        %v2230 = vpack.c.b16 %v2208, %v2207
        %v2231 = vpack.c.b16 %v2210, %v2209
        %v2232 = vpack.c.b16 %v2212, %v2211
        %v2233 = vpack.c.b16 %v2214, %v2213
        %v2234 = vpack.c.b16 %v2216, %v2215
        %v2235 = vpack.c.b16 %v2218, %v2217
        %v2236 = vpack.c.b16 %v2220, %v2219
        %v2237 = vpack.c.b16 %v2222, %v2221
        %v2238 = vpack.c.b16 %v2224, %v2223
        %v2240 = vsel %vm641, %v2225, 0
        %v2243 = vsel %vm641, %v2226, 0
        %v2246 = vsel %vm641, %v2227, 0
        %v2249 = vsel %vm641, %v2228, 0
        %v2252 = vsel %vm641, %v2229, 0
        %v2255 = vsel %vm641, %v2230, 0
        %v2258 = vsel %vm641, %v2231, 0
        %v2261 = vsel %vm641, %v2232, 0
        %v2264 = vsel %vm641, %v2233, 0
        %v2267 = vsel %vm641, %v2234, 0
        %v2270 = vsel %vm641, %v2235, 0
        %v2273 = vsel %vm641, %v2236, 0
        %v2276 = vsel %vm641, %v2237, 0
        %v2279 = vsel %vm641, %v2238, 0
        %v2282 = vsel %vm684, %v2196, 0
        %2284 = vmatprep.subr.bf16.mxu0 0
        %2285 = vmatpush1.bf16.msra.mxu0 %v2282
        %2286 = vmatprep.subr.bf16.mxu0 0
        %2287 = vmatpush1.bf16.msra.mxu0 0
        %2288 = vmatprep.subr.bf16.mxu0 0
        %2289 = vmatpush1.bf16.msra.mxu0 0
        %2290 = vmatprep.subr.bf16.mxu0 0
        %2291 = vmatpush1.bf16.msra.mxu0 0
        %2292 = vmatprep.subr.bf16.mxu0 0
        %2293 = vmatpush1.bf16.msra.mxu0 0
        %2294 = vmatprep.subr.bf16.mxu0 0
        %2295 = vmatpush1.bf16.msra.mxu0 0
        %2296 = vmatprep.subr.bf16.mxu0 0
        %2297 = vmatpush1.bf16.msra.mxu0 0
        %2298 = vmatprep.subr.bf16.mxu0 0
        %2299 = vmatpush1.bf16.msra.mxu0 0
        %2300 = vmatprep.subr.bf16.mxu0 0
        %2301 = vmatpush1.bf16.msra.mxu0 0
        %2302 = vmatprep.subr.bf16.mxu0 0
        %2303 = vmatpush1.bf16.msra.mxu0 0
        %2304 = vmatprep.subr.bf16.mxu0 0
        %2305 = vmatpush1.bf16.msra.mxu0 0
        %2306 = vmatprep.subr.bf16.mxu0 0
        %2307 = vmatpush1.bf16.msra.mxu0 0
        %2308 = vmatprep.subr.bf16.mxu0 0
        %2309 = vmatpush1.bf16.msra.mxu0 0
        %2310 = vmatprep.subr.bf16.mxu0 0
        %2311 = vmatpush1.bf16.msra.mxu0 0
        %2312 = vmatprep.subr.bf16.mxu0 0
        %2313 = vmatpush1.bf16.msra.mxu0 0
        %2314 = vmatprep.subr.bf16.mxu0 0
        %2315 = vmatpush1.bf16.msra.mxu0 0
        %2316 = vmatprep.mubr.bf16.mxu0 0
        %2317 = vmatmul.mubr.bf16.gmra.mrb[0].mxu0 %v2240
        %v2318 = vpop.f32.mrb[0].mxu0
        %v2319 = vadd.f32 0.0, %v2318
        %v2320 = vpop.f32.mrb[0].mxu0
        %v2321 = vpop.f32.mrb[0].mxu0
        %v2322 = vadd.f32 0.0, %v2321
        %v2323 = vpop.f32.mrb[0].mxu0
        %2324 = vmatprep.mubr.bf16.mxu0 0
        %2325 = vmatmul.mubr.bf16.gmra.mrb[0].mxu0 %v2243
        %v2326 = vpop.f32.mrb[0].mxu0
        %v2327 = vadd.f32 0.0, %v2326
        %v2328 = vpop.f32.mrb[0].mxu0
        %v2329 = vpop.f32.mrb[0].mxu0
        %v2330 = vadd.f32 0.0, %v2329
        %v2331 = vpop.f32.mrb[0].mxu0
        %2332 = vmatprep.mubr.bf16.mxu0 0
        %2333 = vmatmul.mubr.bf16.gmra.mrb[0].mxu0 %v2246
        %v2334 = vpop.f32.mrb[0].mxu0
        %v2335 = vadd.f32 0.0, %v2334
        %v2336 = vpop.f32.mrb[0].mxu0
        %v2337 = vpop.f32.mrb[0].mxu0
        %v2338 = vadd.f32 0.0, %v2337
        %v2339 = vpop.f32.mrb[0].mxu0
        %2340 = vmatprep.mubr.bf16.mxu0 0
        %2341 = vmatmul.mubr.bf16.gmra.mrb[0].mxu0 %v2249
        %v2342 = vpop.f32.mrb[0].mxu0
        %v2343 = vadd.f32 0.0, %v2342
        %v2344 = vpop.f32.mrb[0].mxu0
        %v2345 = vpop.f32.mrb[0].mxu0
        %v2346 = vadd.f32 0.0, %v2345
        %v2347 = vpop.f32.mrb[0].mxu0
        %2348 = vmatprep.mubr.bf16.mxu0 0
        %2349 = vmatmul.mubr.bf16.gmra.mrb[0].mxu0 %v2252
        %v2350 = vpop.f32.mrb[0].mxu0
        %v2351 = vadd.f32 0.0, %v2350
        %v2352 = vpop.f32.mrb[0].mxu0
        %v2353 = vpop.f32.mrb[0].mxu0
        %v2354 = vadd.f32 0.0, %v2353
        %v2355 = vpop.f32.mrb[0].mxu0
        %2356 = vmatprep.mubr.bf16.mxu0 0
        %2357 = vmatmul.mubr.bf16.gmra.mrb[0].mxu0 %v2255
        %v2358 = vpop.f32.mrb[0].mxu0
        %v2359 = vadd.f32 0.0, %v2358
        %v2360 = vpop.f32.mrb[0].mxu0
        %v2361 = vpop.f32.mrb[0].mxu0
        %v2362 = vadd.f32 0.0, %v2361
        %v2363 = vpop.f32.mrb[0].mxu0
        %2364 = vmatprep.mubr.bf16.mxu0 0
        %2365 = vmatmul.mubr.bf16.gmra.mrb[0].mxu0 %v2258
        %v2366 = vpop.f32.mrb[0].mxu0
        %v2367 = vadd.f32 0.0, %v2366
        %v2368 = vpop.f32.mrb[0].mxu0
        %v2369 = vpop.f32.mrb[0].mxu0
        %v2370 = vadd.f32 0.0, %v2369
        %v2371 = vpop.f32.mrb[0].mxu0
        %2372 = vmatprep.mubr.bf16.mxu0 0
        %2373 = vmatmul.mubr.bf16.gmra.mrb[0].mxu0 %v2261
        %v2374 = vpop.f32.mrb[0].mxu0
        %v2375 = vadd.f32 0.0, %v2374
        %v2376 = vpop.f32.mrb[0].mxu0
        %v2377 = vpop.f32.mrb[0].mxu0
        %v2378 = vadd.f32 0.0, %v2377
        %v2379 = vpop.f32.mrb[0].mxu0
        %2380 = vmatprep.mubr.bf16.mxu0 0
        %2381 = vmatmul.mubr.bf16.gmra.mrb[0].mxu0 %v2264
        %v2382 = vpop.f32.mrb[0].mxu0
        %v2383 = vadd.f32 0.0, %v2382
        %v2384 = vpop.f32.mrb[0].mxu0
        %v2385 = vpop.f32.mrb[0].mxu0
        %v2386 = vadd.f32 0.0, %v2385
        %v2387 = vpop.f32.mrb[0].mxu0
        %2388 = vmatprep.mubr.bf16.mxu0 0
        %2389 = vmatmul.mubr.bf16.gmra.mrb[0].mxu0 %v2267
        %v2390 = vpop.f32.mrb[0].mxu0
        %v2391 = vadd.f32 0.0, %v2390
        %v2392 = vpop.f32.mrb[0].mxu0
        %v2393 = vpop.f32.mrb[0].mxu0
        %v2394 = vadd.f32 0.0, %v2393
        %v2395 = vpop.f32.mrb[0].mxu0
        %2396 = vmatprep.mubr.bf16.mxu0 0
        %2397 = vmatmul.mubr.bf16.gmra.mrb[0].mxu0 %v2270
        %v2398 = vpop.f32.mrb[0].mxu0
        %v2399 = vadd.f32 0.0, %v2398
        %v2400 = vpop.f32.mrb[0].mxu0
        %v2401 = vpop.f32.mrb[0].mxu0
        %v2402 = vadd.f32 0.0, %v2401
        %v2403 = vpop.f32.mrb[0].mxu0
        %2404 = vmatprep.mubr.bf16.mxu0 0
        %2405 = vmatmul.mubr.bf16.gmra.mrb[0].mxu0 %v2273
        %v2406 = vpop.f32.mrb[0].mxu0
        %v2407 = vadd.f32 0.0, %v2406
        %v2408 = vpop.f32.mrb[0].mxu0
        %v2409 = vpop.f32.mrb[0].mxu0
        %v2410 = vadd.f32 0.0, %v2409
        %v2411 = vpop.f32.mrb[0].mxu0
        %2412 = vmatprep.mubr.bf16.mxu0 0
        %2413 = vmatmul.mubr.bf16.gmra.mrb[0].mxu0 %v2276
        %v2414 = vpop.f32.mrb[0].mxu0
        %v2415 = vadd.f32 0.0, %v2414
        %v2416 = vpop.f32.mrb[0].mxu0
        %v2417 = vpop.f32.mrb[0].mxu0
        %v2418 = vadd.f32 0.0, %v2417
        %v2419 = vpop.f32.mrb[0].mxu0
        %2420 = vmatprep.mubr.bf16.mxu0 0
        %2421 = vmatmul.mubr.bf16.gmra.mrb[0].mxu0 %v2279
        %v2422 = vpop.f32.mrb[0].mxu0
        %v2423 = vadd.f32 0.0, %v2422
        %v2424 = vpop.f32.mrb[0].mxu0
        %v2425 = vpop.f32.mrb[0].mxu0
        %v2426 = vadd.f32 0.0, %v2425
        %v2427 = vpop.f32.mrb[0].mxu0
        %2428 = vdwg.mxu0
        %v2429 = vadd.f32 %v1789, %v2319
        %v2430 = vadd.f32 %v1790, %v2322
        %v2431 = vadd.f32 %v1791, %v2327
        %v2432 = vadd.f32 %v1792, %v2330
        %v2433 = vadd.f32 %v1793, %v2335
        %v2434 = vadd.f32 %v1794, %v2338
        %v2435 = vadd.f32 %v1795, %v2343
        %v2436 = vadd.f32 %v1796, %v2346
        %v2437 = vadd.f32 %v1797, %v2351
        %v2438 = vadd.f32 %v1798, %v2354
        %v2439 = vadd.f32 %v1799, %v2359
        %v2440 = vadd.f32 %v1800, %v2362
        %v2441 = vadd.f32 %v1801, %v2367
        %v2442 = vadd.f32 %v1802, %v2370
        %v2443 = vadd.f32 %v1803, %v2375
        %v2444 = vadd.f32 %v1804, %v2378
        %v2445 = vadd.f32 %v1805, %v2383
        %v2446 = vadd.f32 %v1806, %v2386
        %v2447 = vadd.f32 %v1807, %v2391
        %v2448 = vadd.f32 %v1808, %v2394
        %v2449 = vadd.f32 %v1809, %v2399
        %v2450 = vadd.f32 %v1810, %v2402
        %v2451 = vadd.f32 %v1811, %v2407
        %v2452 = vadd.f32 %v1812, %v2410
        %v2453 = vadd.f32 %v1813, %v2415
        %v2454 = vadd.f32 %v1814, %v2418
        %v2455 = vadd.f32 %v1815, %v2423
        %v2456 = vadd.f32 %v1816, %v2426
        %v2457 = vld [vmem:[%s1498] sm:$0xe]
        %v2458 = vld [vmem:[%s1498 + $0xc] sm:$0xe]
        %v2459 = vld [vmem:[%s1498 + $0x18] sm:$0xe]
        %v2460 = vld [vmem:[%s1498 + $0x24] sm:$0xe]
        %v2461 = vld [vmem:[%s1498 + $0x30] sm:$0xe]
        %v2462 = vld [vmem:[%s1498 + $0x3c] sm:$0xe]
        %v2463 = vld [vmem:[%s1498 + $0x48] sm:$0xe]
        %v2464 = vld [vmem:[%s1498 + $0x54] sm:$0xe]
        %v2465 = vld [vmem:[%s1498 + $0x60] sm:$0xe]
        %v2466 = vld [vmem:[%s1498 + $0x6c] sm:$0xe]
        %v2467 = vld [vmem:[%s1498 + $0x78] sm:$0xe]
        %v2468 = vld [vmem:[%s1498 + $0x84] sm:$0xe]
        %v2469 = vld [vmem:[%s1498 + $0x90] sm:$0xe]
        %v2470 = vld [vmem:[%s1498 + $0x9c] sm:$0xe]
        %v2513 = vrot.slane %v2457, 5
        %v2514 = vrot.slane %v2513, 4
        %v2515 = vrot.slane %v1818, 5
        %v2516 = vsel %vm1137, %v2514, %v2515
        %v2517 = vrot.slane %v2515, 4
        %v2518 = vrot.slane %v1819, 5
        %v2519 = vsel %vm1137, %v2517, %v2518
        %v2520 = vrot.slane %v2458, 5
        %v2521 = vrot.slane %v2520, 4
        %v2522 = vrot.slane %v1821, 5
        %v2523 = vsel %vm1137, %v2521, %v2522
        %v2524 = vrot.slane %v2522, 4
        %v2525 = vrot.slane %v1822, 5
        %v2526 = vsel %vm1137, %v2524, %v2525
        %v2527 = vrot.slane %v2459, 5
        %v2528 = vrot.slane %v2527, 4
        %v2529 = vrot.slane %v1824, 5
        %v2530 = vsel %vm1137, %v2528, %v2529
        %v2531 = vrot.slane %v2529, 4
        %v2532 = vrot.slane %v1825, 5
        %v2533 = vsel %vm1137, %v2531, %v2532
        %v2534 = vrot.slane %v2460, 5
        %v2535 = vrot.slane %v2534, 4
        %v2536 = vrot.slane %v1827, 5
        %v2537 = vsel %vm1137, %v2535, %v2536
        %v2538 = vrot.slane %v2536, 4
        %v2539 = vrot.slane %v1828, 5
        %v2540 = vsel %vm1137, %v2538, %v2539
        %v2541 = vrot.slane %v2461, 5
        %v2542 = vrot.slane %v2541, 4
        %v2543 = vrot.slane %v1830, 5
        %v2544 = vsel %vm1137, %v2542, %v2543
        %v2545 = vrot.slane %v2543, 4
        %v2546 = vrot.slane %v1831, 5
        %v2547 = vsel %vm1137, %v2545, %v2546
        %v2548 = vrot.slane %v2462, 5
        %v2549 = vrot.slane %v2548, 4
        %v2550 = vrot.slane %v1833, 5
        %v2551 = vsel %vm1137, %v2549, %v2550
        %v2552 = vrot.slane %v2550, 4
        %v2553 = vrot.slane %v1834, 5
        %v2554 = vsel %vm1137, %v2552, %v2553
        %v2555 = vrot.slane %v2463, 5
        %v2556 = vrot.slane %v2555, 4
        %v2557 = vrot.slane %v1836, 5
        %v2558 = vsel %vm1137, %v2556, %v2557
        %v2559 = vrot.slane %v2557, 4
        %v2560 = vrot.slane %v1837, 5
        %v2561 = vsel %vm1137, %v2559, %v2560
        %v2562 = vrot.slane %v2464, 5
        %v2563 = vrot.slane %v2562, 4
        %v2564 = vrot.slane %v1839, 5
        %v2565 = vsel %vm1137, %v2563, %v2564
        %v2566 = vrot.slane %v2564, 4
        %v2567 = vrot.slane %v1840, 5
        %v2568 = vsel %vm1137, %v2566, %v2567
        %v2569 = vrot.slane %v2465, 5
        %v2570 = vrot.slane %v2569, 4
        %v2571 = vrot.slane %v1842, 5
        %v2572 = vsel %vm1137, %v2570, %v2571
        %v2573 = vrot.slane %v2571, 4
        %v2574 = vrot.slane %v1843, 5
        %v2575 = vsel %vm1137, %v2573, %v2574
        %v2576 = vrot.slane %v2466, 5
        %v2577 = vrot.slane %v2576, 4
        %v2578 = vrot.slane %v1845, 5
        %v2579 = vsel %vm1137, %v2577, %v2578
        %v2580 = vrot.slane %v2578, 4
        %v2581 = vrot.slane %v1846, 5
        %v2582 = vsel %vm1137, %v2580, %v2581
        %v2583 = vrot.slane %v2467, 5
        %v2584 = vrot.slane %v2583, 4
        %v2585 = vrot.slane %v1848, 5
        %v2586 = vsel %vm1137, %v2584, %v2585
        %v2587 = vrot.slane %v2585, 4
        %v2588 = vrot.slane %v1849, 5
        %v2589 = vsel %vm1137, %v2587, %v2588
        %v2590 = vrot.slane %v2468, 5
        %v2591 = vrot.slane %v2590, 4
        %v2592 = vrot.slane %v1851, 5
        %v2593 = vsel %vm1137, %v2591, %v2592
        %v2594 = vrot.slane %v2592, 4
        %v2595 = vrot.slane %v1852, 5
        %v2596 = vsel %vm1137, %v2594, %v2595
        %v2597 = vrot.slane %v2469, 5
        %v2598 = vrot.slane %v2597, 4
        %v2599 = vrot.slane %v1854, 5
        %v2600 = vsel %vm1137, %v2598, %v2599
        %v2601 = vrot.slane %v2599, 4
        %v2602 = vrot.slane %v1855, 5
        %v2603 = vsel %vm1137, %v2601, %v2602
        %v2604 = vrot.slane %v2470, 5
        %v2605 = vrot.slane %v2604, 4
        %v2606 = vrot.slane %v1857, 5
        %v2607 = vsel %vm1137, %v2605, %v2606
        %v2608 = vrot.slane %v2606, 4
        %v2609 = vrot.slane %v1858, 5
        %v2610 = vsel %vm1137, %v2608, %v2609
        %s2611 = scalar_lea.vmem %s210, 10
        %v2612 = vld [vmem:[%s2611] sm:$0x3]
        %v2613 = vunpack.c.l.b16 %v2516
        %v2614 = vunpack.c.l.b16 %v2519
        %v2615 = vunpack.c.l.b16 %v2523
        %v2616 = vunpack.c.l.b16 %v2526
        %v2617 = vunpack.c.l.b16 %v2530
        %v2618 = vunpack.c.l.b16 %v2533
        %v2619 = vunpack.c.l.b16 %v2537
        %v2620 = vunpack.c.l.b16 %v2540
        %v2621 = vunpack.c.l.b16 %v2544
        %v2622 = vunpack.c.l.b16 %v2547
        %v2623 = vunpack.c.l.b16 %v2551
        %v2624 = vunpack.c.l.b16 %v2554
        %v2625 = vunpack.c.l.b16 %v2558
        %v2626 = vunpack.c.l.b16 %v2561
        %v2627 = vunpack.c.l.b16 %v2565
        %v2628 = vunpack.c.l.b16 %v2568
        %v2629 = vunpack.c.l.b16 %v2572
        %v2630 = vunpack.c.l.b16 %v2575
        %v2631 = vunpack.c.l.b16 %v2579
        %v2632 = vunpack.c.l.b16 %v2582
        %v2633 = vunpack.c.l.b16 %v2586
        %v2634 = vunpack.c.l.b16 %v2589
        %v2635 = vunpack.c.l.b16 %v2593
        %v2636 = vunpack.c.l.b16 %v2596
        %v2637 = vunpack.c.l.b16 %v2600
        %v2638 = vunpack.c.l.b16 %v2603
        %v2639 = vunpack.c.l.b16 %v2607
        %v2640 = vunpack.c.l.b16 %v2610
        %v2641 = vpack.c.b16 %v2614, %v2613
        %v2642 = vpack.c.b16 %v2616, %v2615
        %v2643 = vpack.c.b16 %v2618, %v2617
        %v2644 = vpack.c.b16 %v2620, %v2619
        %v2645 = vpack.c.b16 %v2622, %v2621
        %v2646 = vpack.c.b16 %v2624, %v2623
        %v2647 = vpack.c.b16 %v2626, %v2625
        %v2648 = vpack.c.b16 %v2628, %v2627
        %v2649 = vpack.c.b16 %v2630, %v2629
        %v2650 = vpack.c.b16 %v2632, %v2631
        %v2651 = vpack.c.b16 %v2634, %v2633
        %v2652 = vpack.c.b16 %v2636, %v2635
        %v2653 = vpack.c.b16 %v2638, %v2637
        %v2654 = vpack.c.b16 %v2640, %v2639
        %v2656 = vsel %vm641, %v2641, 0
        %v2659 = vsel %vm641, %v2642, 0
        %v2662 = vsel %vm641, %v2643, 0
        %v2665 = vsel %vm641, %v2644, 0
        %v2668 = vsel %vm641, %v2645, 0
        %v2671 = vsel %vm641, %v2646, 0
        %v2674 = vsel %vm641, %v2647, 0
        %v2677 = vsel %vm641, %v2648, 0
        %v2680 = vsel %vm641, %v2649, 0
        %v2683 = vsel %vm641, %v2650, 0
        %v2686 = vsel %vm641, %v2651, 0
        %v2689 = vsel %vm641, %v2652, 0
        %v2692 = vsel %vm641, %v2653, 0
        %v2695 = vsel %vm641, %v2654, 0
        %v2698 = vsel %vm684, %v2612, 0
        %2700 = vmatprep.subr.bf16.mxu0 0
        %2701 = vmatpush1.bf16.msra.mxu0 %v2698
        %2702 = vmatprep.subr.bf16.mxu0 0
        %2703 = vmatpush1.bf16.msra.mxu0 0
        %2704 = vmatprep.subr.bf16.mxu0 0
        %2705 = vmatpush1.bf16.msra.mxu0 0
        %2706 = vmatprep.subr.bf16.mxu0 0
        %2707 = vmatpush1.bf16.msra.mxu0 0
        %2708 = vmatprep.subr.bf16.mxu0 0
        %2709 = vmatpush1.bf16.msra.mxu0 0
        %2710 = vmatprep.subr.bf16.mxu0 0
        %2711 = vmatpush1.bf16.msra.mxu0 0
        %2712 = vmatprep.subr.bf16.mxu0 0
        %2713 = vmatpush1.bf16.msra.mxu0 0
        %2714 = vmatprep.subr.bf16.mxu0 0
        %2715 = vmatpush1.bf16.msra.mxu0 0
        %2716 = vmatprep.subr.bf16.mxu0 0
        %2717 = vmatpush1.bf16.msra.mxu0 0
        %2718 = vmatprep.subr.bf16.mxu0 0
        %2719 = vmatpush1.bf16.msra.mxu0 0
        %2720 = vmatprep.subr.bf16.mxu0 0
        %2721 = vmatpush1.bf16.msra.mxu0 0
        %2722 = vmatprep.subr.bf16.mxu0 0
        %2723 = vmatpush1.bf16.msra.mxu0 0
        %2724 = vmatprep.subr.bf16.mxu0 0
        %2725 = vmatpush1.bf16.msra.mxu0 0
        %2726 = vmatprep.subr.bf16.mxu0 0
        %2727 = vmatpush1.bf16.msra.mxu0 0
        %2728 = vmatprep.subr.bf16.mxu0 0
        %2729 = vmatpush1.bf16.msra.mxu0 0
        %2730 = vmatprep.subr.bf16.mxu0 0
        %2731 = vmatpush1.bf16.msra.mxu0 0
        %2732 = vmatprep.mubr.bf16.mxu0 0
        %2733 = vmatmul.mubr.bf16.gmra.mrb[0].mxu0 %v2656
        %v2734 = vpop.f32.mrb[0].mxu0
        %v2735 = vadd.f32 0.0, %v2734
        %v2736 = vpop.f32.mrb[0].mxu0
        %v2737 = vpop.f32.mrb[0].mxu0
        %v2738 = vadd.f32 0.0, %v2737
        %v2739 = vpop.f32.mrb[0].mxu0
        %2740 = vmatprep.mubr.bf16.mxu0 0
        %2741 = vmatmul.mubr.bf16.gmra.mrb[0].mxu0 %v2659
        %v2742 = vpop.f32.mrb[0].mxu0
        %v2743 = vadd.f32 0.0, %v2742
        %v2744 = vpop.f32.mrb[0].mxu0
        %v2745 = vpop.f32.mrb[0].mxu0
        %v2746 = vadd.f32 0.0, %v2745
        %v2747 = vpop.f32.mrb[0].mxu0
        %2748 = vmatprep.mubr.bf16.mxu0 0
        %2749 = vmatmul.mubr.bf16.gmra.mrb[0].mxu0 %v2662
        %v2750 = vpop.f32.mrb[0].mxu0
        %v2751 = vadd.f32 0.0, %v2750
        %v2752 = vpop.f32.mrb[0].mxu0
        %v2753 = vpop.f32.mrb[0].mxu0
        %v2754 = vadd.f32 0.0, %v2753
        %v2755 = vpop.f32.mrb[0].mxu0
        %2756 = vmatprep.mubr.bf16.mxu0 0
        %2757 = vmatmul.mubr.bf16.gmra.mrb[0].mxu0 %v2665
        %v2758 = vpop.f32.mrb[0].mxu0
        %v2759 = vadd.f32 0.0, %v2758
        %v2760 = vpop.f32.mrb[0].mxu0
        %v2761 = vpop.f32.mrb[0].mxu0
        %v2762 = vadd.f32 0.0, %v2761
        %v2763 = vpop.f32.mrb[0].mxu0
        %2764 = vmatprep.mubr.bf16.mxu0 0
        %2765 = vmatmul.mubr.bf16.gmra.mrb[0].mxu0 %v2668
        %v2766 = vpop.f32.mrb[0].mxu0
        %v2767 = vadd.f32 0.0, %v2766
        %v2768 = vpop.f32.mrb[0].mxu0
        %v2769 = vpop.f32.mrb[0].mxu0
        %v2770 = vadd.f32 0.0, %v2769
        %v2771 = vpop.f32.mrb[0].mxu0
        %2772 = vmatprep.mubr.bf16.mxu0 0
        %2773 = vmatmul.mubr.bf16.gmra.mrb[0].mxu0 %v2671
        %v2774 = vpop.f32.mrb[0].mxu0
        %v2775 = vadd.f32 0.0, %v2774
        %v2776 = vpop.f32.mrb[0].mxu0
        %v2777 = vpop.f32.mrb[0].mxu0
        %v2778 = vadd.f32 0.0, %v2777
        %v2779 = vpop.f32.mrb[0].mxu0
        %2780 = vmatprep.mubr.bf16.mxu0 0
        %2781 = vmatmul.mubr.bf16.gmra.mrb[0].mxu0 %v2674
        %v2782 = vpop.f32.mrb[0].mxu0
        %v2783 = vadd.f32 0.0, %v2782
        %v2784 = vpop.f32.mrb[0].mxu0
        %v2785 = vpop.f32.mrb[0].mxu0
        %v2786 = vadd.f32 0.0, %v2785
        %v2787 = vpop.f32.mrb[0].mxu0
        %2788 = vmatprep.mubr.bf16.mxu0 0
        %2789 = vmatmul.mubr.bf16.gmra.mrb[0].mxu0 %v2677
        %v2790 = vpop.f32.mrb[0].mxu0
        %v2791 = vadd.f32 0.0, %v2790
        %v2792 = vpop.f32.mrb[0].mxu0
        %v2793 = vpop.f32.mrb[0].mxu0
        %v2794 = vadd.f32 0.0, %v2793
        %v2795 = vpop.f32.mrb[0].mxu0
        %2796 = vmatprep.mubr.bf16.mxu0 0
        %2797 = vmatmul.mubr.bf16.gmra.mrb[0].mxu0 %v2680
        %v2798 = vpop.f32.mrb[0].mxu0
        %v2799 = vadd.f32 0.0, %v2798
        %v2800 = vpop.f32.mrb[0].mxu0
        %v2801 = vpop.f32.mrb[0].mxu0
        %v2802 = vadd.f32 0.0, %v2801
        %v2803 = vpop.f32.mrb[0].mxu0
        %2804 = vmatprep.mubr.bf16.mxu0 0
        %2805 = vmatmul.mubr.bf16.gmra.mrb[0].mxu0 %v2683
        %v2806 = vpop.f32.mrb[0].mxu0
        %v2807 = vadd.f32 0.0, %v2806
        %v2808 = vpop.f32.mrb[0].mxu0
        %v2809 = vpop.f32.mrb[0].mxu0
        %v2810 = vadd.f32 0.0, %v2809
        %v2811 = vpop.f32.mrb[0].mxu0
        %2812 = vmatprep.mubr.bf16.mxu0 0
        %2813 = vmatmul.mubr.bf16.gmra.mrb[0].mxu0 %v2686
        %v2814 = vpop.f32.mrb[0].mxu0
        %v2815 = vadd.f32 0.0, %v2814
        %v2816 = vpop.f32.mrb[0].mxu0
        %v2817 = vpop.f32.mrb[0].mxu0
        %v2818 = vadd.f32 0.0, %v2817
        %v2819 = vpop.f32.mrb[0].mxu0
        %2820 = vmatprep.mubr.bf16.mxu0 0
        %2821 = vmatmul.mubr.bf16.gmra.mrb[0].mxu0 %v2689
        %v2822 = vpop.f32.mrb[0].mxu0
        %v2823 = vadd.f32 0.0, %v2822
        %v2824 = vpop.f32.mrb[0].mxu0
        %v2825 = vpop.f32.mrb[0].mxu0
        %v2826 = vadd.f32 0.0, %v2825
        %v2827 = vpop.f32.mrb[0].mxu0
        %2828 = vmatprep.mubr.bf16.mxu0 0
        %2829 = vmatmul.mubr.bf16.gmra.mrb[0].mxu0 %v2692
        %v2830 = vpop.f32.mrb[0].mxu0
        %v2831 = vadd.f32 0.0, %v2830
        %v2832 = vpop.f32.mrb[0].mxu0
        %v2833 = vpop.f32.mrb[0].mxu0
        %v2834 = vadd.f32 0.0, %v2833
        %v2835 = vpop.f32.mrb[0].mxu0
        %2836 = vmatprep.mubr.bf16.mxu0 0
        %2837 = vmatmul.mubr.bf16.gmra.mrb[0].mxu0 %v2695
        %v2838 = vpop.f32.mrb[0].mxu0
        %v2839 = vadd.f32 0.0, %v2838
        %v2840 = vpop.f32.mrb[0].mxu0
        %v2841 = vpop.f32.mrb[0].mxu0
        %v2842 = vadd.f32 0.0, %v2841
        %v2843 = vpop.f32.mrb[0].mxu0
        %2844 = vdwg.mxu0
        %v2845 = vadd.f32 %v2429, %v2735
        %v2846 = vadd.f32 %v2430, %v2738
        %v2847 = vadd.f32 %v2431, %v2743
        %v2848 = vadd.f32 %v2432, %v2746
        %v2849 = vadd.f32 %v2433, %v2751
        %v2850 = vadd.f32 %v2434, %v2754
        %v2851 = vadd.f32 %v2435, %v2759
        %v2852 = vadd.f32 %v2436, %v2762
        %v2853 = vadd.f32 %v2437, %v2767
        %v2854 = vadd.f32 %v2438, %v2770
        %v2855 = vadd.f32 %v2439, %v2775
        %v2856 = vadd.f32 %v2440, %v2778
        %v2857 = vadd.f32 %v2441, %v2783
        %v2858 = vadd.f32 %v2442, %v2786
        %v2859 = vadd.f32 %v2443, %v2791
        %v2860 = vadd.f32 %v2444, %v2794
        %v2861 = vadd.f32 %v2445, %v2799
        %v2862 = vadd.f32 %v2446, %v2802
        %v2863 = vadd.f32 %v2447, %v2807
        %v2864 = vadd.f32 %v2448, %v2810
        %v2865 = vadd.f32 %v2449, %v2815
        %v2866 = vadd.f32 %v2450, %v2818
        %v2867 = vadd.f32 %v2451, %v2823
        %v2868 = vadd.f32 %v2452, %v2826
        %v2869 = vadd.f32 %v2453, %v2831
        %v2870 = vadd.f32 %v2454, %v2834
        %v2871 = vadd.f32 %v2455, %v2839
        %v2872 = vadd.f32 %v2456, %v2842
        %s2873 = scalar_lea.vmem %s206, 24
        %v2874 = vld [vmem:[%s2873] sm:$0xf]
        %v2875 = vld [vmem:[%s2873 + $0x4] sm:$0xf]
        %v2876 = vld [vmem:[%s2873 + $0xc] sm:$0xf]
        %v2877 = vld [vmem:[%s2873 + $0x10] sm:$0xf]
        %v2878 = vld [vmem:[%s2873 + $0x18] sm:$0xf]
        %v2879 = vld [vmem:[%s2873 + $0x1c] sm:$0xf]
        %v2880 = vld [vmem:[%s2873 + $0x24] sm:$0xf]
        %v2881 = vld [vmem:[%s2873 + $0x28] sm:$0xf]
        %v2882 = vld [vmem:[%s2873 + $0x30] sm:$0xf]
        %v2883 = vld [vmem:[%s2873 + $0x34] sm:$0xf]
        %v2884 = vld [vmem:[%s2873 + $0x3c] sm:$0xf]
        %v2885 = vld [vmem:[%s2873 + $0x40] sm:$0xf]
        %v2886 = vld [vmem:[%s2873 + $0x48] sm:$0xf]
        %v2887 = vld [vmem:[%s2873 + $0x4c] sm:$0xf]
        %v2888 = vld [vmem:[%s2873 + $0x54] sm:$0xf]
        %v2889 = vld [vmem:[%s2873 + $0x58] sm:$0xf]
        %v2890 = vld [vmem:[%s2873 + $0x60] sm:$0xf]
        %v2891 = vld [vmem:[%s2873 + $0x64] sm:$0xf]
        %v2892 = vld [vmem:[%s2873 + $0x6c] sm:$0xf]
        %v2893 = vld [vmem:[%s2873 + $0x70] sm:$0xf]
        %v2894 = vld [vmem:[%s2873 + $0x78] sm:$0xf]
        %v2895 = vld [vmem:[%s2873 + $0x7c] sm:$0xf]
        %v2896 = vld [vmem:[%s2873 + $0x84] sm:$0xf]
        %v2897 = vld [vmem:[%s2873 + $0x88] sm:$0xf]
        %v2898 = vld [vmem:[%s2873 + $0x90] sm:$0xf]
        %v2899 = vld [vmem:[%s2873 + $0x94] sm:$0xf]
        %v2900 = vld [vmem:[%s2873 + $0x9c] sm:$0xf]
        %v2901 = vld [vmem:[%s2873 + $0xa0] sm:$0xf]
        %s2902 = scalar_lea.vmem %s210, 12
        %v2903 = vld [vmem:[%s2902] sm:$0x3]
        %v2932 = vunpack.c.l.b16 %v2874
        %v2933 = vunpack.c.l.b16 %v2875
        %v2934 = vunpack.c.l.b16 %v2876
        %v2935 = vunpack.c.l.b16 %v2877
        %v2936 = vunpack.c.l.b16 %v2878
        %v2937 = vunpack.c.l.b16 %v2879
        %v2938 = vunpack.c.l.b16 %v2880
        %v2939 = vunpack.c.l.b16 %v2881
        %v2940 = vunpack.c.l.b16 %v2882
        %v2941 = vunpack.c.l.b16 %v2883
        %v2942 = vunpack.c.l.b16 %v2884
        %v2943 = vunpack.c.l.b16 %v2885
        %v2944 = vunpack.c.l.b16 %v2886
        %v2945 = vunpack.c.l.b16 %v2887
        %v2946 = vunpack.c.l.b16 %v2888
        %v2947 = vunpack.c.l.b16 %v2889
        %v2948 = vunpack.c.l.b16 %v2890
        %v2949 = vunpack.c.l.b16 %v2891
        %v2950 = vunpack.c.l.b16 %v2892
        %v2951 = vunpack.c.l.b16 %v2893
        %v2952 = vunpack.c.l.b16 %v2894
        %v2953 = vunpack.c.l.b16 %v2895
        %v2954 = vunpack.c.l.b16 %v2896
        %v2955 = vunpack.c.l.b16 %v2897
        %v2956 = vunpack.c.l.b16 %v2898
        %v2957 = vunpack.c.l.b16 %v2899
        %v2958 = vunpack.c.l.b16 %v2900
        %v2959 = vunpack.c.l.b16 %v2901
        %v2960 = vpack.c.b16 %v2933, %v2932
        %v2961 = vpack.c.b16 %v2935, %v2934
        %v2962 = vpack.c.b16 %v2937, %v2936
        %v2963 = vpack.c.b16 %v2939, %v2938
        %v2964 = vpack.c.b16 %v2941, %v2940
        %v2965 = vpack.c.b16 %v2943, %v2942
        %v2966 = vpack.c.b16 %v2945, %v2944
        %v2967 = vpack.c.b16 %v2947, %v2946
        %v2968 = vpack.c.b16 %v2949, %v2948
        %v2969 = vpack.c.b16 %v2951, %v2950
        %v2970 = vpack.c.b16 %v2953, %v2952
        %v2971 = vpack.c.b16 %v2955, %v2954
        %v2972 = vpack.c.b16 %v2957, %v2956
        %v2973 = vpack.c.b16 %v2959, %v2958
        %v2975 = vsel %vm641, %v2960, 0
        %v2978 = vsel %vm641, %v2961, 0
        %v2981 = vsel %vm641, %v2962, 0
        %v2984 = vsel %vm641, %v2963, 0
        %v2987 = vsel %vm641, %v2964, 0
        %v2990 = vsel %vm641, %v2965, 0
        %v2993 = vsel %vm641, %v2966, 0
        %v2996 = vsel %vm641, %v2967, 0
        %v2999 = vsel %vm641, %v2968, 0
        %v3002 = vsel %vm641, %v2969, 0
        %v3005 = vsel %vm641, %v2970, 0
        %v3008 = vsel %vm641, %v2971, 0
        %v3011 = vsel %vm641, %v2972, 0
        %v3014 = vsel %vm641, %v2973, 0
        %v3017 = vsel %vm684, %v2903, 0
        %3019 = vmatprep.subr.bf16.mxu0 0
        %3020 = vmatpush1.bf16.msra.mxu0 %v3017
        %3021 = vmatprep.subr.bf16.mxu0 0
        %3022 = vmatpush1.bf16.msra.mxu0 0
        %3023 = vmatprep.subr.bf16.mxu0 0
        %3024 = vmatpush1.bf16.msra.mxu0 0
        %3025 = vmatprep.subr.bf16.mxu0 0
        %3026 = vmatpush1.bf16.msra.mxu0 0
        %3027 = vmatprep.subr.bf16.mxu0 0
        %3028 = vmatpush1.bf16.msra.mxu0 0
        %3029 = vmatprep.subr.bf16.mxu0 0
        %3030 = vmatpush1.bf16.msra.mxu0 0
        %3031 = vmatprep.subr.bf16.mxu0 0
        %3032 = vmatpush1.bf16.msra.mxu0 0
        %3033 = vmatprep.subr.bf16.mxu0 0
        %3034 = vmatpush1.bf16.msra.mxu0 0
        %3035 = vmatprep.subr.bf16.mxu0 0
        %3036 = vmatpush1.bf16.msra.mxu0 0
        %3037 = vmatprep.subr.bf16.mxu0 0
        %3038 = vmatpush1.bf16.msra.mxu0 0
        %3039 = vmatprep.subr.bf16.mxu0 0
        %3040 = vmatpush1.bf16.msra.mxu0 0
        %3041 = vmatprep.subr.bf16.mxu0 0
        %3042 = vmatpush1.bf16.msra.mxu0 0
        %3043 = vmatprep.subr.bf16.mxu0 0
        %3044 = vmatpush1.bf16.msra.mxu0 0
        %3045 = vmatprep.subr.bf16.mxu0 0
        %3046 = vmatpush1.bf16.msra.mxu0 0
        %3047 = vmatprep.subr.bf16.mxu0 0
        %3048 = vmatpush1.bf16.msra.mxu0 0
        %3049 = vmatprep.subr.bf16.mxu0 0
        %3050 = vmatpush1.bf16.msra.mxu0 0
        %3051 = vmatprep.mubr.bf16.mxu0 0
        %3052 = vmatmul.mubr.bf16.gmra.mrb[0].mxu0 %v2975
        %v3053 = vpop.f32.mrb[0].mxu0
        %v3054 = vadd.f32 0.0, %v3053
        %v3055 = vpop.f32.mrb[0].mxu0
        %v3056 = vpop.f32.mrb[0].mxu0
        %v3057 = vadd.f32 0.0, %v3056
        %v3058 = vpop.f32.mrb[0].mxu0
        %3059 = vmatprep.mubr.bf16.mxu0 0
        %3060 = vmatmul.mubr.bf16.gmra.mrb[0].mxu0 %v2978
        %v3061 = vpop.f32.mrb[0].mxu0
        %v3062 = vadd.f32 0.0, %v3061
        %v3063 = vpop.f32.mrb[0].mxu0
        %v3064 = vpop.f32.mrb[0].mxu0
        %v3065 = vadd.f32 0.0, %v3064
        %v3066 = vpop.f32.mrb[0].mxu0
        %3067 = vmatprep.mubr.bf16.mxu0 0
        %3068 = vmatmul.mubr.bf16.gmra.mrb[0].mxu0 %v2981
        %v3069 = vpop.f32.mrb[0].mxu0
        %v3070 = vadd.f32 0.0, %v3069
        %v3071 = vpop.f32.mrb[0].mxu0
        %v3072 = vpop.f32.mrb[0].mxu0
        %v3073 = vadd.f32 0.0, %v3072
        %v3074 = vpop.f32.mrb[0].mxu0
        %3075 = vmatprep.mubr.bf16.mxu0 0
        %3076 = vmatmul.mubr.bf16.gmra.mrb[0].mxu0 %v2984
        %v3077 = vpop.f32.mrb[0].mxu0
        %v3078 = vadd.f32 0.0, %v3077
        %v3079 = vpop.f32.mrb[0].mxu0
        %v3080 = vpop.f32.mrb[0].mxu0
        %v3081 = vadd.f32 0.0, %v3080
        %v3082 = vpop.f32.mrb[0].mxu0
        %3083 = vmatprep.mubr.bf16.mxu0 0
        %3084 = vmatmul.mubr.bf16.gmra.mrb[0].mxu0 %v2987
        %v3085 = vpop.f32.mrb[0].mxu0
        %v3086 = vadd.f32 0.0, %v3085
        %v3087 = vpop.f32.mrb[0].mxu0
        %v3088 = vpop.f32.mrb[0].mxu0
        %v3089 = vadd.f32 0.0, %v3088
        %v3090 = vpop.f32.mrb[0].mxu0
        %3091 = vmatprep.mubr.bf16.mxu0 0
        %3092 = vmatmul.mubr.bf16.gmra.mrb[0].mxu0 %v2990
        %v3093 = vpop.f32.mrb[0].mxu0
        %v3094 = vadd.f32 0.0, %v3093
        %v3095 = vpop.f32.mrb[0].mxu0
        %v3096 = vpop.f32.mrb[0].mxu0
        %v3097 = vadd.f32 0.0, %v3096
        %v3098 = vpop.f32.mrb[0].mxu0
        %3099 = vmatprep.mubr.bf16.mxu0 0
        %3100 = vmatmul.mubr.bf16.gmra.mrb[0].mxu0 %v2993
        %v3101 = vpop.f32.mrb[0].mxu0
        %v3102 = vadd.f32 0.0, %v3101
        %v3103 = vpop.f32.mrb[0].mxu0
        %v3104 = vpop.f32.mrb[0].mxu0
        %v3105 = vadd.f32 0.0, %v3104
        %v3106 = vpop.f32.mrb[0].mxu0
        %3107 = vmatprep.mubr.bf16.mxu0 0
        %3108 = vmatmul.mubr.bf16.gmra.mrb[0].mxu0 %v2996
        %v3109 = vpop.f32.mrb[0].mxu0
        %v3110 = vadd.f32 0.0, %v3109
        %v3111 = vpop.f32.mrb[0].mxu0
        %v3112 = vpop.f32.mrb[0].mxu0
        %v3113 = vadd.f32 0.0, %v3112
        %v3114 = vpop.f32.mrb[0].mxu0
        %3115 = vmatprep.mubr.bf16.mxu0 0
        %3116 = vmatmul.mubr.bf16.gmra.mrb[0].mxu0 %v2999
        %v3117 = vpop.f32.mrb[0].mxu0
        %v3118 = vadd.f32 0.0, %v3117
        %v3119 = vpop.f32.mrb[0].mxu0
        %v3120 = vpop.f32.mrb[0].mxu0
        %v3121 = vadd.f32 0.0, %v3120
        %v3122 = vpop.f32.mrb[0].mxu0
        %3123 = vmatprep.mubr.bf16.mxu0 0
        %3124 = vmatmul.mubr.bf16.gmra.mrb[0].mxu0 %v3002
        %v3125 = vpop.f32.mrb[0].mxu0
        %v3126 = vadd.f32 0.0, %v3125
        %v3127 = vpop.f32.mrb[0].mxu0
        %v3128 = vpop.f32.mrb[0].mxu0
        %v3129 = vadd.f32 0.0, %v3128
        %v3130 = vpop.f32.mrb[0].mxu0
        %3131 = vmatprep.mubr.bf16.mxu0 0
        %3132 = vmatmul.mubr.bf16.gmra.mrb[0].mxu0 %v3005
        %v3133 = vpop.f32.mrb[0].mxu0
        %v3134 = vadd.f32 0.0, %v3133
        %v3135 = vpop.f32.mrb[0].mxu0
        %v3136 = vpop.f32.mrb[0].mxu0
        %v3137 = vadd.f32 0.0, %v3136
        %v3138 = vpop.f32.mrb[0].mxu0
        %3139 = vmatprep.mubr.bf16.mxu0 0
        %3140 = vmatmul.mubr.bf16.gmra.mrb[0].mxu0 %v3008
        %v3141 = vpop.f32.mrb[0].mxu0
        %v3142 = vadd.f32 0.0, %v3141
        %v3143 = vpop.f32.mrb[0].mxu0
        %v3144 = vpop.f32.mrb[0].mxu0
        %v3145 = vadd.f32 0.0, %v3144
        %v3146 = vpop.f32.mrb[0].mxu0
        %3147 = vmatprep.mubr.bf16.mxu0 0
        %3148 = vmatmul.mubr.bf16.gmra.mrb[0].mxu0 %v3011
        %v3149 = vpop.f32.mrb[0].mxu0
        %v3150 = vadd.f32 0.0, %v3149
        %v3151 = vpop.f32.mrb[0].mxu0
        %v3152 = vpop.f32.mrb[0].mxu0
        %v3153 = vadd.f32 0.0, %v3152
        %v3154 = vpop.f32.mrb[0].mxu0
        %3155 = vmatprep.mubr.bf16.mxu0 0
        %3156 = vmatmul.mubr.bf16.gmra.mrb[0].mxu0 %v3014
        %v3157 = vpop.f32.mrb[0].mxu0
        %v3158 = vadd.f32 0.0, %v3157
        %v3159 = vpop.f32.mrb[0].mxu0
        %v3160 = vpop.f32.mrb[0].mxu0
        %v3161 = vadd.f32 0.0, %v3160
        %v3162 = vpop.f32.mrb[0].mxu0
        %3163 = vdwg.mxu0
        %v3164 = vadd.f32 %v2845, %v3054
        %v3165 = vadd.f32 %v2846, %v3057
        %v3166 = vadd.f32 %v2847, %v3062
        %v3167 = vadd.f32 %v2848, %v3065
        %v3168 = vadd.f32 %v2849, %v3070
        %v3169 = vadd.f32 %v2850, %v3073
        %v3170 = vadd.f32 %v2851, %v3078
        %v3171 = vadd.f32 %v2852, %v3081
        %v3172 = vadd.f32 %v2853, %v3086
        %v3173 = vadd.f32 %v2854, %v3089
        %v3174 = vadd.f32 %v2855, %v3094
        %v3175 = vadd.f32 %v2856, %v3097
        %v3176 = vadd.f32 %v2857, %v3102
        %v3177 = vadd.f32 %v2858, %v3105
        %v3178 = vadd.f32 %v2859, %v3110
        %v3179 = vadd.f32 %v2860, %v3113
        %v3180 = vadd.f32 %v2861, %v3118
        %v3181 = vadd.f32 %v2862, %v3121
        %v3182 = vadd.f32 %v2863, %v3126
        %v3183 = vadd.f32 %v2864, %v3129
        %v3184 = vadd.f32 %v2865, %v3134
        %v3185 = vadd.f32 %v2866, %v3137
        %v3186 = vadd.f32 %v2867, %v3142
        %v3187 = vadd.f32 %v2868, %v3145
        %v3188 = vadd.f32 %v2869, %v3150
        %v3189 = vadd.f32 %v2870, %v3153
        %v3190 = vadd.f32 %v2871, %v3158
        %v3191 = vadd.f32 %v2872, %v3161
        %v3192 = vld [vmem:[%s2873] sm:$0xf]
        %v3193 = vld [vmem:[%s2873 + $0x4] sm:$0xf]
        %v3194 = vld [vmem:[%s2873 + $0x8] sm:$0x1]
        %v3195 = vld [vmem:[%s2873 + $0xc] sm:$0xf]
        %v3196 = vld [vmem:[%s2873 + $0x10] sm:$0xf]
        %v3197 = vld [vmem:[%s2873 + $0x14] sm:$0x1]
        %v3198 = vld [vmem:[%s2873 + $0x18] sm:$0xf]
        %v3199 = vld [vmem:[%s2873 + $0x1c] sm:$0xf]
        %v3200 = vld [vmem:[%s2873 + $0x20] sm:$0x1]
        %v3201 = vld [vmem:[%s2873 + $0x24] sm:$0xf]
        %v3202 = vld [vmem:[%s2873 + $0x28] sm:$0xf]
        %v3203 = vld [vmem:[%s2873 + $0x2c] sm:$0x1]
        %v3204 = vld [vmem:[%s2873 + $0x30] sm:$0xf]
        %v3205 = vld [vmem:[%s2873 + $0x34] sm:$0xf]
        %v3206 = vld [vmem:[%s2873 + $0x38] sm:$0x1]
        %v3207 = vld [vmem:[%s2873 + $0x3c] sm:$0xf]
        %v3208 = vld [vmem:[%s2873 + $0x40] sm:$0xf]
        %v3209 = vld [vmem:[%s2873 + $0x44] sm:$0x1]
        %v3210 = vld [vmem:[%s2873 + $0x48] sm:$0xf]
        %v3211 = vld [vmem:[%s2873 + $0x4c] sm:$0xf]
        %v3212 = vld [vmem:[%s2873 + $0x50] sm:$0x1]
        %v3213 = vld [vmem:[%s2873 + $0x54] sm:$0xf]
        %v3214 = vld [vmem:[%s2873 + $0x58] sm:$0xf]
        %v3215 = vld [vmem:[%s2873 + $0x5c] sm:$0x1]
        %v3216 = vld [vmem:[%s2873 + $0x60] sm:$0xf]
        %v3217 = vld [vmem:[%s2873 + $0x64] sm:$0xf]
        %v3218 = vld [vmem:[%s2873 + $0x68] sm:$0x1]
        %v3219 = vld [vmem:[%s2873 + $0x6c] sm:$0xf]
        %v3220 = vld [vmem:[%s2873 + $0x70] sm:$0xf]
        %v3221 = vld [vmem:[%s2873 + $0x74] sm:$0x1]
        %v3222 = vld [vmem:[%s2873 + $0x78] sm:$0xf]
        %v3223 = vld [vmem:[%s2873 + $0x7c] sm:$0xf]
        %v3224 = vld [vmem:[%s2873 + $0x80] sm:$0x1]
        %v3225 = vld [vmem:[%s2873 + $0x84] sm:$0xf]
        %v3226 = vld [vmem:[%s2873 + $0x88] sm:$0xf]
        %v3227 = vld [vmem:[%s2873 + $0x8c] sm:$0x1]
        %v3228 = vld [vmem:[%s2873 + $0x90] sm:$0xf]
        %v3229 = vld [vmem:[%s2873 + $0x94] sm:$0xf]
        %v3230 = vld [vmem:[%s2873 + $0x98] sm:$0x1]
        %v3231 = vld [vmem:[%s2873 + $0x9c] sm:$0xf]
        %v3232 = vld [vmem:[%s2873 + $0xa0] sm:$0xf]
        %v3233 = vld [vmem:[%s2873 + $0xa4] sm:$0x1]
        %v3235 = vshrl.u32 %v3192, 16
        %v3237 = vrot.slane %v3235, 4
        %v3238 = vshll.u32 %v3192, 16
        %v3240 = vrot.slane %v3238, 5
        %v3241 = vor.u32 %v3237, %v3240
        %v3242 = vrot.slane %v3241, 4
        %v3244 = vshll.u32 %v3193, 16
        %v3246 = vrot.slane %v3244, 5
        %v3247 = vsel %vm260, %v3242, %v3246
        %v3248 = vshrl.u32 %v3193, 16
        %v3250 = vrot.slane %v3248, 4
        %v3251 = vor.u32 %v3250, %v3246
        %v3252 = vrot.slane %v3251, 4
        %v3254 = vshll.u32 %v3194, 16
        %v3256 = vrot.slane %v3254, 5
        %v3257 = vsel %vm260, %v3252, %v3256
        %v3259 = vshrl.u32 %v3195, 16
        %v3261 = vrot.slane %v3259, 4
        %v3262 = vshll.u32 %v3195, 16
        %v3264 = vrot.slane %v3262, 5
        %v3265 = vor.u32 %v3261, %v3264
        %v3266 = vrot.slane %v3265, 4
        %v3268 = vshll.u32 %v3196, 16
        %v3270 = vrot.slane %v3268, 5
        %v3271 = vsel %vm260, %v3266, %v3270
        %v3272 = vshrl.u32 %v3196, 16
        %v3274 = vrot.slane %v3272, 4
        %v3275 = vor.u32 %v3274, %v3270
        %v3276 = vrot.slane %v3275, 4
        %v3278 = vshll.u32 %v3197, 16
        %v3280 = vrot.slane %v3278, 5
        %v3281 = vsel %vm260, %v3276, %v3280
        %v3283 = vshrl.u32 %v3198, 16
        %v3285 = vrot.slane %v3283, 4
        %v3286 = vshll.u32 %v3198, 16
        %v3288 = vrot.slane %v3286, 5
        %v3289 = vor.u32 %v3285, %v3288
        %v3290 = vrot.slane %v3289, 4
        %v3292 = vshll.u32 %v3199, 16
        %v3294 = vrot.slane %v3292, 5
        %v3295 = vsel %vm260, %v3290, %v3294
        %v3296 = vshrl.u32 %v3199, 16
        %v3298 = vrot.slane %v3296, 4
        %v3299 = vor.u32 %v3298, %v3294
        %v3300 = vrot.slane %v3299, 4
        %v3302 = vshll.u32 %v3200, 16
        %v3304 = vrot.slane %v3302, 5
        %v3305 = vsel %vm260, %v3300, %v3304
        %v3307 = vshrl.u32 %v3201, 16
        %v3309 = vrot.slane %v3307, 4
        %v3310 = vshll.u32 %v3201, 16
        %v3312 = vrot.slane %v3310, 5
        %v3313 = vor.u32 %v3309, %v3312
        %v3314 = vrot.slane %v3313, 4
        %v3316 = vshll.u32 %v3202, 16
        %v3318 = vrot.slane %v3316, 5
        %v3319 = vsel %vm260, %v3314, %v3318
        %v3320 = vshrl.u32 %v3202, 16
        %v3322 = vrot.slane %v3320, 4
        %v3323 = vor.u32 %v3322, %v3318
        %v3324 = vrot.slane %v3323, 4
        %v3326 = vshll.u32 %v3203, 16
        %v3328 = vrot.slane %v3326, 5
        %v3329 = vsel %vm260, %v3324, %v3328
        %v3331 = vshrl.u32 %v3204, 16
        %v3333 = vrot.slane %v3331, 4
        %v3334 = vshll.u32 %v3204, 16
        %v3336 = vrot.slane %v3334, 5
        %v3337 = vor.u32 %v3333, %v3336
        %v3338 = vrot.slane %v3337, 4
        %v3340 = vshll.u32 %v3205, 16
        %v3342 = vrot.slane %v3340, 5
        %v3343 = vsel %vm260, %v3338, %v3342
        %v3344 = vshrl.u32 %v3205, 16
        %v3346 = vrot.slane %v3344, 4
        %v3347 = vor.u32 %v3346, %v3342
        %v3348 = vrot.slane %v3347, 4
        %v3350 = vshll.u32 %v3206, 16
        %v3352 = vrot.slane %v3350, 5
        %v3353 = vsel %vm260, %v3348, %v3352
        %v3355 = vshrl.u32 %v3207, 16
        %v3357 = vrot.slane %v3355, 4
        %v3358 = vshll.u32 %v3207, 16
        %v3360 = vrot.slane %v3358, 5
        %v3361 = vor.u32 %v3357, %v3360
        %v3362 = vrot.slane %v3361, 4
        %v3364 = vshll.u32 %v3208, 16
        %v3366 = vrot.slane %v3364, 5
        %v3367 = vsel %vm260, %v3362, %v3366
        %v3368 = vshrl.u32 %v3208, 16
        %v3370 = vrot.slane %v3368, 4
        %v3371 = vor.u32 %v3370, %v3366
        %v3372 = vrot.slane %v3371, 4
        %v3374 = vshll.u32 %v3209, 16
        %v3376 = vrot.slane %v3374, 5
        %v3377 = vsel %vm260, %v3372, %v3376
        %v3379 = vshrl.u32 %v3210, 16
        %v3381 = vrot.slane %v3379, 4
        %v3382 = vshll.u32 %v3210, 16
        %v3384 = vrot.slane %v3382, 5
        %v3385 = vor.u32 %v3381, %v3384
        %v3386 = vrot.slane %v3385, 4
        %v3388 = vshll.u32 %v3211, 16
        %v3390 = vrot.slane %v3388, 5
        %v3391 = vsel %vm260, %v3386, %v3390
        %v3392 = vshrl.u32 %v3211, 16
        %v3394 = vrot.slane %v3392, 4
        %v3395 = vor.u32 %v3394, %v3390
        %v3396 = vrot.slane %v3395, 4
        %v3398 = vshll.u32 %v3212, 16
        %v3400 = vrot.slane %v3398, 5
        %v3401 = vsel %vm260, %v3396, %v3400
        %v3403 = vshrl.u32 %v3213, 16
        %v3405 = vrot.slane %v3403, 4
        %v3406 = vshll.u32 %v3213, 16
        %v3408 = vrot.slane %v3406, 5
        %v3409 = vor.u32 %v3405, %v3408
        %v3410 = vrot.slane %v3409, 4
        %v3412 = vshll.u32 %v3214, 16
        %v3414 = vrot.slane %v3412, 5
        %v3415 = vsel %vm260, %v3410, %v3414
        %v3416 = vshrl.u32 %v3214, 16
        %v3418 = vrot.slane %v3416, 4
        %v3419 = vor.u32 %v3418, %v3414
        %v3420 = vrot.slane %v3419, 4
        %v3422 = vshll.u32 %v3215, 16
        %v3424 = vrot.slane %v3422, 5
        %v3425 = vsel %vm260, %v3420, %v3424
        %v3427 = vshrl.u32 %v3216, 16
        %v3429 = vrot.slane %v3427, 4
        %v3430 = vshll.u32 %v3216, 16
        %v3432 = vrot.slane %v3430, 5
        %v3433 = vor.u32 %v3429, %v3432
        %v3434 = vrot.slane %v3433, 4
        %v3436 = vshll.u32 %v3217, 16
        %v3438 = vrot.slane %v3436, 5
        %v3439 = vsel %vm260, %v3434, %v3438
        %v3440 = vshrl.u32 %v3217, 16
        %v3442 = vrot.slane %v3440, 4
        %v3443 = vor.u32 %v3442, %v3438
        %v3444 = vrot.slane %v3443, 4
        %v3446 = vshll.u32 %v3218, 16
        %v3448 = vrot.slane %v3446, 5
        %v3449 = vsel %vm260, %v3444, %v3448
        %v3451 = vshrl.u32 %v3219, 16
        %v3453 = vrot.slane %v3451, 4
        %v3454 = vshll.u32 %v3219, 16
        %v3456 = vrot.slane %v3454, 5
        %v3457 = vor.u32 %v3453, %v3456
        %v3458 = vrot.slane %v3457, 4
        %v3460 = vshll.u32 %v3220, 16
        %v3462 = vrot.slane %v3460, 5
        %v3463 = vsel %vm260, %v3458, %v3462
        %v3464 = vshrl.u32 %v3220, 16
        %v3466 = vrot.slane %v3464, 4
        %v3467 = vor.u32 %v3466, %v3462
        %v3468 = vrot.slane %v3467, 4
        %v3470 = vshll.u32 %v3221, 16
        %v3472 = vrot.slane %v3470, 5
        %v3473 = vsel %vm260, %v3468, %v3472
        %v3475 = vshrl.u32 %v3222, 16
        %v3477 = vrot.slane %v3475, 4
        %v3478 = vshll.u32 %v3222, 16
        %v3480 = vrot.slane %v3478, 5
        %v3481 = vor.u32 %v3477, %v3480
        %v3482 = vrot.slane %v3481, 4
        %v3484 = vshll.u32 %v3223, 16
        %v3486 = vrot.slane %v3484, 5
        %v3487 = vsel %vm260, %v3482, %v3486
        %v3488 = vshrl.u32 %v3223, 16
        %v3490 = vrot.slane %v3488, 4
        %v3491 = vor.u32 %v3490, %v3486
        %v3492 = vrot.slane %v3491, 4
        %v3494 = vshll.u32 %v3224, 16
        %v3496 = vrot.slane %v3494, 5
        %v3497 = vsel %vm260, %v3492, %v3496
        %v3499 = vshrl.u32 %v3225, 16
        %v3501 = vrot.slane %v3499, 4
        %v3502 = vshll.u32 %v3225, 16
        %v3504 = vrot.slane %v3502, 5
        %v3505 = vor.u32 %v3501, %v3504
        %v3506 = vrot.slane %v3505, 4
        %v3508 = vshll.u32 %v3226, 16
        %v3510 = vrot.slane %v3508, 5
        %v3511 = vsel %vm260, %v3506, %v3510
        %v3512 = vshrl.u32 %v3226, 16
        %v3514 = vrot.slane %v3512, 4
        %v3515 = vor.u32 %v3514, %v3510
        %v3516 = vrot.slane %v3515, 4
        %v3518 = vshll.u32 %v3227, 16
        %v3520 = vrot.slane %v3518, 5
        %v3521 = vsel %vm260, %v3516, %v3520
        %v3523 = vshrl.u32 %v3228, 16
        %v3525 = vrot.slane %v3523, 4
        %v3526 = vshll.u32 %v3228, 16
        %v3528 = vrot.slane %v3526, 5
        %v3529 = vor.u32 %v3525, %v3528
        %v3530 = vrot.slane %v3529, 4
        %v3532 = vshll.u32 %v3229, 16
        %v3534 = vrot.slane %v3532, 5
        %v3535 = vsel %vm260, %v3530, %v3534
        %v3536 = vshrl.u32 %v3229, 16
        %v3538 = vrot.slane %v3536, 4
        %v3539 = vor.u32 %v3538, %v3534
        %v3540 = vrot.slane %v3539, 4
        %v3542 = vshll.u32 %v3230, 16
        %v3544 = vrot.slane %v3542, 5
        %v3545 = vsel %vm260, %v3540, %v3544
        %v3547 = vshrl.u32 %v3231, 16
        %v3549 = vrot.slane %v3547, 4
        %v3550 = vshll.u32 %v3231, 16
        %v3552 = vrot.slane %v3550, 5
        %v3553 = vor.u32 %v3549, %v3552
        %v3554 = vrot.slane %v3553, 4
        %v3556 = vshll.u32 %v3232, 16
        %v3558 = vrot.slane %v3556, 5
        %v3559 = vsel %vm260, %v3554, %v3558
        %v3560 = vshrl.u32 %v3232, 16
        %v3562 = vrot.slane %v3560, 4
        %v3563 = vor.u32 %v3562, %v3558
        %v3564 = vrot.slane %v3563, 4
        %v3566 = vshll.u32 %v3233, 16
        %v3568 = vrot.slane %v3566, 5
        %v3569 = vsel %vm260, %v3564, %v3568
        %s3570 = scalar_lea.vmem %s210, 14
        %v3571 = vld [vmem:[%s3570] sm:$0x3]
        %v3572 = vunpack.c.l.b16 %v3247
        %v3573 = vunpack.c.l.b16 %v3257
        %v3574 = vunpack.c.l.b16 %v3271
        %v3575 = vunpack.c.l.b16 %v3281
        %v3576 = vunpack.c.l.b16 %v3295
        %v3577 = vunpack.c.l.b16 %v3305
        %v3578 = vunpack.c.l.b16 %v3319
        %v3579 = vunpack.c.l.b16 %v3329
        %v3580 = vunpack.c.l.b16 %v3343
        %v3581 = vunpack.c.l.b16 %v3353
        %v3582 = vunpack.c.l.b16 %v3367
        %v3583 = vunpack.c.l.b16 %v3377
        %v3584 = vunpack.c.l.b16 %v3391
        %v3585 = vunpack.c.l.b16 %v3401
        %v3586 = vunpack.c.l.b16 %v3415
        %v3587 = vunpack.c.l.b16 %v3425
        %v3588 = vunpack.c.l.b16 %v3439
        %v3589 = vunpack.c.l.b16 %v3449
        %v3590 = vunpack.c.l.b16 %v3463
        %v3591 = vunpack.c.l.b16 %v3473
        %v3592 = vunpack.c.l.b16 %v3487
        %v3593 = vunpack.c.l.b16 %v3497
        %v3594 = vunpack.c.l.b16 %v3511
        %v3595 = vunpack.c.l.b16 %v3521
        %v3596 = vunpack.c.l.b16 %v3535
        %v3597 = vunpack.c.l.b16 %v3545
        %v3598 = vunpack.c.l.b16 %v3559
        %v3599 = vunpack.c.l.b16 %v3569
        %v3600 = vpack.c.b16 %v3573, %v3572
        %v3601 = vpack.c.b16 %v3575, %v3574
        %v3602 = vpack.c.b16 %v3577, %v3576
        %v3603 = vpack.c.b16 %v3579, %v3578
        %v3604 = vpack.c.b16 %v3581, %v3580
        %v3605 = vpack.c.b16 %v3583, %v3582
        %v3606 = vpack.c.b16 %v3585, %v3584
        %v3607 = vpack.c.b16 %v3587, %v3586
        %v3608 = vpack.c.b16 %v3589, %v3588
        %v3609 = vpack.c.b16 %v3591, %v3590
        %v3610 = vpack.c.b16 %v3593, %v3592
        %v3611 = vpack.c.b16 %v3595, %v3594
        %v3612 = vpack.c.b16 %v3597, %v3596
        %v3613 = vpack.c.b16 %v3599, %v3598
        %v3615 = vsel %vm641, %v3600, 0
        %v3618 = vsel %vm641, %v3601, 0
        %v3621 = vsel %vm641, %v3602, 0
        %v3624 = vsel %vm641, %v3603, 0
        %v3627 = vsel %vm641, %v3604, 0
        %v3630 = vsel %vm641, %v3605, 0
        %v3633 = vsel %vm641, %v3606, 0
        %v3636 = vsel %vm641, %v3607, 0
        %v3639 = vsel %vm641, %v3608, 0
        %v3642 = vsel %vm641, %v3609, 0
        %v3645 = vsel %vm641, %v3610, 0
        %v3648 = vsel %vm641, %v3611, 0
        %v3651 = vsel %vm641, %v3612, 0
        %v3654 = vsel %vm641, %v3613, 0
        %v3657 = vsel %vm684, %v3571, 0
        %3659 = vmatprep.subr.bf16.mxu0 0
        %3660 = vmatpush1.bf16.msra.mxu0 %v3657
        %3661 = vmatprep.subr.bf16.mxu0 0
        %3662 = vmatpush1.bf16.msra.mxu0 0
        %3663 = vmatprep.subr.bf16.mxu0 0
        %3664 = vmatpush1.bf16.msra.mxu0 0
        %3665 = vmatprep.subr.bf16.mxu0 0
        %3666 = vmatpush1.bf16.msra.mxu0 0
        %3667 = vmatprep.subr.bf16.mxu0 0
        %3668 = vmatpush1.bf16.msra.mxu0 0
        %3669 = vmatprep.subr.bf16.mxu0 0
        %3670 = vmatpush1.bf16.msra.mxu0 0
        %3671 = vmatprep.subr.bf16.mxu0 0
        %3672 = vmatpush1.bf16.msra.mxu0 0
        %3673 = vmatprep.subr.bf16.mxu0 0
        %3674 = vmatpush1.bf16.msra.mxu0 0
        %3675 = vmatprep.subr.bf16.mxu0 0
        %3676 = vmatpush1.bf16.msra.mxu0 0
        %3677 = vmatprep.subr.bf16.mxu0 0
        %3678 = vmatpush1.bf16.msra.mxu0 0
        %3679 = vmatprep.subr.bf16.mxu0 0
        %3680 = vmatpush1.bf16.msra.mxu0 0
        %3681 = vmatprep.subr.bf16.mxu0 0
        %3682 = vmatpush1.bf16.msra.mxu0 0
        %3683 = vmatprep.subr.bf16.mxu0 0
        %3684 = vmatpush1.bf16.msra.mxu0 0
        %3685 = vmatprep.subr.bf16.mxu0 0
        %3686 = vmatpush1.bf16.msra.mxu0 0
        %3687 = vmatprep.subr.bf16.mxu0 0
        %3688 = vmatpush1.bf16.msra.mxu0 0
        %3689 = vmatprep.subr.bf16.mxu0 0
        %3690 = vmatpush1.bf16.msra.mxu0 0
        %3691 = vmatprep.mubr.bf16.mxu0 0
        %3692 = vmatmul.mubr.bf16.gmra.mrb[0].mxu0 %v3615
        %v3693 = vpop.f32.mrb[0].mxu0
        %v3694 = vadd.f32 0.0, %v3693
        %v3695 = vpop.f32.mrb[0].mxu0
        %v3696 = vpop.f32.mrb[0].mxu0
        %v3697 = vadd.f32 0.0, %v3696
        %v3698 = vpop.f32.mrb[0].mxu0
        %3699 = vmatprep.mubr.bf16.mxu0 0
        %3700 = vmatmul.mubr.bf16.gmra.mrb[0].mxu0 %v3618
        %v3701 = vpop.f32.mrb[0].mxu0
        %v3702 = vadd.f32 0.0, %v3701
        %v3703 = vpop.f32.mrb[0].mxu0
        %v3704 = vpop.f32.mrb[0].mxu0
        %v3705 = vadd.f32 0.0, %v3704
        %v3706 = vpop.f32.mrb[0].mxu0
        %3707 = vmatprep.mubr.bf16.mxu0 0
        %3708 = vmatmul.mubr.bf16.gmra.mrb[0].mxu0 %v3621
        %v3709 = vpop.f32.mrb[0].mxu0
        %v3710 = vadd.f32 0.0, %v3709
        %v3711 = vpop.f32.mrb[0].mxu0
        %v3712 = vpop.f32.mrb[0].mxu0
        %v3713 = vadd.f32 0.0, %v3712
        %v3714 = vpop.f32.mrb[0].mxu0
        %3715 = vmatprep.mubr.bf16.mxu0 0
        %3716 = vmatmul.mubr.bf16.gmra.mrb[0].mxu0 %v3624
        %v3717 = vpop.f32.mrb[0].mxu0
        %v3718 = vadd.f32 0.0, %v3717
        %v3719 = vpop.f32.mrb[0].mxu0
        %v3720 = vpop.f32.mrb[0].mxu0
        %v3721 = vadd.f32 0.0, %v3720
        %v3722 = vpop.f32.mrb[0].mxu0
        %3723 = vmatprep.mubr.bf16.mxu0 0
        %3724 = vmatmul.mubr.bf16.gmra.mrb[0].mxu0 %v3627
        %v3725 = vpop.f32.mrb[0].mxu0
        %v3726 = vadd.f32 0.0, %v3725
        %v3727 = vpop.f32.mrb[0].mxu0
        %v3728 = vpop.f32.mrb[0].mxu0
        %v3729 = vadd.f32 0.0, %v3728
        %v3730 = vpop.f32.mrb[0].mxu0
        %3731 = vmatprep.mubr.bf16.mxu0 0
        %3732 = vmatmul.mubr.bf16.gmra.mrb[0].mxu0 %v3630
        %v3733 = vpop.f32.mrb[0].mxu0
        %v3734 = vadd.f32 0.0, %v3733
        %v3735 = vpop.f32.mrb[0].mxu0
        %v3736 = vpop.f32.mrb[0].mxu0
        %v3737 = vadd.f32 0.0, %v3736
        %v3738 = vpop.f32.mrb[0].mxu0
        %3739 = vmatprep.mubr.bf16.mxu0 0
        %3740 = vmatmul.mubr.bf16.gmra.mrb[0].mxu0 %v3633
        %v3741 = vpop.f32.mrb[0].mxu0
        %v3742 = vadd.f32 0.0, %v3741
        %v3743 = vpop.f32.mrb[0].mxu0
        %v3744 = vpop.f32.mrb[0].mxu0
        %v3745 = vadd.f32 0.0, %v3744
        %v3746 = vpop.f32.mrb[0].mxu0
        %3747 = vmatprep.mubr.bf16.mxu0 0
        %3748 = vmatmul.mubr.bf16.gmra.mrb[0].mxu0 %v3636
        %v3749 = vpop.f32.mrb[0].mxu0
        %v3750 = vadd.f32 0.0, %v3749
        %v3751 = vpop.f32.mrb[0].mxu0
        %v3752 = vpop.f32.mrb[0].mxu0
        %v3753 = vadd.f32 0.0, %v3752
        %v3754 = vpop.f32.mrb[0].mxu0
        %3755 = vmatprep.mubr.bf16.mxu0 0
        %3756 = vmatmul.mubr.bf16.gmra.mrb[0].mxu0 %v3639
        %v3757 = vpop.f32.mrb[0].mxu0
        %v3758 = vadd.f32 0.0, %v3757
        %v3759 = vpop.f32.mrb[0].mxu0
        %v3760 = vpop.f32.mrb[0].mxu0
        %v3761 = vadd.f32 0.0, %v3760
        %v3762 = vpop.f32.mrb[0].mxu0
        %3763 = vmatprep.mubr.bf16.mxu0 0
        %3764 = vmatmul.mubr.bf16.gmra.mrb[0].mxu0 %v3642
        %v3765 = vpop.f32.mrb[0].mxu0
        %v3766 = vadd.f32 0.0, %v3765
        %v3767 = vpop.f32.mrb[0].mxu0
        %v3768 = vpop.f32.mrb[0].mxu0
        %v3769 = vadd.f32 0.0, %v3768
        %v3770 = vpop.f32.mrb[0].mxu0
        %3771 = vmatprep.mubr.bf16.mxu0 0
        %3772 = vmatmul.mubr.bf16.gmra.mrb[0].mxu0 %v3645
        %v3773 = vpop.f32.mrb[0].mxu0
        %v3774 = vadd.f32 0.0, %v3773
        %v3775 = vpop.f32.mrb[0].mxu0
        %v3776 = vpop.f32.mrb[0].mxu0
        %v3777 = vadd.f32 0.0, %v3776
        %v3778 = vpop.f32.mrb[0].mxu0
        %3779 = vmatprep.mubr.bf16.mxu0 0
        %3780 = vmatmul.mubr.bf16.gmra.mrb[0].mxu0 %v3648
        %v3781 = vpop.f32.mrb[0].mxu0
        %v3782 = vadd.f32 0.0, %v3781
        %v3783 = vpop.f32.mrb[0].mxu0
        %v3784 = vpop.f32.mrb[0].mxu0
        %v3785 = vadd.f32 0.0, %v3784
        %v3786 = vpop.f32.mrb[0].mxu0
        %3787 = vmatprep.mubr.bf16.mxu0 0
        %3788 = vmatmul.mubr.bf16.gmra.mrb[0].mxu0 %v3651
        %v3789 = vpop.f32.mrb[0].mxu0
        %v3790 = vadd.f32 0.0, %v3789
        %v3791 = vpop.f32.mrb[0].mxu0
        %v3792 = vpop.f32.mrb[0].mxu0
        %v3793 = vadd.f32 0.0, %v3792
        %v3794 = vpop.f32.mrb[0].mxu0
        %3795 = vmatprep.mubr.bf16.mxu0 0
        %3796 = vmatmul.mubr.bf16.gmra.mrb[0].mxu0 %v3654
        %v3797 = vpop.f32.mrb[0].mxu0
        %v3798 = vadd.f32 0.0, %v3797
        %v3799 = vpop.f32.mrb[0].mxu0
        %v3800 = vpop.f32.mrb[0].mxu0
        %v3801 = vadd.f32 0.0, %v3800
        %v3802 = vpop.f32.mrb[0].mxu0
        %3803 = vdwg.mxu0
        %v3804 = vadd.f32 %v3164, %v3694
        %v3805 = vadd.f32 %v3165, %v3697
        %v3806 = vadd.f32 %v3166, %v3702
        %v3807 = vadd.f32 %v3167, %v3705
        %v3808 = vadd.f32 %v3168, %v3710
        %v3809 = vadd.f32 %v3169, %v3713
        %v3810 = vadd.f32 %v3170, %v3718
        %v3811 = vadd.f32 %v3171, %v3721
        %v3812 = vadd.f32 %v3172, %v3726
        %v3813 = vadd.f32 %v3173, %v3729
        %v3814 = vadd.f32 %v3174, %v3734
        %v3815 = vadd.f32 %v3175, %v3737
        %v3816 = vadd.f32 %v3176, %v3742
        %v3817 = vadd.f32 %v3177, %v3745
        %v3818 = vadd.f32 %v3178, %v3750
        %v3819 = vadd.f32 %v3179, %v3753
        %v3820 = vadd.f32 %v3180, %v3758
        %v3821 = vadd.f32 %v3181, %v3761
        %v3822 = vadd.f32 %v3182, %v3766
        %v3823 = vadd.f32 %v3183, %v3769
        %v3824 = vadd.f32 %v3184, %v3774
        %v3825 = vadd.f32 %v3185, %v3777
        %v3826 = vadd.f32 %v3186, %v3782
        %v3827 = vadd.f32 %v3187, %v3785
        %v3828 = vadd.f32 %v3188, %v3790
        %v3829 = vadd.f32 %v3189, %v3793
        %v3830 = vadd.f32 %v3190, %v3798
        %v3831 = vadd.f32 %v3191, %v3801
        %v3832 = vld [vmem:[%s2873] sm:$0xe]
        %v3833 = vld [vmem:[%s2873 + $0xc] sm:$0xe]
        %v3834 = vld [vmem:[%s2873 + $0x18] sm:$0xe]
        %v3835 = vld [vmem:[%s2873 + $0x24] sm:$0xe]
        %v3836 = vld [vmem:[%s2873 + $0x30] sm:$0xe]
        %v3837 = vld [vmem:[%s2873 + $0x3c] sm:$0xe]
        %v3838 = vld [vmem:[%s2873 + $0x48] sm:$0xe]
        %v3839 = vld [vmem:[%s2873 + $0x54] sm:$0xe]
        %v3840 = vld [vmem:[%s2873 + $0x60] sm:$0xe]
        %v3841 = vld [vmem:[%s2873 + $0x6c] sm:$0xe]
        %v3842 = vld [vmem:[%s2873 + $0x78] sm:$0xe]
        %v3843 = vld [vmem:[%s2873 + $0x84] sm:$0xe]
        %v3844 = vld [vmem:[%s2873 + $0x90] sm:$0xe]
        %v3845 = vld [vmem:[%s2873 + $0x9c] sm:$0xe]
        %v3888 = vrot.slane %v3832, 5
        %v3889 = vrot.slane %v3888, 4
        %v3890 = vrot.slane %v3193, 5
        %v3891 = vsel %vm1137, %v3889, %v3890
        %v3892 = vrot.slane %v3890, 4
        %v3893 = vrot.slane %v3194, 5
        %v3894 = vsel %vm1137, %v3892, %v3893
        %v3895 = vrot.slane %v3833, 5
        %v3896 = vrot.slane %v3895, 4
        %v3897 = vrot.slane %v3196, 5
        %v3898 = vsel %vm1137, %v3896, %v3897
        %v3899 = vrot.slane %v3897, 4
        %v3900 = vrot.slane %v3197, 5
        %v3901 = vsel %vm1137, %v3899, %v3900
        %v3902 = vrot.slane %v3834, 5
        %v3903 = vrot.slane %v3902, 4
        %v3904 = vrot.slane %v3199, 5
        %v3905 = vsel %vm1137, %v3903, %v3904
        %v3906 = vrot.slane %v3904, 4
        %v3907 = vrot.slane %v3200, 5
        %v3908 = vsel %vm1137, %v3906, %v3907
        %v3909 = vrot.slane %v3835, 5
        %v3910 = vrot.slane %v3909, 4
        %v3911 = vrot.slane %v3202, 5
        %v3912 = vsel %vm1137, %v3910, %v3911
        %v3913 = vrot.slane %v3911, 4
        %v3914 = vrot.slane %v3203, 5
        %v3915 = vsel %vm1137, %v3913, %v3914
        %v3916 = vrot.slane %v3836, 5
        %v3917 = vrot.slane %v3916, 4
        %v3918 = vrot.slane %v3205, 5
        %v3919 = vsel %vm1137, %v3917, %v3918
        %v3920 = vrot.slane %v3918, 4
        %v3921 = vrot.slane %v3206, 5
        %v3922 = vsel %vm1137, %v3920, %v3921
        %v3923 = vrot.slane %v3837, 5
        %v3924 = vrot.slane %v3923, 4
        %v3925 = vrot.slane %v3208, 5
        %v3926 = vsel %vm1137, %v3924, %v3925
        %v3927 = vrot.slane %v3925, 4
        %v3928 = vrot.slane %v3209, 5
        %v3929 = vsel %vm1137, %v3927, %v3928
        %v3930 = vrot.slane %v3838, 5
        %v3931 = vrot.slane %v3930, 4
        %v3932 = vrot.slane %v3211, 5
        %v3933 = vsel %vm1137, %v3931, %v3932
        %v3934 = vrot.slane %v3932, 4
        %v3935 = vrot.slane %v3212, 5
        %v3936 = vsel %vm1137, %v3934, %v3935
        %v3937 = vrot.slane %v3839, 5
        %v3938 = vrot.slane %v3937, 4
        %v3939 = vrot.slane %v3214, 5
        %v3940 = vsel %vm1137, %v3938, %v3939
        %v3941 = vrot.slane %v3939, 4
        %v3942 = vrot.slane %v3215, 5
        %v3943 = vsel %vm1137, %v3941, %v3942
        %v3944 = vrot.slane %v3840, 5
        %v3945 = vrot.slane %v3944, 4
        %v3946 = vrot.slane %v3217, 5
        %v3947 = vsel %vm1137, %v3945, %v3946
        %v3948 = vrot.slane %v3946, 4
        %v3949 = vrot.slane %v3218, 5
        %v3950 = vsel %vm1137, %v3948, %v3949
        %v3951 = vrot.slane %v3841, 5
        %v3952 = vrot.slane %v3951, 4
        %v3953 = vrot.slane %v3220, 5
        %v3954 = vsel %vm1137, %v3952, %v3953
        %v3955 = vrot.slane %v3953, 4
        %v3956 = vrot.slane %v3221, 5
        %v3957 = vsel %vm1137, %v3955, %v3956
        %v3958 = vrot.slane %v3842, 5
        %v3959 = vrot.slane %v3958, 4
        %v3960 = vrot.slane %v3223, 5
        %v3961 = vsel %vm1137, %v3959, %v3960
        %v3962 = vrot.slane %v3960, 4
        %v3963 = vrot.slane %v3224, 5
        %v3964 = vsel %vm1137, %v3962, %v3963
        %v3965 = vrot.slane %v3843, 5
        %v3966 = vrot.slane %v3965, 4
        %v3967 = vrot.slane %v3226, 5
        %v3968 = vsel %vm1137, %v3966, %v3967
        %v3969 = vrot.slane %v3967, 4
        %v3970 = vrot.slane %v3227, 5
        %v3971 = vsel %vm1137, %v3969, %v3970
        %v3972 = vrot.slane %v3844, 5
        %v3973 = vrot.slane %v3972, 4
        %v3974 = vrot.slane %v3229, 5
        %v3975 = vsel %vm1137, %v3973, %v3974
        %v3976 = vrot.slane %v3974, 4
        %v3977 = vrot.slane %v3230, 5
        %v3978 = vsel %vm1137, %v3976, %v3977
        %v3979 = vrot.slane %v3845, 5
        %v3980 = vrot.slane %v3979, 4
        %v3981 = vrot.slane %v3232, 5
        %v3982 = vsel %vm1137, %v3980, %v3981
        %v3983 = vrot.slane %v3981, 4
        %v3984 = vrot.slane %v3233, 5
        %v3985 = vsel %vm1137, %v3983, %v3984
        %s3986 = scalar_lea.vmem %s210, 16
        %v3987 = vld [vmem:[%s3986] sm:$0x3]
        %v3988 = vunpack.c.l.b16 %v3891
        %v3989 = vunpack.c.l.b16 %v3894
        %v3990 = vunpack.c.l.b16 %v3898
        %v3991 = vunpack.c.l.b16 %v3901
        %v3992 = vunpack.c.l.b16 %v3905
        %v3993 = vunpack.c.l.b16 %v3908
        %v3994 = vunpack.c.l.b16 %v3912
        %v3995 = vunpack.c.l.b16 %v3915
        %v3996 = vunpack.c.l.b16 %v3919
        %v3997 = vunpack.c.l.b16 %v3922
        %v3998 = vunpack.c.l.b16 %v3926
        %v3999 = vunpack.c.l.b16 %v3929
        %v4000 = vunpack.c.l.b16 %v3933
        %v4001 = vunpack.c.l.b16 %v3936
        %v4002 = vunpack.c.l.b16 %v3940
        %v4003 = vunpack.c.l.b16 %v3943
        %v4004 = vunpack.c.l.b16 %v3947
        %v4005 = vunpack.c.l.b16 %v3950
        %v4006 = vunpack.c.l.b16 %v3954
        %v4007 = vunpack.c.l.b16 %v3957
        %v4008 = vunpack.c.l.b16 %v3961
        %v4009 = vunpack.c.l.b16 %v3964
        %v4010 = vunpack.c.l.b16 %v3968
        %v4011 = vunpack.c.l.b16 %v3971
        %v4012 = vunpack.c.l.b16 %v3975
        %v4013 = vunpack.c.l.b16 %v3978
        %v4014 = vunpack.c.l.b16 %v3982
        %v4015 = vunpack.c.l.b16 %v3985
        %v4016 = vpack.c.b16 %v3989, %v3988
        %v4017 = vpack.c.b16 %v3991, %v3990
        %v4018 = vpack.c.b16 %v3993, %v3992
        %v4019 = vpack.c.b16 %v3995, %v3994
        %v4020 = vpack.c.b16 %v3997, %v3996
        %v4021 = vpack.c.b16 %v3999, %v3998
        %v4022 = vpack.c.b16 %v4001, %v4000
        %v4023 = vpack.c.b16 %v4003, %v4002
        %v4024 = vpack.c.b16 %v4005, %v4004
        %v4025 = vpack.c.b16 %v4007, %v4006
        %v4026 = vpack.c.b16 %v4009, %v4008
        %v4027 = vpack.c.b16 %v4011, %v4010
        %v4028 = vpack.c.b16 %v4013, %v4012
        %v4029 = vpack.c.b16 %v4015, %v4014
        %v4031 = vsel %vm641, %v4016, 0
        %v4034 = vsel %vm641, %v4017, 0
        %v4037 = vsel %vm641, %v4018, 0
        %v4040 = vsel %vm641, %v4019, 0
        %v4043 = vsel %vm641, %v4020, 0
        %v4046 = vsel %vm641, %v4021, 0
        %v4049 = vsel %vm641, %v4022, 0
        %v4052 = vsel %vm641, %v4023, 0
        %v4055 = vsel %vm641, %v4024, 0
        %v4058 = vsel %vm641, %v4025, 0
        %v4061 = vsel %vm641, %v4026, 0
        %v4064 = vsel %vm641, %v4027, 0
        %v4067 = vsel %vm641, %v4028, 0
        %v4070 = vsel %vm641, %v4029, 0
        %v4073 = vsel %vm684, %v3987, 0
        %4075 = vmatprep.subr.bf16.mxu0 0
        %4076 = vmatpush1.bf16.msra.mxu0 %v4073
        %4077 = vmatprep.subr.bf16.mxu0 0
        %4078 = vmatpush1.bf16.msra.mxu0 0
        %4079 = vmatprep.subr.bf16.mxu0 0
        %4080 = vmatpush1.bf16.msra.mxu0 0
        %4081 = vmatprep.subr.bf16.mxu0 0
        %4082 = vmatpush1.bf16.msra.mxu0 0
        %4083 = vmatprep.subr.bf16.mxu0 0
        %4084 = vmatpush1.bf16.msra.mxu0 0
        %4085 = vmatprep.subr.bf16.mxu0 0
        %4086 = vmatpush1.bf16.msra.mxu0 0
        %4087 = vmatprep.subr.bf16.mxu0 0
        %4088 = vmatpush1.bf16.msra.mxu0 0
        %4089 = vmatprep.subr.bf16.mxu0 0
        %4090 = vmatpush1.bf16.msra.mxu0 0
        %4091 = vmatprep.subr.bf16.mxu0 0
        %4092 = vmatpush1.bf16.msra.mxu0 0
        %4093 = vmatprep.subr.bf16.mxu0 0
        %4094 = vmatpush1.bf16.msra.mxu0 0
        %4095 = vmatprep.subr.bf16.mxu0 0
        %4096 = vmatpush1.bf16.msra.mxu0 0
        %4097 = vmatprep.subr.bf16.mxu0 0
        %4098 = vmatpush1.bf16.msra.mxu0 0
        %4099 = vmatprep.subr.bf16.mxu0 0
        %4100 = vmatpush1.bf16.msra.mxu0 0
        %4101 = vmatprep.subr.bf16.mxu0 0
        %4102 = vmatpush1.bf16.msra.mxu0 0
        %4103 = vmatprep.subr.bf16.mxu0 0
        %4104 = vmatpush1.bf16.msra.mxu0 0
        %4105 = vmatprep.subr.bf16.mxu0 0
        %4106 = vmatpush1.bf16.msra.mxu0 0
        %4107 = vmatprep.mubr.bf16.mxu0 0
        %4108 = vmatmul.mubr.bf16.gmra.mrb[0].mxu0 %v4031
        %v4109 = vpop.f32.mrb[0].mxu0
        %v4110 = vadd.f32 0.0, %v4109
        %v4111 = vpop.f32.mrb[0].mxu0
        %v4112 = vpop.f32.mrb[0].mxu0
        %v4113 = vadd.f32 0.0, %v4112
        %v4114 = vpop.f32.mrb[0].mxu0
        %4115 = vmatprep.mubr.bf16.mxu0 0
        %4116 = vmatmul.mubr.bf16.gmra.mrb[0].mxu0 %v4034
        %v4117 = vpop.f32.mrb[0].mxu0
        %v4118 = vadd.f32 0.0, %v4117
        %v4119 = vpop.f32.mrb[0].mxu0
        %v4120 = vpop.f32.mrb[0].mxu0
        %v4121 = vadd.f32 0.0, %v4120
        %v4122 = vpop.f32.mrb[0].mxu0
        %4123 = vmatprep.mubr.bf16.mxu0 0
        %4124 = vmatmul.mubr.bf16.gmra.mrb[0].mxu0 %v4037
        %v4125 = vpop.f32.mrb[0].mxu0
        %v4126 = vadd.f32 0.0, %v4125
        %v4127 = vpop.f32.mrb[0].mxu0
        %v4128 = vpop.f32.mrb[0].mxu0
        %v4129 = vadd.f32 0.0, %v4128
        %v4130 = vpop.f32.mrb[0].mxu0
        %4131 = vmatprep.mubr.bf16.mxu0 0
        %4132 = vmatmul.mubr.bf16.gmra.mrb[0].mxu0 %v4040
        %v4133 = vpop.f32.mrb[0].mxu0
        %v4134 = vadd.f32 0.0, %v4133
        %v4135 = vpop.f32.mrb[0].mxu0
        %v4136 = vpop.f32.mrb[0].mxu0
        %v4137 = vadd.f32 0.0, %v4136
        %v4138 = vpop.f32.mrb[0].mxu0
        %4139 = vmatprep.mubr.bf16.mxu0 0
        %4140 = vmatmul.mubr.bf16.gmra.mrb[0].mxu0 %v4043
        %v4141 = vpop.f32.mrb[0].mxu0
        %v4142 = vadd.f32 0.0, %v4141
        %v4143 = vpop.f32.mrb[0].mxu0
        %v4144 = vpop.f32.mrb[0].mxu0
        %v4145 = vadd.f32 0.0, %v4144
        %v4146 = vpop.f32.mrb[0].mxu0
        %4147 = vmatprep.mubr.bf16.mxu0 0
        %4148 = vmatmul.mubr.bf16.gmra.mrb[0].mxu0 %v4046
        %v4149 = vpop.f32.mrb[0].mxu0
        %v4150 = vadd.f32 0.0, %v4149
        %v4151 = vpop.f32.mrb[0].mxu0
        %v4152 = vpop.f32.mrb[0].mxu0
        %v4153 = vadd.f32 0.0, %v4152
        %v4154 = vpop.f32.mrb[0].mxu0
        %4155 = vmatprep.mubr.bf16.mxu0 0
        %4156 = vmatmul.mubr.bf16.gmra.mrb[0].mxu0 %v4049
        %v4157 = vpop.f32.mrb[0].mxu0
        %v4158 = vadd.f32 0.0, %v4157
        %v4159 = vpop.f32.mrb[0].mxu0
        %v4160 = vpop.f32.mrb[0].mxu0
        %v4161 = vadd.f32 0.0, %v4160
        %v4162 = vpop.f32.mrb[0].mxu0
        %4163 = vmatprep.mubr.bf16.mxu0 0
        %4164 = vmatmul.mubr.bf16.gmra.mrb[0].mxu0 %v4052
        %v4165 = vpop.f32.mrb[0].mxu0
        %v4166 = vadd.f32 0.0, %v4165
        %v4167 = vpop.f32.mrb[0].mxu0
        %v4168 = vpop.f32.mrb[0].mxu0
        %v4169 = vadd.f32 0.0, %v4168
        %v4170 = vpop.f32.mrb[0].mxu0
        %4171 = vmatprep.mubr.bf16.mxu0 0
        %4172 = vmatmul.mubr.bf16.gmra.mrb[0].mxu0 %v4055
        %v4173 = vpop.f32.mrb[0].mxu0
        %v4174 = vadd.f32 0.0, %v4173
        %v4175 = vpop.f32.mrb[0].mxu0
        %v4176 = vpop.f32.mrb[0].mxu0
        %v4177 = vadd.f32 0.0, %v4176
        %v4178 = vpop.f32.mrb[0].mxu0
        %4179 = vmatprep.mubr.bf16.mxu0 0
        %4180 = vmatmul.mubr.bf16.gmra.mrb[0].mxu0 %v4058
        %v4181 = vpop.f32.mrb[0].mxu0
        %v4182 = vadd.f32 0.0, %v4181
        %v4183 = vpop.f32.mrb[0].mxu0
        %v4184 = vpop.f32.mrb[0].mxu0
        %v4185 = vadd.f32 0.0, %v4184
        %v4186 = vpop.f32.mrb[0].mxu0
        %4187 = vmatprep.mubr.bf16.mxu0 0
        %4188 = vmatmul.mubr.bf16.gmra.mrb[0].mxu0 %v4061
        %v4189 = vpop.f32.mrb[0].mxu0
        %v4190 = vadd.f32 0.0, %v4189
        %v4191 = vpop.f32.mrb[0].mxu0
        %v4192 = vpop.f32.mrb[0].mxu0
        %v4193 = vadd.f32 0.0, %v4192
        %v4194 = vpop.f32.mrb[0].mxu0
        %4195 = vmatprep.mubr.bf16.mxu0 0
        %4196 = vmatmul.mubr.bf16.gmra.mrb[0].mxu0 %v4064
        %v4197 = vpop.f32.mrb[0].mxu0
        %v4198 = vadd.f32 0.0, %v4197
        %v4199 = vpop.f32.mrb[0].mxu0
        %v4200 = vpop.f32.mrb[0].mxu0
        %v4201 = vadd.f32 0.0, %v4200
        %v4202 = vpop.f32.mrb[0].mxu0
        %4203 = vmatprep.mubr.bf16.mxu0 0
        %4204 = vmatmul.mubr.bf16.gmra.mrb[0].mxu0 %v4067
        %v4205 = vpop.f32.mrb[0].mxu0
        %v4206 = vadd.f32 0.0, %v4205
        %v4207 = vpop.f32.mrb[0].mxu0
        %v4208 = vpop.f32.mrb[0].mxu0
        %v4209 = vadd.f32 0.0, %v4208
        %v4210 = vpop.f32.mrb[0].mxu0
        %4211 = vmatprep.mubr.bf16.mxu0 0
        %4212 = vmatmul.mubr.bf16.gmra.mrb[0].mxu0 %v4070
        %v4213 = vpop.f32.mrb[0].mxu0
        %v4214 = vadd.f32 0.0, %v4213
        %v4215 = vpop.f32.mrb[0].mxu0
        %v4216 = vpop.f32.mrb[0].mxu0
        %v4217 = vadd.f32 0.0, %v4216
        %v4218 = vpop.f32.mrb[0].mxu0
        %4219 = vdwg.mxu0
        %v4220 = vadd.f32 %v3804, %v4110
        %v4221 = vadd.f32 %v3805, %v4113
        %v4222 = vadd.f32 %v3806, %v4118
        %v4223 = vadd.f32 %v3807, %v4121
        %v4224 = vadd.f32 %v3808, %v4126
        %v4225 = vadd.f32 %v3809, %v4129
        %v4226 = vadd.f32 %v3810, %v4134
        %v4227 = vadd.f32 %v3811, %v4137
        %v4228 = vadd.f32 %v3812, %v4142
        %v4229 = vadd.f32 %v3813, %v4145
        %v4230 = vadd.f32 %v3814, %v4150
        %v4231 = vadd.f32 %v3815, %v4153
        %v4232 = vadd.f32 %v3816, %v4158
        %v4233 = vadd.f32 %v3817, %v4161
        %v4234 = vadd.f32 %v3818, %v4166
        %v4235 = vadd.f32 %v3819, %v4169
        %v4236 = vadd.f32 %v3820, %v4174
        %v4237 = vadd.f32 %v3821, %v4177
        %v4238 = vadd.f32 %v3822, %v4182
        %v4239 = vadd.f32 %v3823, %v4185
        %v4240 = vadd.f32 %v3824, %v4190
        %v4241 = vadd.f32 %v3825, %v4193
        %v4242 = vadd.f32 %v3826, %v4198
        %v4243 = vadd.f32 %v3827, %v4201
        %v4244 = vadd.f32 %v3828, %v4206
        %v4245 = vadd.f32 %v3829, %v4209
        %v4246 = vadd.f32 %v3830, %v4214
        %v4247 = vadd.f32 %v3831, %v4217
        %v4248 = vld [vmem:[%s213] sm:$0x1]
        %v4250 = vlaneseq
        %v4251 = vshrl.u32 %v4250, 7
        %v4252 = vsub.s32 0, %v4251
        %v4253 = vrot.slane %v4248, %v4252
        %v4255 = vadd.f32 %v4220, %v4253
        %v4256 = vadd.f32 %v4221, %v4253
        %v4257 = vadd.f32 %v4222, %v4253
        %v4258 = vadd.f32 %v4223, %v4253
        %v4259 = vadd.f32 %v4224, %v4253
        %v4260 = vadd.f32 %v4225, %v4253
        %v4261 = vadd.f32 %v4226, %v4253
        %v4262 = vadd.f32 %v4227, %v4253
        %v4263 = vadd.f32 %v4228, %v4253
        %v4264 = vadd.f32 %v4229, %v4253
        %v4265 = vadd.f32 %v4230, %v4253
        %v4266 = vadd.f32 %v4231, %v4253
        %v4267 = vadd.f32 %v4232, %v4253
        %v4268 = vadd.f32 %v4233, %v4253
        %v4269 = vadd.f32 %v4234, %v4253
        %v4270 = vadd.f32 %v4235, %v4253
        %v4271 = vadd.f32 %v4236, %v4253
        %v4272 = vadd.f32 %v4237, %v4253
        %v4273 = vadd.f32 %v4238, %v4253
        %v4274 = vadd.f32 %v4239, %v4253
        %v4275 = vadd.f32 %v4240, %v4253
        %v4276 = vadd.f32 %v4241, %v4253
        %v4277 = vadd.f32 %v4242, %v4253
        %v4278 = vadd.f32 %v4243, %v4253
        %v4279 = vadd.f32 %v4244, %v4253
        %v4280 = vadd.f32 %v4245, %v4253
        %v4281 = vadd.f32 %v4246, %v4253
        %v4282 = vadd.f32 %v4247, %v4253
        %4283 = vst [vmem:[%s201] sm:$0xff] %v4255
        %4284 = vst [vmem:[%s201 + $0x8] sm:$0xff] %v4256
        %4285 = vst [vmem:[%s201 + $0x10] sm:$0xff] %v4257
        %4286 = vst [vmem:[%s201 + $0x18] sm:$0xff] %v4258
        %4287 = vst [vmem:[%s201 + $0x20] sm:$0xff] %v4259
        %4288 = vst [vmem:[%s201 + $0x28] sm:$0xff] %v4260
        %4289 = vst [vmem:[%s201 + $0x30] sm:$0xff] %v4261
        %4290 = vst [vmem:[%s201 + $0x38] sm:$0xff] %v4262
        %4291 = vst [vmem:[%s201 + $0x40] sm:$0xff] %v4263
        %4292 = vst [vmem:[%s201 + $0x48] sm:$0xff] %v4264
        %4293 = vst [vmem:[%s201 + $0x50] sm:$0xff] %v4265
        %4294 = vst [vmem:[%s201 + $0x58] sm:$0xff] %v4266
        %4295 = vst [vmem:[%s201 + $0x60] sm:$0xff] %v4267
        %4296 = vst [vmem:[%s201 + $0x68] sm:$0xff] %v4268
        %4297 = vst [vmem:[%s201 + $0x70] sm:$0xff] %v4269
        %4298 = vst [vmem:[%s201 + $0x78] sm:$0xff] %v4270
        %4299 = vst [vmem:[%s201 + $0x80] sm:$0xff] %v4271
        %4300 = vst [vmem:[%s201 + $0x88] sm:$0xff] %v4272
        %4301 = vst [vmem:[%s201 + $0x90] sm:$0xff] %v4273
        %4302 = vst [vmem:[%s201 + $0x98] sm:$0xff] %v4274
        %4303 = vst [vmem:[%s201 + $0xa0] sm:$0xff] %v4275
        %4304 = vst [vmem:[%s201 + $0xa8] sm:$0xff] %v4276
        %4305 = vst [vmem:[%s201 + $0xb0] sm:$0xff] %v4277
        %4306 = vst [vmem:[%s201 + $0xb8] sm:$0xff] %v4278
        %4307 = vst [vmem:[%s201 + $0xc0] sm:$0xff] %v4279
        %4308 = vst [vmem:[%s201 + $0xc8] sm:$0xff] %v4280
        %4309 = vst [vmem:[%s201 + $0xd0] sm:$0xff] %v4281
        %4310 = vst [vmem:[%s201 + $0xd8] sm:$0xff] %v4282
        %s4311 = sand.u32 %s117, 1
        %s4312 = scalar_lea.sflag [#allocation3], %s4311
        %s4313 = sand.u32 %s117, 1
        %s4314 = smul.addr %s4313, 224
        %s4315 = scalar_lea.vmem [#allocation2], %s4314
        // Predicated region
        $region33: #{tpu_custom_call.1} parent=31 // pred_check
          %p4316 = pneg %p127
        $region34: #{tpu_custom_call.1} parent=31 // pred_check_branch
          %4318 = sbr.rel (%p4316) target = $region36
        $region35: #{tpu_custom_call.1} parent=31 // pred_region
          %s4320 = ssub.s32 3584, 3584
          %4321 = vsyncadd %s4312, %s4320
          %s4322 = smul.addr %s21, 28
          %s4323 = sadd.s32 %s22, %s4322
          %s4324 = smul.addr %s4323, 128
          %s4325 = scalar_lea.hbm %s3, %s4324
          %s4326 = sshll.u32 %s4315, 4
          %s4327 = int_to_ptr.vmem [resolvable:$true] %s4326
          %4332 = dma.vmem_to_hbm [thread:$0]  %s4327, 3584, %s4325, %s4312, 128, 128, 8
        $region36: #{tpu_custom_call.1} parent=31 // pred_fallthru
          _
      $region32: #{tpu_custom_call.1} parent=5 // pred_fallthru
        _
      %p4333 = scmp.le.s32.totalorder 2, %s12
      // Predicated region
      $region37: #{tpu_custom_call.1} parent=5 // pred_check
        %p4334 = pneg %p4333
      $region38: #{tpu_custom_call.1} parent=5 // pred_check_branch
        %4336 = sbr.rel (%p4334) target = $region40
      $region39: #{tpu_custom_call.1} parent=5 // pred_region
        %s4337 = ssub.s32 %s12, 2
        // Predicated region
        $region41: #{tpu_custom_call.1} parent=39 // pred_check
          %p4338 = pneg %p133
        $region42: #{tpu_custom_call.1} parent=39 // pred_check_branch
          %4340 = sbr.rel (%p4338) target = $region44
        $region43: #{tpu_custom_call.1} parent=39 // pred_region
          %s4341 = sand.u32 %s118, 1
          %s4342 = scalar_lea.sflag [#allocation3], %s4341
          %s4343 = sand.u32 %s118, 1
          %s4344 = smul.addr %s4343, 224
          %s4345 = scalar_lea.vmem [#allocation2], %s4344
          %4346 = dma.done %s4342, 3584
        $region44: #{tpu_custom_call.1} parent=39 // pred_fallthru
          _
      $region40: #{tpu_custom_call.1} parent=5 // pred_fallthru
        _
    $region6: #{tpu_custom_call.1} parent=1 // loop_footer
      %s16 = sadd.s32 1, %s12
    $region7: #{tpu_custom_call.1} parent=1 // loop_footer_branch
      %11 = sbr.rel target = $region3
    $region8: #{tpu_custom_call.1} parent=1 // loop_exit
      _
    %4347 = vsyncpa [#allocation3], 1
    %s4348 = scalar_lea.sflag [#allocation3], 1
    %4349 = vsyncpa %s4348, 1

</llo_original>
